<compile_context>
chip_gen: v6e
topology: v6e:2x2x1
jax: 0.10.0
libtpu: 0.0.40
codegen_flags: <defaults>
</compile_context>

<pallas_src>
import functools

import numpy as np

import jax
import jax.numpy as jnp
from jax import lax
from jax.experimental import pallas as pl
from jax.experimental.pallas import tpu as pltpu


# ---------------------------------------------------------------------------
# Kernel
# ---------------------------------------------------------------------------

def _block_kernel(x_ref, w1_ref, b1_ref, w2_ref, b2_ref, o_ref,
                  xpad_ref, mid_ref, *, H, W):
    """Fused conv3x3 -> ReLU -> conv3x3 -> ReLU for one batch element.

    x_ref   : (1, H, W, Cin)    bf16   unpadded NHWC image
    w1_ref  : (9, Cin, Cmid)    bf16   conv1 taps, index = dy*3 + dx
    b1_ref  : (1, Cmid)         f32
    w2_ref  : (9, Cmid, Cout)   bf16   conv2 taps
    b2_ref  : (1, Cout)         f32
    o_ref   : (1, H*W, Cout)    f32    flattened-spatial output slab
    xpad_ref: (H+2, W+2, Cin)   f32    VMEM scratch: zero-padded input
    mid_ref : (H+2, W+2, Cmid)  f32    VMEM scratch: zero-padded conv1 output
    """
    Cin = x_ref.shape[-1]
    Cmid = w1_ref.shape[-1]
    Cout = w2_ref.shape[-1]

    def conv3x3_relu(src_ref, w_ref, b_ref, cin, cout):
        # 9 full-image MXU matmuls (bf16 inputs, f32 accumulation);
        # bias add + ReLU run on the VPU (free under the MXU).
        acc = jnp.zeros((H * W, cout), jnp.float32)
        for dy in range(3):
            for dx in range(3):
                patch = src_ref[dy:dy + H, dx:dx + W, :]           # (H, W, cin)
                patch = patch.reshape(H * W, cin).astype(jnp.bfloat16)
                acc = acc + jnp.dot(patch, w_ref[dy * 3 + dx],
                                    preferred_element_type=jnp.float32)
        return jnp.maximum(acc + b_ref[...], 0.0)

    # ---- in-kernel zero padding (no jnp.pad / extra HBM round trip) --------
    xpad_ref[...] = jnp.zeros_like(xpad_ref)
    xpad_ref[1:H + 1, 1:W + 1, :] = x_ref[0].astype(xpad_ref.dtype)

    # ---- conv1 + ReLU ------------------------------------------------------
    h1 = conv3x3_relu(xpad_ref, w1_ref, b1_ref, Cin, Cmid)         # (H*W, Cmid)

    # Padded intermediate stays resident in VMEM between the two convs.
    mid_ref[...] = jnp.zeros_like(mid_ref)
    mid_ref[1:H + 1, 1:W + 1, :] = h1.reshape(H, W, Cmid)

    # ---- conv2 + ReLU ------------------------------------------------------
    h2 = conv3x3_relu(mid_ref, w2_ref, b2_ref, Cmid, Cout)         # (H*W, Cout)
    o_ref[0] = h2.astype(o_ref.dtype)


# ---------------------------------------------------------------------------
# Wrapper (param prep + layout glue + pallas_call)
# ---------------------------------------------------------------------------

def _prep_conv_weights(w_oihw, b):
    """torch OIHW (Cout, Cin, 3, 3) -> taps-major (9, Cin, Cout) bf16, (1, Cout) f32 bias."""
    cout, cin = w_oihw.shape[0], w_oihw.shape[1]
    w = jnp.transpose(w_oihw, (2, 3, 1, 0)).reshape(9, cin, cout)   # (dy*3+dx, Cin, Cout)
    return w.astype(jnp.bfloat16), b.reshape(1, cout).astype(jnp.float32)


def block_forward(params, x_nchw):
    """PyTorch Block.forward: relu(conv2(relu(conv1(x)))); NCHW in / NCHW out."""
    # NCHW -> NHWC + bf16 cast at the boundary (pure glue, halves HBM read).
    x = jnp.transpose(x_nchw, (0, 2, 3, 1)).astype(jnp.bfloat16)
    B, H, W, Cin = x.shape
    w1, b1 = _prep_conv_weights(params["w1"], params["b1"])
    w2, b2 = _prep_conv_weights(params["w2"], params["b2"])
    Cmid, Cout = w1.shape[-1], w2.shape[-1]

    kernel = functools.partial(_block_kernel, H=H, W=W)
    y = pl.pallas_call(
        kernel,
        out_shape=jax.ShapeDtypeStruct((B, H * W, Cout), jnp.float32),
        grid=(B,),
        in_specs=[
            pl.BlockSpec((1, H, W, Cin), lambda b_: (b_, 0, 0, 0)),
            pl.BlockSpec((9, Cin, Cmid), lambda b_: (0, 0, 0)),
            pl.BlockSpec((1, Cmid), lambda b_: (0, 0)),
            pl.BlockSpec((9, Cmid, Cout), lambda b_: (0, 0, 0)),
            pl.BlockSpec((1, Cout), lambda b_: (0, 0)),
        ],
        out_specs=pl.BlockSpec((1, H * W, Cout), lambda b_: (b_, 0, 0)),
        scratch_shapes=[
            pltpu.VMEM((H + 2, W + 2, Cin), jnp.float32),   # padded input
            pltpu.VMEM((H + 2, W + 2, Cmid), jnp.float32),  # padded conv1 output
        ],
        compiler_params=pltpu.CompilerParams(
            dimension_semantics=("parallel",)),              # B=2 -> both v7x TCs
    )(x, w1, b1, w2, b2)

    y = y.reshape(B, H, W, Cout)
    return jnp.transpose(y, (0, 3, 1, 2))                    # back to NCHW


# ---------------------------------------------------------------------------
# Pure-JAX reference (matches the kernel's bf16-input / f32-accumulate math)
# ---------------------------------------------------------------------------

def reference_forward(params, x_nchw):
    x = jnp.transpose(x_nchw, (0, 2, 3, 1)).astype(jnp.bfloat16)

    def conv_relu(inp, w_oihw, b):
        w_hwio = jnp.transpose(w_oihw, (2, 3, 1, 0)).astype(jnp.bfloat16)
        y = lax.conv_general_dilated(
            inp, w_hwio, window_strides=(1, 1), padding="SAME",
            dimension_numbers=("NHWC", "HWIO", "NHWC"),
            preferred_element_type=jnp.float32)
        return jnp.maximum(y + b.astype(jnp.float32), 0.0)

    h1 = conv_relu(x, params["w1"], params["b1"]).astype(jnp.bfloat16)
    y = conv_relu(h1, params["w2"], params["b2"])
    return jnp.transpose(y, (0, 3, 1, 2))


# ---------------------------------------------------------------------------

def init_params(key, in_ch, out_ch):
    k1, k2, k3, k4 = jax.random.split(key, 4)
    return {
        # torch Conv2d weight layout: OIHW
        "w1": 0.05 * jax.random.normal(k1, (out_ch, in_ch, 3, 3), jnp.float32),
        "b1": 0.02 * jax.random.normal(k2, (out_ch,), jnp.float32),
        "w2": 0.05 * jax.random.normal(k3, (out_ch, out_ch, 3, 3), jnp.float32),
        "b2": 0.02 * jax.random.normal(k4, (out_ch,), jnp.float32),
    }


if __name__ == "__main__":
    key = jax.random.PRNGKey(0)
    pkey, xkey = jax.random.split(key)

    B, Cin, Cout, H, W = 2, 16, 32, 16, 16
    params = init_params(pkey, Cin, Cout)

    # PyTorch-style NCHW input: (batch=2, channels=16, H=16, W=16)
    x = jax.random.normal(xkey, (B, Cin, H, W), jnp.float32)

    out = jax.block_until_ready(jax.jit(block_forward)(params, x))
    assert out.shape == (B, Cout, H, W), out.shape

    ref = jax.block_until_ready(jax.jit(reference_forward)(params, x))
    np.testing.assert_allclose(np.asarray(out), np.asarray(ref),
                               rtol=5e-3, atol=5e-3)

    print("KERNEL_OK")
</pallas_src>

<mosaic_0001>
module attributes {stable_mosaic.version = 11 : i64} {
  func.func @_block_kernel(%arg0: i32, %arg1: memref<1x16x16x16xbf16, #tpu.memory_space<vmem>>, %arg2: memref<9x16x32xbf16, #tpu.memory_space<vmem>>, %arg3: memref<1x32xf32, #tpu.memory_space<vmem>>, %arg4: memref<9x32x32xbf16, #tpu.memory_space<vmem>>, %arg5: memref<1x32xf32, #tpu.memory_space<vmem>>, %arg6: memref<1x256x32xf32, #tpu.memory_space<vmem>>, %arg7: memref<18x18x16xf32, #tpu.memory_space<vmem>>, %arg8: memref<18x18x32xf32, #tpu.memory_space<vmem>>) attributes {dimension_semantics = [#tpu.dimension_semantics<parallel>], iteration_bounds = array<i64: 2>, scalar_prefetch = 0 : i64, scratch_operands = 2 : i64, tpu.core_type = #tpu.core_type<tc>, window_params = [{transform_indices = @transform_0, window_bounds = array<i64: 1, 16, 16, 16>}, {pipeline_mode = #tpu.pipeline_mode<synchronous>, transform_indices = @transform_1, window_bounds = array<i64: 9, 16, 32>}, {pipeline_mode = #tpu.pipeline_mode<synchronous>, transform_indices = @transform_2, window_bounds = array<i64: 1, 32>}, {pipeline_mode = #tpu.pipeline_mode<synchronous>, transform_indices = @transform_3, window_bounds = array<i64: 9, 32, 32>}, {pipeline_mode = #tpu.pipeline_mode<synchronous>, transform_indices = @transform_4, window_bounds = array<i64: 1, 32>}, {transform_indices = @transform_5, window_bounds = array<i64: 1, 256, 32>}]} {
    %cst = arith.constant 0.000000e+00 : f32
    %0 = vector.broadcast %cst : f32 to vector<18x18x16xf32>
    %c0 = arith.constant 0 : index
    %c0_0 = arith.constant 0 : index
    %c0_1 = arith.constant 0 : index
    %1 = vector.load %arg7[%c0, %c0_0, %c0_1] : memref<18x18x16xf32, #tpu.memory_space<vmem>>, vector<18x18x16xf32>
    tpu.vector_store %arg7[%c0, %c0_0, %c0_1], %0 {strides = array<i32>} : memref<18x18x16xf32, #tpu.memory_space<vmem>>, vector<18x18x16xf32>,
    %c0_2 = arith.constant 0 : index
    %c0_3 = arith.constant 0 : index
    %c0_4 = arith.constant 0 : index
    %c0_5 = arith.constant 0 : index
    %2 = vector.load %arg1[%c0_2, %c0_3, %c0_4, %c0_5] : memref<1x16x16x16xbf16, #tpu.memory_space<vmem>>, vector<1x16x16x16xbf16>
    %3 = vector.shape_cast %2 : vector<1x16x16x16xbf16> to vector<16x16x16xbf16>
    %4 = arith.extf %3 : vector<16x16x16xbf16> to vector<16x16x16xf32>
    %c1 = arith.constant 1 : index
    %c1_6 = arith.constant 1 : index
    %c0_7 = arith.constant 0 : index
    %5 = vector.load %arg7[%c1, %c1_6, %c0_7] : memref<18x18x16xf32, #tpu.memory_space<vmem>>, vector<16x16x16xf32>
    tpu.vector_store %arg7[%c1, %c1_6, %c0_7], %4 {strides = array<i32>} : memref<18x18x16xf32, #tpu.memory_space<vmem>>, vector<16x16x16xf32>,
    %cst_8 = arith.constant 0.000000e+00 : f32
    %6 = vector.broadcast %cst_8 : f32 to vector<256x32xf32>
    %c0_9 = arith.constant 0 : index
    %c0_10 = arith.constant 0 : index
    %c0_11 = arith.constant 0 : index
    %7 = vector.load %arg7[%c0_9, %c0_10, %c0_11] : memref<18x18x16xf32, #tpu.memory_space<vmem>>, vector<16x16x16xf32>
    %8 = vector.shape_cast %7 : vector<16x16x16xf32> to vector<256x16xf32>
    %9 = arith.truncf %8 : vector<256x16xf32> to vector<256x16xbf16>
    %c0_12 = arith.constant 0 : index
    %c0_13 = arith.constant 0 : index
    %c0_14 = arith.constant 0 : index
    %10 = vector.load %arg2[%c0_12, %c0_13, %c0_14] : memref<9x16x32xbf16, #tpu.memory_space<vmem>>, vector<1x16x32xbf16>
    %11 = vector.shape_cast %10 : vector<1x16x32xbf16> to vector<16x32xbf16>
    %cst_15 = arith.constant dense<0.000000e+00> : vector<256x32xf32>
    %12 = tpu.matmul %9, %11, %cst_15 {dimension_numbers = #tpu.dot_dimension_numbers<[1], [0], [0], [1], [0, 0, 1, 1], [], []>} : vector<256x16xbf16>, vector<16x32xbf16>, vector<256x32xf32> -> vector<256x32xf32>
    %13 = arith.addf %6, %12 : vector<256x32xf32>
    %c0_16 = arith.constant 0 : index
    %c1_17 = arith.constant 1 : index
    %c0_18 = arith.constant 0 : index
    %14 = vector.load %arg7[%c0_16, %c1_17, %c0_18] : memref<18x18x16xf32, #tpu.memory_space<vmem>>, vector<16x16x16xf32>
    %15 = vector.shape_cast %14 : vector<16x16x16xf32> to vector<256x16xf32>
    %16 = arith.truncf %15 : vector<256x16xf32> to vector<256x16xbf16>
    %c1_19 = arith.constant 1 : index
    %c0_20 = arith.constant 0 : index
    %c0_21 = arith.constant 0 : index
    %17 = vector.load %arg2[%c1_19, %c0_20, %c0_21] : memref<9x16x32xbf16, #tpu.memory_space<vmem>>, vector<1x16x32xbf16>
    %18 = vector.shape_cast %17 : vector<1x16x32xbf16> to vector<16x32xbf16>
    %cst_22 = arith.constant dense<0.000000e+00> : vector<256x32xf32>
    %19 = tpu.matmul %16, %18, %cst_22 {dimension_numbers = #tpu.dot_dimension_numbers<[1], [0], [0], [1], [0, 0, 1, 1], [], []>} : vector<256x16xbf16>, vector<16x32xbf16>, vector<256x32xf32> -> vector<256x32xf32>
    %20 = arith.addf %13, %19 : vector<256x32xf32>
    %c0_23 = arith.constant 0 : index
    %c2 = arith.constant 2 : index
    %c0_24 = arith.constant 0 : index
    %21 = vector.load %arg7[%c0_23, %c2, %c0_24] : memref<18x18x16xf32, #tpu.memory_space<vmem>>, vector<16x16x16xf32>
    %22 = vector.shape_cast %21 : vector<16x16x16xf32> to vector<256x16xf32>
    %23 = arith.truncf %22 : vector<256x16xf32> to vector<256x16xbf16>
    %c2_25 = arith.constant 2 : index
    %c0_26 = arith.constant 0 : index
    %c0_27 = arith.constant 0 : index
    %24 = vector.load %arg2[%c2_25, %c0_26, %c0_27] : memref<9x16x32xbf16, #tpu.memory_space<vmem>>, vector<1x16x32xbf16>
    %25 = vector.shape_cast %24 : vector<1x16x32xbf16> to vector<16x32xbf16>
    %cst_28 = arith.constant dense<0.000000e+00> : vector<256x32xf32>
    %26 = tpu.matmul %23, %25, %cst_28 {dimension_numbers = #tpu.dot_dimension_numbers<[1], [0], [0], [1], [0, 0, 1, 1], [], []>} : vector<256x16xbf16>, vector<16x32xbf16>, vector<256x32xf32> -> vector<256x32xf32>
    %27 = arith.addf %20, %26 : vector<256x32xf32>
    %c1_29 = arith.constant 1 : index
    %c0_30 = arith.constant 0 : index
    %c0_31 = arith.constant 0 : index
    %28 = vector.load %arg7[%c1_29, %c0_30, %c0_31] : memref<18x18x16xf32, #tpu.memory_space<vmem>>, vector<16x16x16xf32>
    %29 = vector.shape_cast %28 : vector<16x16x16xf32> to vector<256x16xf32>
    %30 = arith.truncf %29 : vector<256x16xf32> to vector<256x16xbf16>
    %c3 = arith.constant 3 : index
    %c0_32 = arith.constant 0 : index
    %c0_33 = arith.constant 0 : index
    %31 = vector.load %arg2[%c3, %c0_32, %c0_33] : memref<9x16x32xbf16, #tpu.memory_space<vmem>>, vector<1x16x32xbf16>
    %32 = vector.shape_cast %31 : vector<1x16x32xbf16> to vector<16x32xbf16>
    %cst_34 = arith.constant dense<0.000000e+00> : vector<256x32xf32>
    %33 = tpu.matmul %30, %32, %cst_34 {dimension_numbers = #tpu.dot_dimension_numbers<[1], [0], [0], [1], [0, 0, 1, 1], [], []>} : vector<256x16xbf16>, vector<16x32xbf16>, vector<256x32xf32> -> vector<256x32xf32>
    %34 = arith.addf %27, %33 : vector<256x32xf32>
    %c1_35 = arith.constant 1 : index
    %c1_36 = arith.constant 1 : index
    %c0_37 = arith.constant 0 : index
    %35 = vector.load %arg7[%c1_35, %c1_36, %c0_37] : memref<18x18x16xf32, #tpu.memory_space<vmem>>, vector<16x16x16xf32>
    %36 = vector.shape_cast %35 : vector<16x16x16xf32> to vector<256x16xf32>
    %37 = arith.truncf %36 : vector<256x16xf32> to vector<256x16xbf16>
    %c4 = arith.constant 4 : index
    %c0_38 = arith.constant 0 : index
    %c0_39 = arith.constant 0 : index
    %38 = vector.load %arg2[%c4, %c0_38, %c0_39] : memref<9x16x32xbf16, #tpu.memory_space<vmem>>, vector<1x16x32xbf16>
    %39 = vector.shape_cast %38 : vector<1x16x32xbf16> to vector<16x32xbf16>
    %cst_40 = arith.constant dense<0.000000e+00> : vector<256x32xf32>
    %40 = tpu.matmul %37, %39, %cst_40 {dimension_numbers = #tpu.dot_dimension_numbers<[1], [0], [0], [1], [0, 0, 1, 1], [], []>} : vector<256x16xbf16>, vector<16x32xbf16>, vector<256x32xf32> -> vector<256x32xf32>
    %41 = arith.addf %34, %40 : vector<256x32xf32>
    %c1_41 = arith.constant 1 : index
    %c2_42 = arith.constant 2 : index
    %c0_43 = arith.constant 0 : index
    %42 = vector.load %arg7[%c1_41, %c2_42, %c0_43] : memref<18x18x16xf32, #tpu.memory_space<vmem>>, vector<16x16x16xf32>
    %43 = vector.shape_cast %42 : vector<16x16x16xf32> to vector<256x16xf32>
    %44 = arith.truncf %43 : vector<256x16xf32> to vector<256x16xbf16>
    %c5 = arith.constant 5 : index
    %c0_44 = arith.constant 0 : index
    %c0_45 = arith.constant 0 : index
    %45 = vector.load %arg2[%c5, %c0_44, %c0_45] : memref<9x16x32xbf16, #tpu.memory_space<vmem>>, vector<1x16x32xbf16>
    %46 = vector.shape_cast %45 : vector<1x16x32xbf16> to vector<16x32xbf16>
    %cst_46 = arith.constant dense<0.000000e+00> : vector<256x32xf32>
    %47 = tpu.matmul %44, %46, %cst_46 {dimension_numbers = #tpu.dot_dimension_numbers<[1], [0], [0], [1], [0, 0, 1, 1], [], []>} : vector<256x16xbf16>, vector<16x32xbf16>, vector<256x32xf32> -> vector<256x32xf32>
    %48 = arith.addf %41, %47 : vector<256x32xf32>
    %c2_47 = arith.constant 2 : index
    %c0_48 = arith.constant 0 : index
    %c0_49 = arith.constant 0 : index
    %49 = vector.load %arg7[%c2_47, %c0_48, %c0_49] : memref<18x18x16xf32, #tpu.memory_space<vmem>>, vector<16x16x16xf32>
    %50 = vector.shape_cast %49 : vector<16x16x16xf32> to vector<256x16xf32>
    %51 = arith.truncf %50 : vector<256x16xf32> to vector<256x16xbf16>
    %c6 = arith.constant 6 : index
    %c0_50 = arith.constant 0 : index
    %c0_51 = arith.constant 0 : index
    %52 = vector.load %arg2[%c6, %c0_50, %c0_51] : memref<9x16x32xbf16, #tpu.memory_space<vmem>>, vector<1x16x32xbf16>
    %53 = vector.shape_cast %52 : vector<1x16x32xbf16> to vector<16x32xbf16>
    %cst_52 = arith.constant dense<0.000000e+00> : vector<256x32xf32>
    %54 = tpu.matmul %51, %53, %cst_52 {dimension_numbers = #tpu.dot_dimension_numbers<[1], [0], [0], [1], [0, 0, 1, 1], [], []>} : vector<256x16xbf16>, vector<16x32xbf16>, vector<256x32xf32> -> vector<256x32xf32>
    %55 = arith.addf %48, %54 : vector<256x32xf32>
    %c2_53 = arith.constant 2 : index
    %c1_54 = arith.constant 1 : index
    %c0_55 = arith.constant 0 : index
    %56 = vector.load %arg7[%c2_53, %c1_54, %c0_55] : memref<18x18x16xf32, #tpu.memory_space<vmem>>, vector<16x16x16xf32>
    %57 = vector.shape_cast %56 : vector<16x16x16xf32> to vector<256x16xf32>
    %58 = arith.truncf %57 : vector<256x16xf32> to vector<256x16xbf16>
    %c7 = arith.constant 7 : index
    %c0_56 = arith.constant 0 : index
    %c0_57 = arith.constant 0 : index
    %59 = vector.load %arg2[%c7, %c0_56, %c0_57] : memref<9x16x32xbf16, #tpu.memory_space<vmem>>, vector<1x16x32xbf16>
    %60 = vector.shape_cast %59 : vector<1x16x32xbf16> to vector<16x32xbf16>
    %cst_58 = arith.constant dense<0.000000e+00> : vector<256x32xf32>
    %61 = tpu.matmul %58, %60, %cst_58 {dimension_numbers = #tpu.dot_dimension_numbers<[1], [0], [0], [1], [0, 0, 1, 1], [], []>} : vector<256x16xbf16>, vector<16x32xbf16>, vector<256x32xf32> -> vector<256x32xf32>
    %62 = arith.addf %55, %61 : vector<256x32xf32>
    %c2_59 = arith.constant 2 : index
    %c2_60 = arith.constant 2 : index
    %c0_61 = arith.constant 0 : index
    %63 = vector.load %arg7[%c2_59, %c2_60, %c0_61] : memref<18x18x16xf32, #tpu.memory_space<vmem>>, vector<16x16x16xf32>
    %64 = vector.shape_cast %63 : vector<16x16x16xf32> to vector<256x16xf32>
    %65 = arith.truncf %64 : vector<256x16xf32> to vector<256x16xbf16>
    %c8 = arith.constant 8 : index
    %c0_62 = arith.constant 0 : index
    %c0_63 = arith.constant 0 : index
    %66 = vector.load %arg2[%c8, %c0_62, %c0_63] : memref<9x16x32xbf16, #tpu.memory_space<vmem>>, vector<1x16x32xbf16>
    %67 = vector.shape_cast %66 : vector<1x16x32xbf16> to vector<16x32xbf16>
    %cst_64 = arith.constant dense<0.000000e+00> : vector<256x32xf32>
    %68 = tpu.matmul %65, %67, %cst_64 {dimension_numbers = #tpu.dot_dimension_numbers<[1], [0], [0], [1], [0, 0, 1, 1], [], []>} : vector<256x16xbf16>, vector<16x32xbf16>, vector<256x32xf32> -> vector<256x32xf32>
    %69 = arith.addf %62, %68 : vector<256x32xf32>
    %c0_65 = arith.constant 0 : index
    %c0_66 = arith.constant 0 : index
    %70 = vector.load %arg3[%c0_65, %c0_66] : memref<1x32xf32, #tpu.memory_space<vmem>>, vector<1x32xf32>
    %71 = vector.broadcast %70 : vector<1x32xf32> to vector<256x32xf32>
    %72 = arith.addf %69, %71 : vector<256x32xf32>
    %cst_67 = arith.constant 0.000000e+00 : f32
    %73 = vector.broadcast %cst_67 : f32 to vector<256x32xf32>
    %74 = arith.maximumf %72, %73 : vector<256x32xf32>
    %cst_68 = arith.constant 0.000000e+00 : f32
    %75 = vector.broadcast %cst_68 : f32 to vector<18x18x32xf32>
    %c0_69 = arith.constant 0 : index
    %c0_70 = arith.constant 0 : index
    %c0_71 = arith.constant 0 : index
    %76 = vector.load %arg8[%c0_69, %c0_70, %c0_71] : memref<18x18x32xf32, #tpu.memory_space<vmem>>, vector<18x18x32xf32>
    tpu.vector_store %arg8[%c0_69, %c0_70, %c0_71], %75 {strides = array<i32>} : memref<18x18x32xf32, #tpu.memory_space<vmem>>, vector<18x18x32xf32>,
    %77 = vector.shape_cast %74 : vector<256x32xf32> to vector<16x16x32xf32>
    %c1_72 = arith.constant 1 : index
    %c1_73 = arith.constant 1 : index
    %c0_74 = arith.constant 0 : index
    %78 = vector.load %arg8[%c1_72, %c1_73, %c0_74] : memref<18x18x32xf32, #tpu.memory_space<vmem>>, vector<16x16x32xf32>
    tpu.vector_store %arg8[%c1_72, %c1_73, %c0_74], %77 {strides = array<i32>} : memref<18x18x32xf32, #tpu.memory_space<vmem>>, vector<16x16x32xf32>,
    %cst_75 = arith.constant 0.000000e+00 : f32
    %79 = vector.broadcast %cst_75 : f32 to vector<256x32xf32>
    %c0_76 = arith.constant 0 : index
    %c0_77 = arith.constant 0 : index
    %c0_78 = arith.constant 0 : index
    %80 = vector.load %arg8[%c0_76, %c0_77, %c0_78] : memref<18x18x32xf32, #tpu.memory_space<vmem>>, vector<16x16x32xf32>
    %81 = vector.shape_cast %80 : vector<16x16x32xf32> to vector<256x32xf32>
    %82 = arith.truncf %81 : vector<256x32xf32> to vector<256x32xbf16>
    %c0_79 = arith.constant 0 : index
    %c0_80 = arith.constant 0 : index
    %c0_81 = arith.constant 0 : index
    %83 = vector.load %arg4[%c0_79, %c0_80, %c0_81] : memref<9x32x32xbf16, #tpu.memory_space<vmem>>, vector<1x32x32xbf16>
    %84 = vector.shape_cast %83 : vector<1x32x32xbf16> to vector<32x32xbf16>
    %cst_82 = arith.constant dense<0.000000e+00> : vector<256x32xf32>
    %85 = tpu.matmul %82, %84, %cst_82 {dimension_numbers = #tpu.dot_dimension_numbers<[1], [0], [0], [1], [0, 0, 1, 1], [], []>} : vector<256x32xbf16>, vector<32x32xbf16>, vector<256x32xf32> -> vector<256x32xf32>
    %86 = arith.addf %79, %85 : vector<256x32xf32>
    %c0_83 = arith.constant 0 : index
    %c1_84 = arith.constant 1 : index
    %c0_85 = arith.constant 0 : index
    %87 = vector.load %arg8[%c0_83, %c1_84, %c0_85] : memref<18x18x32xf32, #tpu.memory_space<vmem>>, vector<16x16x32xf32>
    %88 = vector.shape_cast %87 : vector<16x16x32xf32> to vector<256x32xf32>
    %89 = arith.truncf %88 : vector<256x32xf32> to vector<256x32xbf16>
    %c1_86 = arith.constant 1 : index
    %c0_87 = arith.constant 0 : index
    %c0_88 = arith.constant 0 : index
    %90 = vector.load %arg4[%c1_86, %c0_87, %c0_88] : memref<9x32x32xbf16, #tpu.memory_space<vmem>>, vector<1x32x32xbf16>
    %91 = vector.shape_cast %90 : vector<1x32x32xbf16> to vector<32x32xbf16>
    %cst_89 = arith.constant dense<0.000000e+00> : vector<256x32xf32>
    %92 = tpu.matmul %89, %91, %cst_89 {dimension_numbers = #tpu.dot_dimension_numbers<[1], [0], [0], [1], [0, 0, 1, 1], [], []>} : vector<256x32xbf16>, vector<32x32xbf16>, vector<256x32xf32> -> vector<256x32xf32>
    %93 = arith.addf %86, %92 : vector<256x32xf32>
    %c0_90 = arith.constant 0 : index
    %c2_91 = arith.constant 2 : index
    %c0_92 = arith.constant 0 : index
    %94 = vector.load %arg8[%c0_90, %c2_91, %c0_92] : memref<18x18x32xf32, #tpu.memory_space<vmem>>, vector<16x16x32xf32>
    %95 = vector.shape_cast %94 : vector<16x16x32xf32> to vector<256x32xf32>
    %96 = arith.truncf %95 : vector<256x32xf32> to vector<256x32xbf16>
    %c2_93 = arith.constant 2 : index
    %c0_94 = arith.constant 0 : index
    %c0_95 = arith.constant 0 : index
    %97 = vector.load %arg4[%c2_93, %c0_94, %c0_95] : memref<9x32x32xbf16, #tpu.memory_space<vmem>>, vector<1x32x32xbf16>
    %98 = vector.shape_cast %97 : vector<1x32x32xbf16> to vector<32x32xbf16>
    %cst_96 = arith.constant dense<0.000000e+00> : vector<256x32xf32>
    %99 = tpu.matmul %96, %98, %cst_96 {dimension_numbers = #tpu.dot_dimension_numbers<[1], [0], [0], [1], [0, 0, 1, 1], [], []>} : vector<256x32xbf16>, vector<32x32xbf16>, vector<256x32xf32> -> vector<256x32xf32>
    %100 = arith.addf %93, %99 : vector<256x32xf32>
    %c1_97 = arith.constant 1 : index
    %c0_98 = arith.constant 0 : index
    %c0_99 = arith.constant 0 : index
    %101 = vector.load %arg8[%c1_97, %c0_98, %c0_99] : memref<18x18x32xf32, #tpu.memory_space<vmem>>, vector<16x16x32xf32>
    %102 = vector.shape_cast %101 : vector<16x16x32xf32> to vector<256x32xf32>
    %103 = arith.truncf %102 : vector<256x32xf32> to vector<256x32xbf16>
    %c3_100 = arith.constant 3 : index
    %c0_101 = arith.constant 0 : index
    %c0_102 = arith.constant 0 : index
    %104 = vector.load %arg4[%c3_100, %c0_101, %c0_102] : memref<9x32x32xbf16, #tpu.memory_space<vmem>>, vector<1x32x32xbf16>
    %105 = vector.shape_cast %104 : vector<1x32x32xbf16> to vector<32x32xbf16>
    %cst_103 = arith.constant dense<0.000000e+00> : vector<256x32xf32>
    %106 = tpu.matmul %103, %105, %cst_103 {dimension_numbers = #tpu.dot_dimension_numbers<[1], [0], [0], [1], [0, 0, 1, 1], [], []>} : vector<256x32xbf16>, vector<32x32xbf16>, vector<256x32xf32> -> vector<256x32xf32>
    %107 = arith.addf %100, %106 : vector<256x32xf32>
    %c1_104 = arith.constant 1 : index
    %c1_105 = arith.constant 1 : index
    %c0_106 = arith.constant 0 : index
    %108 = vector.load %arg8[%c1_104, %c1_105, %c0_106] : memref<18x18x32xf32, #tpu.memory_space<vmem>>, vector<16x16x32xf32>
    %109 = vector.shape_cast %108 : vector<16x16x32xf32> to vector<256x32xf32>
    %110 = arith.truncf %109 : vector<256x32xf32> to vector<256x32xbf16>
    %c4_107 = arith.constant 4 : index
    %c0_108 = arith.constant 0 : index
    %c0_109 = arith.constant 0 : index
    %111 = vector.load %arg4[%c4_107, %c0_108, %c0_109] : memref<9x32x32xbf16, #tpu.memory_space<vmem>>, vector<1x32x32xbf16>
    %112 = vector.shape_cast %111 : vector<1x32x32xbf16> to vector<32x32xbf16>
    %cst_110 = arith.constant dense<0.000000e+00> : vector<256x32xf32>
    %113 = tpu.matmul %110, %112, %cst_110 {dimension_numbers = #tpu.dot_dimension_numbers<[1], [0], [0], [1], [0, 0, 1, 1], [], []>} : vector<256x32xbf16>, vector<32x32xbf16>, vector<256x32xf32> -> vector<256x32xf32>
    %114 = arith.addf %107, %113 : vector<256x32xf32>
    %c1_111 = arith.constant 1 : index
    %c2_112 = arith.constant 2 : index
    %c0_113 = arith.constant 0 : index
    %115 = vector.load %arg8[%c1_111, %c2_112, %c0_113] : memref<18x18x32xf32, #tpu.memory_space<vmem>>, vector<16x16x32xf32>
    %116 = vector.shape_cast %115 : vector<16x16x32xf32> to vector<256x32xf32>
    %117 = arith.truncf %116 : vector<256x32xf32> to vector<256x32xbf16>
    %c5_114 = arith.constant 5 : index
    %c0_115 = arith.constant 0 : index
    %c0_116 = arith.constant 0 : index
    %118 = vector.load %arg4[%c5_114, %c0_115, %c0_116] : memref<9x32x32xbf16, #tpu.memory_space<vmem>>, vector<1x32x32xbf16>
    %119 = vector.shape_cast %118 : vector<1x32x32xbf16> to vector<32x32xbf16>
    %cst_117 = arith.constant dense<0.000000e+00> : vector<256x32xf32>
    %120 = tpu.matmul %117, %119, %cst_117 {dimension_numbers = #tpu.dot_dimension_numbers<[1], [0], [0], [1], [0, 0, 1, 1], [], []>} : vector<256x32xbf16>, vector<32x32xbf16>, vector<256x32xf32> -> vector<256x32xf32>
    %121 = arith.addf %114, %120 : vector<256x32xf32>
    %c2_118 = arith.constant 2 : index
    %c0_119 = arith.constant 0 : index
    %c0_120 = arith.constant 0 : index
    %122 = vector.load %arg8[%c2_118, %c0_119, %c0_120] : memref<18x18x32xf32, #tpu.memory_space<vmem>>, vector<16x16x32xf32>
    %123 = vector.shape_cast %122 : vector<16x16x32xf32> to vector<256x32xf32>
    %124 = arith.truncf %123 : vector<256x32xf32> to vector<256x32xbf16>
    %c6_121 = arith.constant 6 : index
    %c0_122 = arith.constant 0 : index
    %c0_123 = arith.constant 0 : index
    %125 = vector.load %arg4[%c6_121, %c0_122, %c0_123] : memref<9x32x32xbf16, #tpu.memory_space<vmem>>, vector<1x32x32xbf16>
    %126 = vector.shape_cast %125 : vector<1x32x32xbf16> to vector<32x32xbf16>
    %cst_124 = arith.constant dense<0.000000e+00> : vector<256x32xf32>
    %127 = tpu.matmul %124, %126, %cst_124 {dimension_numbers = #tpu.dot_dimension_numbers<[1], [0], [0], [1], [0, 0, 1, 1], [], []>} : vector<256x32xbf16>, vector<32x32xbf16>, vector<256x32xf32> -> vector<256x32xf32>
    %128 = arith.addf %121, %127 : vector<256x32xf32>
    %c2_125 = arith.constant 2 : index
    %c1_126 = arith.constant 1 : index
    %c0_127 = arith.constant 0 : index
    %129 = vector.load %arg8[%c2_125, %c1_126, %c0_127] : memref<18x18x32xf32, #tpu.memory_space<vmem>>, vector<16x16x32xf32>
    %130 = vector.shape_cast %129 : vector<16x16x32xf32> to vector<256x32xf32>
    %131 = arith.truncf %130 : vector<256x32xf32> to vector<256x32xbf16>
    %c7_128 = arith.constant 7 : index
    %c0_129 = arith.constant 0 : index
    %c0_130 = arith.constant 0 : index
    %132 = vector.load %arg4[%c7_128, %c0_129, %c0_130] : memref<9x32x32xbf16, #tpu.memory_space<vmem>>, vector<1x32x32xbf16>
    %133 = vector.shape_cast %132 : vector<1x32x32xbf16> to vector<32x32xbf16>
    %cst_131 = arith.constant dense<0.000000e+00> : vector<256x32xf32>
    %134 = tpu.matmul %131, %133, %cst_131 {dimension_numbers = #tpu.dot_dimension_numbers<[1], [0], [0], [1], [0, 0, 1, 1], [], []>} : vector<256x32xbf16>, vector<32x32xbf16>, vector<256x32xf32> -> vector<256x32xf32>
    %135 = arith.addf %128, %134 : vector<256x32xf32>
    %c2_132 = arith.constant 2 : index
    %c2_133 = arith.constant 2 : index
    %c0_134 = arith.constant 0 : index
    %136 = vector.load %arg8[%c2_132, %c2_133, %c0_134] : memref<18x18x32xf32, #tpu.memory_space<vmem>>, vector<16x16x32xf32>
    %137 = vector.shape_cast %136 : vector<16x16x32xf32> to vector<256x32xf32>
    %138 = arith.truncf %137 : vector<256x32xf32> to vector<256x32xbf16>
    %c8_135 = arith.constant 8 : index
    %c0_136 = arith.constant 0 : index
    %c0_137 = arith.constant 0 : index
    %139 = vector.load %arg4[%c8_135, %c0_136, %c0_137] : memref<9x32x32xbf16, #tpu.memory_space<vmem>>, vector<1x32x32xbf16>
    %140 = vector.shape_cast %139 : vector<1x32x32xbf16> to vector<32x32xbf16>
    %cst_138 = arith.constant dense<0.000000e+00> : vector<256x32xf32>
    %141 = tpu.matmul %138, %140, %cst_138 {dimension_numbers = #tpu.dot_dimension_numbers<[1], [0], [0], [1], [0, 0, 1, 1], [], []>} : vector<256x32xbf16>, vector<32x32xbf16>, vector<256x32xf32> -> vector<256x32xf32>
    %142 = arith.addf %135, %141 : vector<256x32xf32>
    %c0_139 = arith.constant 0 : index
    %c0_140 = arith.constant 0 : index
    %143 = vector.load %arg5[%c0_139, %c0_140] : memref<1x32xf32, #tpu.memory_space<vmem>>, vector<1x32xf32>
    %144 = vector.broadcast %143 : vector<1x32xf32> to vector<256x32xf32>
    %145 = arith.addf %142, %144 : vector<256x32xf32>
    %cst_141 = arith.constant 0.000000e+00 : f32
    %146 = vector.broadcast %cst_141 : f32 to vector<256x32xf32>
    %147 = arith.maximumf %145, %146 : vector<256x32xf32>
    %c0_142 = arith.constant 0 : index
    %c0_143 = arith.constant 0 : index
    %c0_144 = arith.constant 0 : index
    %148 = vector.load %arg6[%c0_142, %c0_143, %c0_144] : memref<1x256x32xf32, #tpu.memory_space<vmem>>, vector<1x256x32xf32>
    %149 = vector.shape_cast %148 : vector<1x256x32xf32> to vector<256x32xf32>
    %150 = vector.shape_cast %147 : vector<256x32xf32> to vector<1x256x32xf32>
    tpu.vector_store %arg6[%c0_142, %c0_143, %c0_144], %150 {strides = array<i32>} : memref<1x256x32xf32, #tpu.memory_space<vmem>>, vector<1x256x32xf32>,
    return
  }
  func.func @transform_0(%arg0: i32) -> (i32, i32, i32, i32) {
    %c0_i32 = arith.constant 0 : i32
    %c0_i32_0 = arith.constant 0 : i32
    %c0_i32_1 = arith.constant 0 : i32
    %c0_i32_2 = arith.constant 0 : i32
    return %arg0, %c0_i32, %c0_i32_0, %c0_i32_1 : i32, i32, i32, i32
  }
  func.func @transform_1(%arg0: i32) -> (i32, i32, i32) {
    %c0_i32 = arith.constant 0 : i32
    %c0_i32_0 = arith.constant 0 : i32
    %c0_i32_1 = arith.constant 0 : i32
    %c0_i32_2 = arith.constant 0 : i32
    return %c0_i32, %c0_i32_0, %c0_i32_1 : i32, i32, i32
  }
  func.func @transform_2(%arg0: i32) -> (i32, i32) {
    %c0_i32 = arith.constant 0 : i32
    %c0_i32_0 = arith.constant 0 : i32
    %c0_i32_1 = arith.constant 0 : i32
    return %c0_i32, %c0_i32_0 : i32, i32
  }
  func.func @transform_3(%arg0: i32) -> (i32, i32, i32) {
    %c0_i32 = arith.constant 0 : i32
    %c0_i32_0 = arith.constant 0 : i32
    %c0_i32_1 = arith.constant 0 : i32
    %c0_i32_2 = arith.constant 0 : i32
    return %c0_i32, %c0_i32_0, %c0_i32_1 : i32, i32, i32
  }
  func.func @transform_4(%arg0: i32) -> (i32, i32) {
    %c0_i32 = arith.constant 0 : i32
    %c0_i32_0 = arith.constant 0 : i32
    %c0_i32_1 = arith.constant 0 : i32
    return %c0_i32, %c0_i32_0 : i32, i32
  }
  func.func @transform_5(%arg0: i32) -> (i32, i32, i32) {
    %c0_i32 = arith.constant 0 : i32
    %c0_i32_0 = arith.constant 0 : i32
    %c0_i32_1 = arith.constant 0 : i32
    return %arg0, %c0_i32, %c0_i32_0 : i32, i32, i32
  }
}

</mosaic_0001>

<llo_original>
// kernel: block_forward.1
$region0: #{block_forward.1}
  #allocation0 [shape = 'u32[]', space=smem, size = 0x4, offset = 0x4, fixed_abs, tag = 'smem constant byte address 0x4 - core index']
  #allocation1 [shape = 'u32[144,128]{1,0:T(1,128)}', space=vmem, size = 0x12000, scoped, tag = 'internal scratch']
  #allocation2 [shape = 'f32[18,18,16]{2,1,0:T(8,128)}', space=vmem, size = 0x36000, scoped, tag = 'scratch operand']
  #allocation3 [shape = 'f32[18,18,32]{2,1,0:T(8,128)}', space=vmem, size = 0x36000, scoped, tag = 'scratch operand']
  %s0 = inlined_call_operand.vmem [shape: bf16[2,16,16,16], index: 0, kind: input, shape index: {}]
  %s1 = inlined_call_operand.vmem [shape: bf16[9,16,32], index: 1, kind: input, shape index: {}]
  %s2 = inlined_call_operand.vmem [shape: f32[1,32], index: 2, kind: input, shape index: {}]
  %s3 = inlined_call_operand.vmem [shape: bf16[9,32,32], index: 3, kind: input, shape index: {}]
  %s4 = inlined_call_operand.vmem [shape: f32[1,32], index: 4, kind: input, shape index: {}]
  %s5 = inlined_call_operand.hbm [shape: f32[2,256,32], index: 5, kind: output, shape index: {}]
  %s6 = sld [smem:[#allocation0]]
  $region53: #{block_forward.1} parent=0
    _
  %s8 = ssub.s32 1, %s6
  %s9 = scalar_select 0, %s8, %s6
  $region1: #{block_forward.1} parent=0
    #allocation4 [shape = 'u8[262144]{0}', space=vmem, size = 0x40000, scoped, tag = 'output window, operand 0']
    #allocation5 [shape = 's32[2]{0}', space=sflag, size = 0x8, scoped, tag = 'scoped memory for block_forward.1']
    %10 = vsyncpa [#allocation5], 0
    %s11 = scalar_lea.sflag [#allocation5], 1
    %12 = vsyncpa %s11, 0
    loop: start=0, step=1, limit=4
    $region2: #{block_forward.1} parent=1 // loop_pre_header
      _
    $region3: #{block_forward.1} parent=1 // loop_header
      %s14 = sphi 0, %s18
      %p15 = scmp.ge.s32.totalorder %s14, 4
      %s24 = sphi 0, %s26
      %s27 = sphi 0, %s24
      %s28 = sphi 0, %s27
      %s44 = sphi 0, %s28
      %s48 = sphi 0, %s48
      %s50 = sphi 0, %s48
      %s51 = sphi 0, %s50
      %s65 = sphi 0, %s51
      %s69 = sphi 0, %s69
      %s71 = sphi 0, %s69
      %s72 = sphi 0, %s71
      %s86 = sphi 0, %s72
      %s90 = sphi 0, %s90
      %s92 = sphi 0, %s90
      %s93 = sphi 0, %s92
      %s107 = sphi 0, %s93
      %s111 = sphi 0, %s111
      %s113 = sphi 0, %s111
      %s114 = sphi 0, %s113
      %s128 = sphi 0, %s114
      %s134 = sphi 0, %s136
      %s137 = sphi 0, %s134
      %s138 = sphi 0, %s137
      %s154 = sphi 0, %s138
    $region4: #{block_forward.1} parent=1 // loop_header_branch
      %17 = sbr.rel (%p15) target = $region8
    $region5: #{block_forward.1} parent=1 // loop_body
      %s19 = ssub.s32 %s14, 1
      %s20 = ssub.s32 %s14, 2
      %s21 = sadd.s32 %s14, 1
      %s22 = ssub.s32 %s14, %s21
      %p23 = scmp.eq.s32.totalorder %s22, 0
      %s25 = sadd.s32 %s24, 1
      %s26 = scalar_select %p23, %s24, %s25
      %p29 = pneg %p23
      %p30 = scmp.eq.s32.totalorder %s14, 1
      %p31 = por %p29, %p30
      %p32 = scmp.ne.s32.totalorder %s24, %s27
      %p33 = scmp.eq.s32.totalorder %s14, 0
      %p34 = por %p32, %p33
      %p35 = scmp.ne.s32.totalorder %s24, %s27
      %p36 = scmp.eq.s32.totalorder %s19, 1
      %p37 = por %p35, %p36
      %p38 = scmp.ne.s32.totalorder %s27, %s28
      %p39 = scmp.eq.s32.totalorder %s19, 0
      %p40 = por %p38, %p39
      %p41 = scmp.ne.s32.totalorder %s27, %s28
      %p42 = scmp.eq.s32.totalorder %s20, 1
      %p43 = por %p41, %p42
      %p45 = scmp.ne.s32.totalorder %s28, %s44
      %p46 = scmp.eq.s32.totalorder %s20, 0
      %p47 = por %p45, %p46
      %s49 = sadd.s32 %s48, 1
      %p52 = scmp.eq.s32.totalorder %s14, 1
      %p53 = scmp.ne.s32.totalorder %s48, %s50
      %p54 = scmp.eq.s32.totalorder %s14, 0
      %p55 = por %p53, %p54
      %p56 = scmp.ne.s32.totalorder %s48, %s50
      %p57 = scmp.eq.s32.totalorder %s19, 1
      %p58 = por %p56, %p57
      %p59 = scmp.ne.s32.totalorder %s50, %s51
      %p60 = scmp.eq.s32.totalorder %s19, 0
      %p61 = por %p59, %p60
      %p62 = scmp.ne.s32.totalorder %s50, %s51
      %p63 = scmp.eq.s32.totalorder %s20, 1
      %p64 = por %p62, %p63
      %p66 = scmp.ne.s32.totalorder %s51, %s65
      %p67 = scmp.eq.s32.totalorder %s20, 0
      %p68 = por %p66, %p67
      %s70 = sadd.s32 %s69, 1
      %p73 = scmp.eq.s32.totalorder %s14, 1
      %p74 = scmp.ne.s32.totalorder %s69, %s71
      %p75 = scmp.eq.s32.totalorder %s14, 0
      %p76 = por %p74, %p75
      %p77 = scmp.ne.s32.totalorder %s69, %s71
      %p78 = scmp.eq.s32.totalorder %s19, 1
      %p79 = por %p77, %p78
      %p80 = scmp.ne.s32.totalorder %s71, %s72
      %p81 = scmp.eq.s32.totalorder %s19, 0
      %p82 = por %p80, %p81
      %p83 = scmp.ne.s32.totalorder %s71, %s72
      %p84 = scmp.eq.s32.totalorder %s20, 1
      %p85 = por %p83, %p84
      %p87 = scmp.ne.s32.totalorder %s72, %s86
      %p88 = scmp.eq.s32.totalorder %s20, 0
      %p89 = por %p87, %p88
      %s91 = sadd.s32 %s90, 1
      %p94 = scmp.eq.s32.totalorder %s14, 1
      %p95 = scmp.ne.s32.totalorder %s90, %s92
      %p96 = scmp.eq.s32.totalorder %s14, 0
      %p97 = por %p95, %p96
      %p98 = scmp.ne.s32.totalorder %s90, %s92
      %p99 = scmp.eq.s32.totalorder %s19, 1
      %p100 = por %p98, %p99
      %p101 = scmp.ne.s32.totalorder %s92, %s93
      %p102 = scmp.eq.s32.totalorder %s19, 0
      %p103 = por %p101, %p102
      %p104 = scmp.ne.s32.totalorder %s92, %s93
      %p105 = scmp.eq.s32.totalorder %s20, 1
      %p106 = por %p104, %p105
      %p108 = scmp.ne.s32.totalorder %s93, %s107
      %p109 = scmp.eq.s32.totalorder %s20, 0
      %p110 = por %p108, %p109
      %s112 = sadd.s32 %s111, 1
      %p115 = scmp.eq.s32.totalorder %s14, 1
      %p116 = scmp.ne.s32.totalorder %s111, %s113
      %p117 = scmp.eq.s32.totalorder %s14, 0
      %p118 = por %p116, %p117
      %p119 = scmp.ne.s32.totalorder %s111, %s113
      %p120 = scmp.eq.s32.totalorder %s19, 1
      %p121 = por %p119, %p120
      %p122 = scmp.ne.s32.totalorder %s113, %s114
      %p123 = scmp.eq.s32.totalorder %s19, 0
      %p124 = por %p122, %p123
      %p125 = scmp.ne.s32.totalorder %s113, %s114
      %p126 = scmp.eq.s32.totalorder %s20, 1
      %p127 = por %p125, %p126
      %p129 = scmp.ne.s32.totalorder %s114, %s128
      %p130 = scmp.eq.s32.totalorder %s20, 0
      %p131 = por %p129, %p130
      %s132 = ssub.s32 %s14, %s21
      %p133 = scmp.eq.s32.totalorder %s132, 0
      %s135 = sadd.s32 %s134, 1
      %s136 = scalar_select %p133, %s134, %s135
      %p139 = pneg %p133
      %p140 = scmp.eq.s32.totalorder %s14, 1
      %p141 = por %p139, %p140
      %p142 = scmp.ne.s32.totalorder %s134, %s137
      %p143 = scmp.eq.s32.totalorder %s14, 0
      %p144 = por %p142, %p143
      %p145 = scmp.ne.s32.totalorder %s134, %s137
      %p146 = scmp.eq.s32.totalorder %s19, 1
      %p147 = por %p145, %p146
      %p148 = scmp.ne.s32.totalorder %s137, %s138
      %p149 = scmp.eq.s32.totalorder %s19, 0
      %p150 = por %p148, %p149
      %p151 = scmp.ne.s32.totalorder %s137, %s138
      %p152 = scmp.eq.s32.totalorder %s20, 1
      %p153 = por %p151, %p152
      %p155 = scmp.ne.s32.totalorder %s138, %s154
      %p156 = scmp.eq.s32.totalorder %s20, 0
      %p157 = por %p155, %p156
      %p158 = scmp.le.s32.totalorder 1, %s14
      %p159 = scmp.lt.s32.totalorder %s14, 3
      %p160 = pnand %p158, %p159
      %p161 = pneg %p160
      // Predicated region
      $region9: #{block_forward.1} parent=5 // pred_check
        _
      $region10: #{block_forward.1} parent=5 // pred_check_branch
        %163 = sbr.rel (%p160) target = $region12
      $region11: #{block_forward.1} parent=5 // pred_region
        %s164 = ssub.s32 %s14, 1
        // Predicated region
        $region13: #{block_forward.1} parent=11 // pred_check
          %p165 = pneg %p61
        $region14: #{block_forward.1} parent=11 // pred_check_branch
          %167 = sbr.rel (%p165) target = $region16
        $region15: #{block_forward.1} parent=11 // pred_region
          _
        $region16: #{block_forward.1} parent=11 // pred_fallthru
          _
        // Predicated region
        $region17: #{block_forward.1} parent=11 // pred_check
          %p168 = pneg %p82
        $region18: #{block_forward.1} parent=11 // pred_check_branch
          %170 = sbr.rel (%p168) target = $region20
        $region19: #{block_forward.1} parent=11 // pred_region
          _
        $region20: #{block_forward.1} parent=11 // pred_fallthru
          _
        // Predicated region
        $region21: #{block_forward.1} parent=11 // pred_check
          %p171 = pneg %p103
        $region22: #{block_forward.1} parent=11 // pred_check_branch
          %173 = sbr.rel (%p171) target = $region24
        $region23: #{block_forward.1} parent=11 // pred_region
          _
        $region24: #{block_forward.1} parent=11 // pred_fallthru
          _
        // Predicated region
        $region25: #{block_forward.1} parent=11 // pred_check
          %p174 = pneg %p124
        $region26: #{block_forward.1} parent=11 // pred_check_branch
          %176 = sbr.rel (%p174) target = $region28
        $region27: #{block_forward.1} parent=11 // pred_region
          _
        $region28: #{block_forward.1} parent=11 // pred_fallthru
          _
      $region12: #{block_forward.1} parent=5 // pred_fallthru
        _
      %p177 = scmp.lt.s32.totalorder %s14, 2
      // Predicated region
      $region29: #{block_forward.1} parent=5 // pred_check
        %p178 = pneg %p177
      $region30: #{block_forward.1} parent=5 // pred_check_branch
        %180 = sbr.rel (%p178) target = $region32
      $region31: #{block_forward.1} parent=5 // pred_region
        // Predicated region
        $region33: #{block_forward.1} parent=31 // pred_check
          %p181 = pneg %p34
        $region34: #{block_forward.1} parent=31 // pred_check_branch
          %183 = sbr.rel (%p181) target = $region36
        $region35: #{block_forward.1} parent=31 // pred_region
          %p184 = scmp.lt.s32.totalorder %s14, 1
          %s185 = scalar_select %p184, %s14, 1
          %s186 = smul.addr %s185, 32
          %s187 = smul.addr %s186, 4
          %s188 = scalar_lea.vmem %s0, %s187
        $region36: #{block_forward.1} parent=31 // pred_fallthru
          _
      $region32: #{block_forward.1} parent=5 // pred_fallthru
        _
      %p189 = scmp.le.s32.totalorder 1, %s14
      %p190 = scmp.lt.s32.totalorder %s14, 3
      %p191 = pnand %p189, %p190
      %p192 = pneg %p191
      // Predicated region
      $region37: #{block_forward.1} parent=5 // pred_check
        _
      $region38: #{block_forward.1} parent=5 // pred_check_branch
        %194 = sbr.rel (%p191) target = $region40
      $region39: #{block_forward.1} parent=5 // pred_region
        %s195 = ssub.s32 %s14, 1
        %p196 = scmp.lt.s32.totalorder %s19, 1
        %s197 = scalar_select %p196, %s19, 1
        %s198 = smul.addr %s197, 32
        %s199 = smul.addr %s198, 4
        %s200 = scalar_lea.vmem %s0, %s199
        %p201 = pneg %p40
        %p202 = pneg %p37
        %p203 = pneg %p61
        %p204 = pneg %p58
        %p205 = pneg %p82
        %p206 = pneg %p79
        %p207 = pneg %p103
        %p208 = pneg %p100
        %p209 = pneg %p124
        %p210 = pneg %p121
        %p211 = pneg %p150
        %p212 = pneg %p147
        %s213 = sand.u32 %s137, 1
        %s214 = scalar_lea.sflag [#allocation5], %s213
        %s215 = sand.u32 %s137, 1
        %s216 = smul.addr %s215, 256
        %s217 = scalar_lea.vmem [#allocation4], %s216
        %p218 = scmp.lt.s32.totalorder %s19, 1
        %s219 = scalar_select %p218, %s19, 1
        %s220 = smul.addr %s219, 32
        %s221 = smul.addr %s220, 4
        %s222 = scalar_lea.vmem %s0, %s221
        %vm224 = vcmask 130048
        %225 = vst.msk [vmem:[#allocation2] sm:$0xff] %vm224, 0.0
        %226 = vst.msk [vmem:[#allocation2 + $0x8] sm:$0xff] %vm224, 0.0
        %vm227 = vcmask 123904
        %228 = vst.msk [vmem:[#allocation2 + $0x10] sm:$0x3] %vm227, 0.0
        %229 = vst.msk [vmem:[#allocation2 + $0x18] sm:$0xff] %vm224, 0.0
        %230 = vst.msk [vmem:[#allocation2 + $0x20] sm:$0xff] %vm224, 0.0
        %231 = vst.msk [vmem:[#allocation2 + $0x28] sm:$0x3] %vm227, 0.0
        %232 = vst.msk [vmem:[#allocation2 + $0x30] sm:$0xff] %vm224, 0.0
        %233 = vst.msk [vmem:[#allocation2 + $0x38] sm:$0xff] %vm224, 0.0
        %234 = vst.msk [vmem:[#allocation2 + $0x40] sm:$0x3] %vm227, 0.0
        %235 = vst.msk [vmem:[#allocation2 + $0x48] sm:$0xff] %vm224, 0.0
        %236 = vst.msk [vmem:[#allocation2 + $0x50] sm:$0xff] %vm224, 0.0
        %237 = vst.msk [vmem:[#allocation2 + $0x58] sm:$0x3] %vm227, 0.0
        %238 = vst.msk [vmem:[#allocation2 + $0x60] sm:$0xff] %vm224, 0.0
        %239 = vst.msk [vmem:[#allocation2 + $0x68] sm:$0xff] %vm224, 0.0
        %240 = vst.msk [vmem:[#allocation2 + $0x70] sm:$0x3] %vm227, 0.0
        %241 = vst.msk [vmem:[#allocation2 + $0x78] sm:$0xff] %vm224, 0.0
        %242 = vst.msk [vmem:[#allocation2 + $0x80] sm:$0xff] %vm224, 0.0
        %243 = vst.msk [vmem:[#allocation2 + $0x88] sm:$0x3] %vm227, 0.0
        %244 = vst.msk [vmem:[#allocation2 + $0x90] sm:$0xff] %vm224, 0.0
        %245 = vst.msk [vmem:[#allocation2 + $0x98] sm:$0xff] %vm224, 0.0
        %246 = vst.msk [vmem:[#allocation2 + $0xa0] sm:$0x3] %vm227, 0.0
        %247 = vst.msk [vmem:[#allocation2 + $0xa8] sm:$0xff] %vm224, 0.0
        %248 = vst.msk [vmem:[#allocation2 + $0xb0] sm:$0xff] %vm224, 0.0
        %249 = vst.msk [vmem:[#allocation2 + $0xb8] sm:$0x3] %vm227, 0.0
        %250 = vst.msk [vmem:[#allocation2 + $0xc0] sm:$0xff] %vm224, 0.0
        %251 = vst.msk [vmem:[#allocation2 + $0xc8] sm:$0xff] %vm224, 0.0
        %252 = vst.msk [vmem:[#allocation2 + $0xd0] sm:$0x3] %vm227, 0.0
        %253 = vst.msk [vmem:[#allocation2 + $0xd8] sm:$0xff] %vm224, 0.0
        %254 = vst.msk [vmem:[#allocation2 + $0xe0] sm:$0xff] %vm224, 0.0
        %255 = vst.msk [vmem:[#allocation2 + $0xe8] sm:$0x3] %vm227, 0.0
        %256 = vst.msk [vmem:[#allocation2 + $0xf0] sm:$0xff] %vm224, 0.0
        %257 = vst.msk [vmem:[#allocation2 + $0xf8] sm:$0xff] %vm224, 0.0
        %258 = vst.msk [vmem:[#allocation2 + $0x100] sm:$0x3] %vm227, 0.0
        %259 = vst.msk [vmem:[#allocation2 + $0x108] sm:$0xff] %vm224, 0.0
        %260 = vst.msk [vmem:[#allocation2 + $0x110] sm:$0xff] %vm224, 0.0
        %261 = vst.msk [vmem:[#allocation2 + $0x118] sm:$0x3] %vm227, 0.0
        %262 = vst.msk [vmem:[#allocation2 + $0x120] sm:$0xff] %vm224, 0.0
        %263 = vst.msk [vmem:[#allocation2 + $0x128] sm:$0xff] %vm224, 0.0
        %264 = vst.msk [vmem:[#allocation2 + $0x130] sm:$0x3] %vm227, 0.0
        %265 = vst.msk [vmem:[#allocation2 + $0x138] sm:$0xff] %vm224, 0.0
        %266 = vst.msk [vmem:[#allocation2 + $0x140] sm:$0xff] %vm224, 0.0
        %267 = vst.msk [vmem:[#allocation2 + $0x148] sm:$0x3] %vm227, 0.0
        %268 = vst.msk [vmem:[#allocation2 + $0x150] sm:$0xff] %vm224, 0.0
        %269 = vst.msk [vmem:[#allocation2 + $0x158] sm:$0xff] %vm224, 0.0
        %270 = vst.msk [vmem:[#allocation2 + $0x160] sm:$0x3] %vm227, 0.0
        %271 = vst.msk [vmem:[#allocation2 + $0x168] sm:$0xff] %vm224, 0.0
        %272 = vst.msk [vmem:[#allocation2 + $0x170] sm:$0xff] %vm224, 0.0
        %273 = vst.msk [vmem:[#allocation2 + $0x178] sm:$0x3] %vm227, 0.0
        %274 = vst.msk [vmem:[#allocation2 + $0x180] sm:$0xff] %vm224, 0.0
        %275 = vst.msk [vmem:[#allocation2 + $0x188] sm:$0xff] %vm224, 0.0
        %276 = vst.msk [vmem:[#allocation2 + $0x190] sm:$0x3] %vm227, 0.0
        %277 = vst.msk [vmem:[#allocation2 + $0x198] sm:$0xff] %vm224, 0.0
        %278 = vst.msk [vmem:[#allocation2 + $0x1a0] sm:$0xff] %vm224, 0.0
        %279 = vst.msk [vmem:[#allocation2 + $0x1a8] sm:$0x3] %vm227, 0.0
        %v280 = vld [vmem:[%s222] sm:$0xf]
        %v281 = vld [vmem:[%s222 + $0x4] sm:$0xf]
        %v282 = vld [vmem:[%s222 + $0x8] sm:$0xf]
        %v283 = vld [vmem:[%s222 + $0xc] sm:$0xf]
        %v284 = vld [vmem:[%s222 + $0x10] sm:$0xf]
        %v285 = vld [vmem:[%s222 + $0x14] sm:$0xf]
        %v286 = vld [vmem:[%s222 + $0x18] sm:$0xf]
        %v287 = vld [vmem:[%s222 + $0x1c] sm:$0xf]
        %v288 = vld [vmem:[%s222 + $0x20] sm:$0xf]
        %v289 = vld [vmem:[%s222 + $0x24] sm:$0xf]
        %v290 = vld [vmem:[%s222 + $0x28] sm:$0xf]
        %v291 = vld [vmem:[%s222 + $0x2c] sm:$0xf]
        %v292 = vld [vmem:[%s222 + $0x30] sm:$0xf]
        %v293 = vld [vmem:[%s222 + $0x34] sm:$0xf]
        %v294 = vld [vmem:[%s222 + $0x38] sm:$0xf]
        %v295 = vld [vmem:[%s222 + $0x3c] sm:$0xf]
        %v296 = vld [vmem:[%s222 + $0x40] sm:$0xf]
        %v297 = vld [vmem:[%s222 + $0x44] sm:$0xf]
        %v298 = vld [vmem:[%s222 + $0x48] sm:$0xf]
        %v299 = vld [vmem:[%s222 + $0x4c] sm:$0xf]
        %v300 = vld [vmem:[%s222 + $0x50] sm:$0xf]
        %v301 = vld [vmem:[%s222 + $0x54] sm:$0xf]
        %v302 = vld [vmem:[%s222 + $0x58] sm:$0xf]
        %v303 = vld [vmem:[%s222 + $0x5c] sm:$0xf]
        %v304 = vld [vmem:[%s222 + $0x60] sm:$0xf]
        %v305 = vld [vmem:[%s222 + $0x64] sm:$0xf]
        %v306 = vld [vmem:[%s222 + $0x68] sm:$0xf]
        %v307 = vld [vmem:[%s222 + $0x6c] sm:$0xf]
        %v308 = vld [vmem:[%s222 + $0x70] sm:$0xf]
        %v309 = vld [vmem:[%s222 + $0x74] sm:$0xf]
        %v310 = vld [vmem:[%s222 + $0x78] sm:$0xf]
        %v311 = vld [vmem:[%s222 + $0x7c] sm:$0xf]
        %v312 = vunpack.c.l.bf16 %v280
        %v313 = vunpack.c.l.bf16 %v281
        %v314 = vunpack.c.l.bf16 %v282
        %v315 = vunpack.c.l.bf16 %v283
        %v316 = vunpack.c.l.bf16 %v284
        %v317 = vunpack.c.l.bf16 %v285
        %v318 = vunpack.c.l.bf16 %v286
        %v319 = vunpack.c.l.bf16 %v287
        %v320 = vunpack.c.l.bf16 %v288
        %v321 = vunpack.c.l.bf16 %v289
        %v322 = vunpack.c.l.bf16 %v290
        %v323 = vunpack.c.l.bf16 %v291
        %v324 = vunpack.c.l.bf16 %v292
        %v325 = vunpack.c.l.bf16 %v293
        %v326 = vunpack.c.l.bf16 %v294
        %v327 = vunpack.c.l.bf16 %v295
        %v328 = vunpack.c.l.bf16 %v296
        %v329 = vunpack.c.l.bf16 %v297
        %v330 = vunpack.c.l.bf16 %v298
        %v331 = vunpack.c.l.bf16 %v299
        %v332 = vunpack.c.l.bf16 %v300
        %v333 = vunpack.c.l.bf16 %v301
        %v334 = vunpack.c.l.bf16 %v302
        %v335 = vunpack.c.l.bf16 %v303
        %v336 = vunpack.c.l.bf16 %v304
        %v337 = vunpack.c.l.bf16 %v305
        %v338 = vunpack.c.l.bf16 %v306
        %v339 = vunpack.c.l.bf16 %v307
        %v340 = vunpack.c.l.bf16 %v308
        %v341 = vunpack.c.l.bf16 %v309
        %v342 = vunpack.c.l.bf16 %v310
        %v343 = vunpack.c.l.bf16 %v311
        %s344 = scalar_lea.vmem [#allocation2], 24
        %345 = vst.msk [vmem:[%s344 + $0x1] sm:$0xff] %vm224, %v312
        %346 = vst.msk [vmem:[%s344 + $0x9] sm:$0xff] %vm224, %v313
        %347 = vst.msk [vmem:[%s344 + $0x19] sm:$0xff] %vm224, %v314
        %348 = vst.msk [vmem:[%s344 + $0x21] sm:$0xff] %vm224, %v315
        %349 = vst.msk [vmem:[%s344 + $0x31] sm:$0xff] %vm224, %v316
        %350 = vst.msk [vmem:[%s344 + $0x39] sm:$0xff] %vm224, %v317
        %351 = vst.msk [vmem:[%s344 + $0x49] sm:$0xff] %vm224, %v318
        %352 = vst.msk [vmem:[%s344 + $0x51] sm:$0xff] %vm224, %v319
        %353 = vst.msk [vmem:[%s344 + $0x61] sm:$0xff] %vm224, %v320
        %354 = vst.msk [vmem:[%s344 + $0x69] sm:$0xff] %vm224, %v321
        %355 = vst.msk [vmem:[%s344 + $0x79] sm:$0xff] %vm224, %v322
        %356 = vst.msk [vmem:[%s344 + $0x81] sm:$0xff] %vm224, %v323
        %357 = vst.msk [vmem:[%s344 + $0x91] sm:$0xff] %vm224, %v324
        %358 = vst.msk [vmem:[%s344 + $0x99] sm:$0xff] %vm224, %v325
        %359 = vst.msk [vmem:[%s344 + $0xa9] sm:$0xff] %vm224, %v326
        %360 = vst.msk [vmem:[%s344 + $0xb1] sm:$0xff] %vm224, %v327
        %361 = vst.msk [vmem:[%s344 + $0xc1] sm:$0xff] %vm224, %v328
        %362 = vst.msk [vmem:[%s344 + $0xc9] sm:$0xff] %vm224, %v329
        %363 = vst.msk [vmem:[%s344 + $0xd9] sm:$0xff] %vm224, %v330
        %364 = vst.msk [vmem:[%s344 + $0xe1] sm:$0xff] %vm224, %v331
        %365 = vst.msk [vmem:[%s344 + $0xf1] sm:$0xff] %vm224, %v332
        %366 = vst.msk [vmem:[%s344 + $0xf9] sm:$0xff] %vm224, %v333
        %367 = vst.msk [vmem:[%s344 + $0x109] sm:$0xff] %vm224, %v334
        %368 = vst.msk [vmem:[%s344 + $0x111] sm:$0xff] %vm224, %v335
        %369 = vst.msk [vmem:[%s344 + $0x121] sm:$0xff] %vm224, %v336
        %370 = vst.msk [vmem:[%s344 + $0x129] sm:$0xff] %vm224, %v337
        %371 = vst.msk [vmem:[%s344 + $0x139] sm:$0xff] %vm224, %v338
        %372 = vst.msk [vmem:[%s344 + $0x141] sm:$0xff] %vm224, %v339
        %373 = vst.msk [vmem:[%s344 + $0x151] sm:$0xff] %vm224, %v340
        %374 = vst.msk [vmem:[%s344 + $0x159] sm:$0xff] %vm224, %v341
        %375 = vst.msk [vmem:[%s344 + $0x169] sm:$0xff] %vm224, %v342
        %376 = vst.msk [vmem:[%s344 + $0x171] sm:$0xff] %vm224, %v343
        %v377 = vld [vmem:[#allocation2] sm:$0xff]
        %v378 = vld [vmem:[#allocation2 + $0x8] sm:$0xff]
        %v379 = vld [vmem:[#allocation2 + $0x18] sm:$0xff]
        %v380 = vld [vmem:[#allocation2 + $0x20] sm:$0xff]
        %v381 = vld [vmem:[#allocation2 + $0x30] sm:$0xff]
        %v382 = vld [vmem:[#allocation2 + $0x38] sm:$0xff]
        %v383 = vld [vmem:[#allocation2 + $0x48] sm:$0xff]
        %v384 = vld [vmem:[#allocation2 + $0x50] sm:$0xff]
        %v385 = vld [vmem:[#allocation2 + $0x60] sm:$0xff]
        %v386 = vld [vmem:[#allocation2 + $0x68] sm:$0xff]
        %v387 = vld [vmem:[#allocation2 + $0x78] sm:$0xff]
        %v388 = vld [vmem:[#allocation2 + $0x80] sm:$0xff]
        %v389 = vld [vmem:[#allocation2 + $0x90] sm:$0xff]
        %v390 = vld [vmem:[#allocation2 + $0x98] sm:$0xff]
        %v391 = vld [vmem:[#allocation2 + $0xa8] sm:$0xff]
        %v392 = vld [vmem:[#allocation2 + $0xb0] sm:$0xff]
        %v393 = vld [vmem:[#allocation2 + $0xc0] sm:$0xff]
        %v394 = vld [vmem:[#allocation2 + $0xc8] sm:$0xff]
        %v395 = vld [vmem:[#allocation2 + $0xd8] sm:$0xff]
        %v396 = vld [vmem:[#allocation2 + $0xe0] sm:$0xff]
        %v397 = vld [vmem:[#allocation2 + $0xf0] sm:$0xff]
        %v398 = vld [vmem:[#allocation2 + $0xf8] sm:$0xff]
        %v399 = vld [vmem:[#allocation2 + $0x108] sm:$0xff]
        %v400 = vld [vmem:[#allocation2 + $0x110] sm:$0xff]
        %v401 = vld [vmem:[#allocation2 + $0x120] sm:$0xff]
        %v402 = vld [vmem:[#allocation2 + $0x128] sm:$0xff]
        %v403 = vld [vmem:[#allocation2 + $0x138] sm:$0xff]
        %v404 = vld [vmem:[#allocation2 + $0x140] sm:$0xff]
        %v405 = vld [vmem:[#allocation2 + $0x150] sm:$0xff]
        %v406 = vld [vmem:[#allocation2 + $0x158] sm:$0xff]
        %v407 = vld [vmem:[#allocation2 + $0x168] sm:$0xff]
        %v408 = vld [vmem:[#allocation2 + $0x170] sm:$0xff]
        %v409 = vpack.c.bf16 %v378, %v377
        %v410 = vpack.c.bf16 %v380, %v379
        %v411 = vpack.c.bf16 %v382, %v381
        %v412 = vpack.c.bf16 %v384, %v383
        %v413 = vpack.c.bf16 %v386, %v385
        %v414 = vpack.c.bf16 %v388, %v387
        %v415 = vpack.c.bf16 %v390, %v389
        %v416 = vpack.c.bf16 %v392, %v391
        %v417 = vpack.c.bf16 %v394, %v393
        %v418 = vpack.c.bf16 %v396, %v395
        %v419 = vpack.c.bf16 %v398, %v397
        %v420 = vpack.c.bf16 %v400, %v399
        %v421 = vpack.c.bf16 %v402, %v401
        %v422 = vpack.c.bf16 %v404, %v403
        %v423 = vpack.c.bf16 %v406, %v405
        %v424 = vpack.c.bf16 %v408, %v407
        %v425 = vld [vmem:[%s1] sm:$0xf]
        %v426 = vld [vmem:[%s1 + $0x4] sm:$0xf]
        %v427 = vld [vmem:[#allocation2 + $0x1] sm:$0xff]
        %v428 = vld [vmem:[#allocation2 + $0x9] sm:$0xff]
        %v429 = vld [vmem:[#allocation2 + $0x19] sm:$0xff]
        %v430 = vld [vmem:[#allocation2 + $0x21] sm:$0xff]
        %v431 = vld [vmem:[#allocation2 + $0x31] sm:$0xff]
        %v432 = vld [vmem:[#allocation2 + $0x39] sm:$0xff]
        %v433 = vld [vmem:[#allocation2 + $0x49] sm:$0xff]
        %v434 = vld [vmem:[#allocation2 + $0x51] sm:$0xff]
        %v435 = vld [vmem:[#allocation2 + $0x61] sm:$0xff]
        %v436 = vld [vmem:[#allocation2 + $0x69] sm:$0xff]
        %v437 = vld [vmem:[#allocation2 + $0x79] sm:$0xff]
        %v438 = vld [vmem:[#allocation2 + $0x81] sm:$0xff]
        %v439 = vld [vmem:[#allocation2 + $0x91] sm:$0xff]
        %v440 = vld [vmem:[#allocation2 + $0x99] sm:$0xff]
        %v441 = vld [vmem:[#allocation2 + $0xa9] sm:$0xff]
        %v442 = vld [vmem:[#allocation2 + $0xb1] sm:$0xff]
        %v443 = vld [vmem:[#allocation2 + $0xc1] sm:$0xff]
        %v444 = vld [vmem:[#allocation2 + $0xc9] sm:$0xff]
        %v445 = vld [vmem:[#allocation2 + $0xd9] sm:$0xff]
        %v446 = vld [vmem:[#allocation2 + $0xe1] sm:$0xff]
        %v447 = vld [vmem:[#allocation2 + $0xf1] sm:$0xff]
        %v448 = vld [vmem:[#allocation2 + $0xf9] sm:$0xff]
        %v449 = vld [vmem:[#allocation2 + $0x109] sm:$0xff]
        %v450 = vld [vmem:[#allocation2 + $0x111] sm:$0xff]
        %v451 = vld [vmem:[#allocation2 + $0x121] sm:$0xff]
        %v452 = vld [vmem:[#allocation2 + $0x129] sm:$0xff]
        %v453 = vld [vmem:[#allocation2 + $0x139] sm:$0xff]
        %v454 = vld [vmem:[#allocation2 + $0x141] sm:$0xff]
        %v455 = vld [vmem:[#allocation2 + $0x151] sm:$0xff]
        %v456 = vld [vmem:[#allocation2 + $0x159] sm:$0xff]
        %v457 = vld [vmem:[#allocation2 + $0x169] sm:$0xff]
        %v458 = vld [vmem:[#allocation2 + $0x171] sm:$0xff]
        %v459 = vpack.c.bf16 %v428, %v427
        %v460 = vpack.c.bf16 %v430, %v429
        %v461 = vpack.c.bf16 %v432, %v431
        %v462 = vpack.c.bf16 %v434, %v433
        %v463 = vpack.c.bf16 %v436, %v435
        %v464 = vpack.c.bf16 %v438, %v437
        %v465 = vpack.c.bf16 %v440, %v439
        %v466 = vpack.c.bf16 %v442, %v441
        %v467 = vpack.c.bf16 %v444, %v443
        %v468 = vpack.c.bf16 %v446, %v445
        %v469 = vpack.c.bf16 %v448, %v447
        %v470 = vpack.c.bf16 %v450, %v449
        %v471 = vpack.c.bf16 %v452, %v451
        %v472 = vpack.c.bf16 %v454, %v453
        %v473 = vpack.c.bf16 %v456, %v455
        %v474 = vpack.c.bf16 %v458, %v457
        %s475 = scalar_lea.vmem %s1, 8
        %v476 = vld [vmem:[%s475] sm:$0xf]
        %v477 = vld [vmem:[%s475 + $0x4] sm:$0xf]
        %v480 = vunpack.c.l.b16 %v476
        %v481 = vunpack.c.l.b16 %v477
        %v482 = vpack.c.b16 %v481, %v480
        %v485 = vsel %vm224, %v459, 0
        %v488 = vsel %vm224, %v460, 0
        %v491 = vsel %vm224, %v461, 0
        %v494 = vsel %vm224, %v462, 0
        %v497 = vsel %vm224, %v463, 0
        %v500 = vsel %vm224, %v464, 0
        %v503 = vsel %vm224, %v465, 0
        %v506 = vsel %vm224, %v466, 0
        %v509 = vsel %vm224, %v467, 0
        %v512 = vsel %vm224, %v468, 0
        %v515 = vsel %vm224, %v469, 0
        %v518 = vsel %vm224, %v470, 0
        %v521 = vsel %vm224, %v471, 0
        %v524 = vsel %vm224, %v472, 0
        %v527 = vsel %vm224, %v473, 0
        %v530 = vsel %vm224, %v474, 0
        %532 = vmatprep.subr.bf16.mxu0 0
        %533 = vmatpush1.bf16.msra.mxu0 0
        %534 = vmatprep.subr.bf16.mxu0 0
        %535 = vmatpush1.bf16.msra.mxu0 0
        %536 = vmatprep.subr.bf16.mxu0 0
        %537 = vmatpush1.bf16.msra.mxu0 0
        %538 = vmatprep.subr.bf16.mxu0 0
        %539 = vmatpush1.bf16.msra.mxu0 0
        %540 = vmatprep.subr.bf16.mxu0 0
        %541 = vmatpush1.bf16.msra.mxu0 0
        %542 = vmatprep.subr.bf16.mxu0 0
        %543 = vmatpush1.bf16.msra.mxu0 0
        %544 = vmatprep.subr.bf16.mxu0 0
        %545 = vmatpush1.bf16.msra.mxu0 0
        %546 = vmatprep.subr.bf16.mxu0 0
        %547 = vmatpush1.bf16.msra.mxu0 %v482
        %548 = vmatprep.subr.bf16.mxu0 0
        %549 = vmatpush2.bf16.msra.mxu0 0
        %550 = vmatprep.subr.bf16.mxu0 0
        %551 = vmatpush2.bf16.msra.mxu0 0
        %552 = vmatprep.subr.bf16.mxu0 0
        %553 = vmatpush2.bf16.msra.mxu0 0
        %554 = vmatprep.subr.bf16.mxu0 0
        %555 = vmatpush2.bf16.msra.mxu0 0
        %556 = vmatprep.subr.bf16.mxu0 0
        %557 = vmatpush2.bf16.msra.mxu0 0
        %558 = vmatprep.subr.bf16.mxu0 0
        %559 = vmatpush2.bf16.msra.mxu0 0
        %560 = vmatprep.subr.bf16.mxu0 0
        %561 = vmatpush2.bf16.msra.mxu0 0
        %562 = vmatprep.subr.bf16.mxu0 0
        %563 = vmatpush2.bf16.msra.mxu0 0
        %564 = vmatprep.mubr.bf16.mxu0 0
        %565 = vmatmul.mubr.bf16.gmra.mxu0 %v485
        %v566 = vpop.f32.mrf.mxu0
        %v567 = vadd.f32 0.0, %v566
        %v568 = vpop.f32.mrf.mxu0
        %v569 = vpop.f32.mrf.mxu0
        %v570 = vadd.f32 0.0, %v569
        %v571 = vpop.f32.mrf.mxu0
        %572 = vmatprep.mubr.bf16.mxu0 0
        %573 = vmatmul.mubr.bf16.gmra.mxu0 %v488
        %v574 = vpop.f32.mrf.mxu0
        %v575 = vadd.f32 0.0, %v574
        %v576 = vpop.f32.mrf.mxu0
        %v577 = vpop.f32.mrf.mxu0
        %v578 = vadd.f32 0.0, %v577
        %v579 = vpop.f32.mrf.mxu0
        %580 = vmatprep.mubr.bf16.mxu0 0
        %581 = vmatmul.mubr.bf16.gmra.mxu0 %v491
        %v582 = vpop.f32.mrf.mxu0
        %v583 = vadd.f32 0.0, %v582
        %v584 = vpop.f32.mrf.mxu0
        %v585 = vpop.f32.mrf.mxu0
        %v586 = vadd.f32 0.0, %v585
        %v587 = vpop.f32.mrf.mxu0
        %588 = vmatprep.mubr.bf16.mxu0 0
        %589 = vmatmul.mubr.bf16.gmra.mxu0 %v494
        %v590 = vpop.f32.mrf.mxu0
        %v591 = vadd.f32 0.0, %v590
        %v592 = vpop.f32.mrf.mxu0
        %v593 = vpop.f32.mrf.mxu0
        %v594 = vadd.f32 0.0, %v593
        %v595 = vpop.f32.mrf.mxu0
        %596 = vmatprep.mubr.bf16.mxu0 0
        %597 = vmatmul.mubr.bf16.gmra.mxu0 %v497
        %v598 = vpop.f32.mrf.mxu0
        %v599 = vadd.f32 0.0, %v598
        %v600 = vpop.f32.mrf.mxu0
        %v601 = vpop.f32.mrf.mxu0
        %v602 = vadd.f32 0.0, %v601
        %v603 = vpop.f32.mrf.mxu0
        %604 = vmatprep.mubr.bf16.mxu0 0
        %605 = vmatmul.mubr.bf16.gmra.mxu0 %v500
        %v606 = vpop.f32.mrf.mxu0
        %v607 = vadd.f32 0.0, %v606
        %v608 = vpop.f32.mrf.mxu0
        %v609 = vpop.f32.mrf.mxu0
        %v610 = vadd.f32 0.0, %v609
        %v611 = vpop.f32.mrf.mxu0
        %612 = vmatprep.mubr.bf16.mxu0 0
        %613 = vmatmul.mubr.bf16.gmra.mxu0 %v503
        %v614 = vpop.f32.mrf.mxu0
        %v615 = vadd.f32 0.0, %v614
        %v616 = vpop.f32.mrf.mxu0
        %v617 = vpop.f32.mrf.mxu0
        %v618 = vadd.f32 0.0, %v617
        %v619 = vpop.f32.mrf.mxu0
        %620 = vmatprep.mubr.bf16.mxu0 0
        %621 = vmatmul.mubr.bf16.gmra.mxu0 %v506
        %v622 = vpop.f32.mrf.mxu0
        %v623 = vadd.f32 0.0, %v622
        %v624 = vpop.f32.mrf.mxu0
        %v625 = vpop.f32.mrf.mxu0
        %v626 = vadd.f32 0.0, %v625
        %v627 = vpop.f32.mrf.mxu0
        %628 = vmatprep.mubr.bf16.mxu0 0
        %629 = vmatmul.mubr.bf16.gmra.mxu0 %v509
        %v630 = vpop.f32.mrf.mxu0
        %v631 = vadd.f32 0.0, %v630
        %v632 = vpop.f32.mrf.mxu0
        %v633 = vpop.f32.mrf.mxu0
        %v634 = vadd.f32 0.0, %v633
        %v635 = vpop.f32.mrf.mxu0
        %636 = vmatprep.mubr.bf16.mxu0 0
        %637 = vmatmul.mubr.bf16.gmra.mxu0 %v512
        %v638 = vpop.f32.mrf.mxu0
        %v639 = vadd.f32 0.0, %v638
        %v640 = vpop.f32.mrf.mxu0
        %v641 = vpop.f32.mrf.mxu0
        %v642 = vadd.f32 0.0, %v641
        %v643 = vpop.f32.mrf.mxu0
        %644 = vmatprep.mubr.bf16.mxu0 0
        %645 = vmatmul.mubr.bf16.gmra.mxu0 %v515
        %v646 = vpop.f32.mrf.mxu0
        %v647 = vadd.f32 0.0, %v646
        %v648 = vpop.f32.mrf.mxu0
        %v649 = vpop.f32.mrf.mxu0
        %v650 = vadd.f32 0.0, %v649
        %v651 = vpop.f32.mrf.mxu0
        %652 = vmatprep.mubr.bf16.mxu0 0
        %653 = vmatmul.mubr.bf16.gmra.mxu0 %v518
        %v654 = vpop.f32.mrf.mxu0
        %v655 = vadd.f32 0.0, %v654
        %v656 = vpop.f32.mrf.mxu0
        %v657 = vpop.f32.mrf.mxu0
        %v658 = vadd.f32 0.0, %v657
        %v659 = vpop.f32.mrf.mxu0
        %660 = vmatprep.mubr.bf16.mxu0 0
        %661 = vmatmul.mubr.bf16.gmra.mxu0 %v521
        %v662 = vpop.f32.mrf.mxu0
        %v663 = vadd.f32 0.0, %v662
        %v664 = vpop.f32.mrf.mxu0
        %v665 = vpop.f32.mrf.mxu0
        %v666 = vadd.f32 0.0, %v665
        %v667 = vpop.f32.mrf.mxu0
        %668 = vmatprep.mubr.bf16.mxu0 0
        %669 = vmatmul.mubr.bf16.gmra.mxu0 %v524
        %v670 = vpop.f32.mrf.mxu0
        %v671 = vadd.f32 0.0, %v670
        %v672 = vpop.f32.mrf.mxu0
        %v673 = vpop.f32.mrf.mxu0
        %v674 = vadd.f32 0.0, %v673
        %v675 = vpop.f32.mrf.mxu0
        %676 = vmatprep.mubr.bf16.mxu0 0
        %677 = vmatmul.mubr.bf16.gmra.mxu0 %v527
        %v678 = vpop.f32.mrf.mxu0
        %v679 = vadd.f32 0.0, %v678
        %v680 = vpop.f32.mrf.mxu0
        %v681 = vpop.f32.mrf.mxu0
        %v682 = vadd.f32 0.0, %v681
        %v683 = vpop.f32.mrf.mxu0
        %684 = vmatprep.mubr.bf16.mxu0 0
        %685 = vmatmul.mubr.bf16.gmra.mxu0 %v530
        %v686 = vpop.f32.mrf.mxu0
        %v687 = vadd.f32 0.0, %v686
        %v688 = vpop.f32.mrf.mxu0
        %v689 = vpop.f32.mrf.mxu0
        %v690 = vadd.f32 0.0, %v689
        %v691 = vpop.f32.mrf.mxu0
        %692 = vdwg.mxu0
        %v695 = vunpack.c.l.b16 %v425
        %v696 = vunpack.c.l.b16 %v426
        %v697 = vpack.c.b16 %v696, %v695
        %v700 = vsel %vm224, %v409, 0
        %v703 = vsel %vm224, %v410, 0
        %v706 = vsel %vm224, %v411, 0
        %v709 = vsel %vm224, %v412, 0
        %v712 = vsel %vm224, %v413, 0
        %v715 = vsel %vm224, %v414, 0
        %v718 = vsel %vm224, %v415, 0
        %v721 = vsel %vm224, %v416, 0
        %v724 = vsel %vm224, %v417, 0
        %v727 = vsel %vm224, %v418, 0
        %v730 = vsel %vm224, %v419, 0
        %v733 = vsel %vm224, %v420, 0
        %v736 = vsel %vm224, %v421, 0
        %v739 = vsel %vm224, %v422, 0
        %v742 = vsel %vm224, %v423, 0
        %v745 = vsel %vm224, %v424, 0
        %747 = vmatprep.subr.bf16.mxu0 0
        %748 = vmatpush1.bf16.msra.mxu0 0
        %749 = vmatprep.subr.bf16.mxu0 0
        %750 = vmatpush1.bf16.msra.mxu0 0
        %751 = vmatprep.subr.bf16.mxu0 0
        %752 = vmatpush1.bf16.msra.mxu0 0
        %753 = vmatprep.subr.bf16.mxu0 0
        %754 = vmatpush1.bf16.msra.mxu0 0
        %755 = vmatprep.subr.bf16.mxu0 0
        %756 = vmatpush1.bf16.msra.mxu0 0
        %757 = vmatprep.subr.bf16.mxu0 0
        %758 = vmatpush1.bf16.msra.mxu0 0
        %759 = vmatprep.subr.bf16.mxu0 0
        %760 = vmatpush1.bf16.msra.mxu0 0
        %761 = vmatprep.subr.bf16.mxu0 0
        %762 = vmatpush1.bf16.msra.mxu0 %v697
        %763 = vmatprep.subr.bf16.mxu0 0
        %764 = vmatpush2.bf16.msra.mxu0 0
        %765 = vmatprep.subr.bf16.mxu0 0
        %766 = vmatpush2.bf16.msra.mxu0 0
        %767 = vmatprep.subr.bf16.mxu0 0
        %768 = vmatpush2.bf16.msra.mxu0 0
        %769 = vmatprep.subr.bf16.mxu0 0
        %770 = vmatpush2.bf16.msra.mxu0 0
        %771 = vmatprep.subr.bf16.mxu0 0
        %772 = vmatpush2.bf16.msra.mxu0 0
        %773 = vmatprep.subr.bf16.mxu0 0
        %774 = vmatpush2.bf16.msra.mxu0 0
        %775 = vmatprep.subr.bf16.mxu0 0
        %776 = vmatpush2.bf16.msra.mxu0 0
        %777 = vmatprep.subr.bf16.mxu0 0
        %778 = vmatpush2.bf16.msra.mxu0 0
        %779 = vmatprep.mubr.bf16.mxu0 0
        %780 = vmatmul.mubr.bf16.gmra.mxu0 %v700
        %v781 = vpop.f32.mrf.mxu0
        %v782 = vadd.f32 %v567, %v781
        %v783 = vpop.f32.mrf.mxu0
        %v784 = vpop.f32.mrf.mxu0
        %v785 = vadd.f32 %v570, %v784
        %v786 = vpop.f32.mrf.mxu0
        %787 = vmatprep.mubr.bf16.mxu0 0
        %788 = vmatmul.mubr.bf16.gmra.mxu0 %v703
        %v789 = vpop.f32.mrf.mxu0
        %v790 = vadd.f32 %v575, %v789
        %v791 = vpop.f32.mrf.mxu0
        %v792 = vpop.f32.mrf.mxu0
        %v793 = vadd.f32 %v578, %v792
        %v794 = vpop.f32.mrf.mxu0
        %795 = vmatprep.mubr.bf16.mxu0 0
        %796 = vmatmul.mubr.bf16.gmra.mxu0 %v706
        %v797 = vpop.f32.mrf.mxu0
        %v798 = vadd.f32 %v583, %v797
        %v799 = vpop.f32.mrf.mxu0
        %v800 = vpop.f32.mrf.mxu0
        %v801 = vadd.f32 %v586, %v800
        %v802 = vpop.f32.mrf.mxu0
        %803 = vmatprep.mubr.bf16.mxu0 0
        %804 = vmatmul.mubr.bf16.gmra.mxu0 %v709
        %v805 = vpop.f32.mrf.mxu0
        %v806 = vadd.f32 %v591, %v805
        %v807 = vpop.f32.mrf.mxu0
        %v808 = vpop.f32.mrf.mxu0
        %v809 = vadd.f32 %v594, %v808
        %v810 = vpop.f32.mrf.mxu0
        %811 = vmatprep.mubr.bf16.mxu0 0
        %812 = vmatmul.mubr.bf16.gmra.mxu0 %v712
        %v813 = vpop.f32.mrf.mxu0
        %v814 = vadd.f32 %v599, %v813
        %v815 = vpop.f32.mrf.mxu0
        %v816 = vpop.f32.mrf.mxu0
        %v817 = vadd.f32 %v602, %v816
        %v818 = vpop.f32.mrf.mxu0
        %819 = vmatprep.mubr.bf16.mxu0 0
        %820 = vmatmul.mubr.bf16.gmra.mxu0 %v715
        %v821 = vpop.f32.mrf.mxu0
        %v822 = vadd.f32 %v607, %v821
        %v823 = vpop.f32.mrf.mxu0
        %v824 = vpop.f32.mrf.mxu0
        %v825 = vadd.f32 %v610, %v824
        %v826 = vpop.f32.mrf.mxu0
        %827 = vmatprep.mubr.bf16.mxu0 0
        %828 = vmatmul.mubr.bf16.gmra.mxu0 %v718
        %v829 = vpop.f32.mrf.mxu0
        %v830 = vadd.f32 %v615, %v829
        %v831 = vpop.f32.mrf.mxu0
        %v832 = vpop.f32.mrf.mxu0
        %v833 = vadd.f32 %v618, %v832
        %v834 = vpop.f32.mrf.mxu0
        %835 = vmatprep.mubr.bf16.mxu0 0
        %836 = vmatmul.mubr.bf16.gmra.mxu0 %v721
        %v837 = vpop.f32.mrf.mxu0
        %v838 = vadd.f32 %v623, %v837
        %v839 = vpop.f32.mrf.mxu0
        %v840 = vpop.f32.mrf.mxu0
        %v841 = vadd.f32 %v626, %v840
        %v842 = vpop.f32.mrf.mxu0
        %843 = vmatprep.mubr.bf16.mxu0 0
        %844 = vmatmul.mubr.bf16.gmra.mxu0 %v724
        %v845 = vpop.f32.mrf.mxu0
        %v846 = vadd.f32 %v631, %v845
        %v847 = vpop.f32.mrf.mxu0
        %v848 = vpop.f32.mrf.mxu0
        %v849 = vadd.f32 %v634, %v848
        %v850 = vpop.f32.mrf.mxu0
        %851 = vmatprep.mubr.bf16.mxu0 0
        %852 = vmatmul.mubr.bf16.gmra.mxu0 %v727
        %v853 = vpop.f32.mrf.mxu0
        %v854 = vadd.f32 %v639, %v853
        %v855 = vpop.f32.mrf.mxu0
        %v856 = vpop.f32.mrf.mxu0
        %v857 = vadd.f32 %v642, %v856
        %v858 = vpop.f32.mrf.mxu0
        %859 = vmatprep.mubr.bf16.mxu0 0
        %860 = vmatmul.mubr.bf16.gmra.mxu0 %v730
        %v861 = vpop.f32.mrf.mxu0
        %v862 = vadd.f32 %v647, %v861
        %v863 = vpop.f32.mrf.mxu0
        %v864 = vpop.f32.mrf.mxu0
        %v865 = vadd.f32 %v650, %v864
        %v866 = vpop.f32.mrf.mxu0
        %867 = vmatprep.mubr.bf16.mxu0 0
        %868 = vmatmul.mubr.bf16.gmra.mxu0 %v733
        %v869 = vpop.f32.mrf.mxu0
        %v870 = vadd.f32 %v655, %v869
        %v871 = vpop.f32.mrf.mxu0
        %v872 = vpop.f32.mrf.mxu0
        %v873 = vadd.f32 %v658, %v872
        %v874 = vpop.f32.mrf.mxu0
        %875 = vmatprep.mubr.bf16.mxu0 0
        %876 = vmatmul.mubr.bf16.gmra.mxu0 %v736
        %v877 = vpop.f32.mrf.mxu0
        %v878 = vadd.f32 %v663, %v877
        %v879 = vpop.f32.mrf.mxu0
        %v880 = vpop.f32.mrf.mxu0
        %v881 = vadd.f32 %v666, %v880
        %v882 = vpop.f32.mrf.mxu0
        %883 = vmatprep.mubr.bf16.mxu0 0
        %884 = vmatmul.mubr.bf16.gmra.mxu0 %v739
        %v885 = vpop.f32.mrf.mxu0
        %v886 = vadd.f32 %v671, %v885
        %v887 = vpop.f32.mrf.mxu0
        %v888 = vpop.f32.mrf.mxu0
        %v889 = vadd.f32 %v674, %v888
        %v890 = vpop.f32.mrf.mxu0
        %891 = vmatprep.mubr.bf16.mxu0 0
        %892 = vmatmul.mubr.bf16.gmra.mxu0 %v742
        %v893 = vpop.f32.mrf.mxu0
        %v894 = vadd.f32 %v679, %v893
        %v895 = vpop.f32.mrf.mxu0
        %v896 = vpop.f32.mrf.mxu0
        %v897 = vadd.f32 %v682, %v896
        %v898 = vpop.f32.mrf.mxu0
        %899 = vmatprep.mubr.bf16.mxu0 0
        %900 = vmatmul.mubr.bf16.gmra.mxu0 %v745
        %v901 = vpop.f32.mrf.mxu0
        %v902 = vadd.f32 %v687, %v901
        %v903 = vpop.f32.mrf.mxu0
        %v904 = vpop.f32.mrf.mxu0
        %v905 = vadd.f32 %v690, %v904
        %v906 = vpop.f32.mrf.mxu0
        %907 = vdwg.mxu0
        %v908 = vld [vmem:[#allocation2 + $0x2] sm:$0xff]
        %v909 = vld [vmem:[#allocation2 + $0xa] sm:$0xff]
        %v910 = vld [vmem:[#allocation2 + $0x1a] sm:$0xff]
        %v911 = vld [vmem:[#allocation2 + $0x22] sm:$0xff]
        %v912 = vld [vmem:[#allocation2 + $0x32] sm:$0xff]
        %v913 = vld [vmem:[#allocation2 + $0x3a] sm:$0xff]
        %v914 = vld [vmem:[#allocation2 + $0x4a] sm:$0xff]
        %v915 = vld [vmem:[#allocation2 + $0x52] sm:$0xff]
        %v916 = vld [vmem:[#allocation2 + $0x62] sm:$0xff]
        %v917 = vld [vmem:[#allocation2 + $0x6a] sm:$0xff]
        %v918 = vld [vmem:[#allocation2 + $0x7a] sm:$0xff]
        %v919 = vld [vmem:[#allocation2 + $0x82] sm:$0xff]
        %v920 = vld [vmem:[#allocation2 + $0x92] sm:$0xff]
        %v921 = vld [vmem:[#allocation2 + $0x9a] sm:$0xff]
        %v922 = vld [vmem:[#allocation2 + $0xaa] sm:$0xff]
        %v923 = vld [vmem:[#allocation2 + $0xb2] sm:$0xff]
        %v924 = vld [vmem:[#allocation2 + $0xc2] sm:$0xff]
        %v925 = vld [vmem:[#allocation2 + $0xca] sm:$0xff]
        %v926 = vld [vmem:[#allocation2 + $0xda] sm:$0xff]
        %v927 = vld [vmem:[#allocation2 + $0xe2] sm:$0xff]
        %v928 = vld [vmem:[#allocation2 + $0xf2] sm:$0xff]
        %v929 = vld [vmem:[#allocation2 + $0xfa] sm:$0xff]
        %v930 = vld [vmem:[#allocation2 + $0x10a] sm:$0xff]
        %v931 = vld [vmem:[#allocation2 + $0x112] sm:$0xff]
        %v932 = vld [vmem:[#allocation2 + $0x122] sm:$0xff]
        %v933 = vld [vmem:[#allocation2 + $0x12a] sm:$0xff]
        %v934 = vld [vmem:[#allocation2 + $0x13a] sm:$0xff]
        %v935 = vld [vmem:[#allocation2 + $0x142] sm:$0xff]
        %v936 = vld [vmem:[#allocation2 + $0x152] sm:$0xff]
        %v937 = vld [vmem:[#allocation2 + $0x15a] sm:$0xff]
        %v938 = vld [vmem:[#allocation2 + $0x16a] sm:$0xff]
        %v939 = vld [vmem:[#allocation2 + $0x172] sm:$0xff]
        %v940 = vpack.c.bf16 %v909, %v908
        %v941 = vpack.c.bf16 %v911, %v910
        %v942 = vpack.c.bf16 %v913, %v912
        %v943 = vpack.c.bf16 %v915, %v914
        %v944 = vpack.c.bf16 %v917, %v916
        %v945 = vpack.c.bf16 %v919, %v918
        %v946 = vpack.c.bf16 %v921, %v920
        %v947 = vpack.c.bf16 %v923, %v922
        %v948 = vpack.c.bf16 %v925, %v924
        %v949 = vpack.c.bf16 %v927, %v926
        %v950 = vpack.c.bf16 %v929, %v928
        %v951 = vpack.c.bf16 %v931, %v930
        %v952 = vpack.c.bf16 %v933, %v932
        %v953 = vpack.c.bf16 %v935, %v934
        %v954 = vpack.c.bf16 %v937, %v936
        %v955 = vpack.c.bf16 %v939, %v938
        %s956 = scalar_lea.vmem %s1, 16
        %v957 = vld [vmem:[%s956] sm:$0xf]
        %v958 = vld [vmem:[%s956 + $0x4] sm:$0xf]
        %v961 = vunpack.c.l.b16 %v957
        %v962 = vunpack.c.l.b16 %v958
        %v963 = vpack.c.b16 %v962, %v961
        %v966 = vsel %vm224, %v940, 0
        %v969 = vsel %vm224, %v941, 0
        %v972 = vsel %vm224, %v942, 0
        %v975 = vsel %vm224, %v943, 0
        %v978 = vsel %vm224, %v944, 0
        %v981 = vsel %vm224, %v945, 0
        %v984 = vsel %vm224, %v946, 0
        %v987 = vsel %vm224, %v947, 0
        %v990 = vsel %vm224, %v948, 0
        %v993 = vsel %vm224, %v949, 0
        %v996 = vsel %vm224, %v950, 0
        %v999 = vsel %vm224, %v951, 0
        %v1002 = vsel %vm224, %v952, 0
        %v1005 = vsel %vm224, %v953, 0
        %v1008 = vsel %vm224, %v954, 0
        %v1011 = vsel %vm224, %v955, 0
        %1013 = vmatprep.subr.bf16.mxu0 0
        %1014 = vmatpush1.bf16.msra.mxu0 0
        %1015 = vmatprep.subr.bf16.mxu0 0
        %1016 = vmatpush1.bf16.msra.mxu0 0
        %1017 = vmatprep.subr.bf16.mxu0 0
        %1018 = vmatpush1.bf16.msra.mxu0 0
        %1019 = vmatprep.subr.bf16.mxu0 0
        %1020 = vmatpush1.bf16.msra.mxu0 0
        %1021 = vmatprep.subr.bf16.mxu0 0
        %1022 = vmatpush1.bf16.msra.mxu0 0
        %1023 = vmatprep.subr.bf16.mxu0 0
        %1024 = vmatpush1.bf16.msra.mxu0 0
        %1025 = vmatprep.subr.bf16.mxu0 0
        %1026 = vmatpush1.bf16.msra.mxu0 0
        %1027 = vmatprep.subr.bf16.mxu0 0
        %1028 = vmatpush1.bf16.msra.mxu0 %v963
        %1029 = vmatprep.subr.bf16.mxu0 0
        %1030 = vmatpush2.bf16.msra.mxu0 0
        %1031 = vmatprep.subr.bf16.mxu0 0
        %1032 = vmatpush2.bf16.msra.mxu0 0
        %1033 = vmatprep.subr.bf16.mxu0 0
        %1034 = vmatpush2.bf16.msra.mxu0 0
        %1035 = vmatprep.subr.bf16.mxu0 0
        %1036 = vmatpush2.bf16.msra.mxu0 0
        %1037 = vmatprep.subr.bf16.mxu0 0
        %1038 = vmatpush2.bf16.msra.mxu0 0
        %1039 = vmatprep.subr.bf16.mxu0 0
        %1040 = vmatpush2.bf16.msra.mxu0 0
        %1041 = vmatprep.subr.bf16.mxu0 0
        %1042 = vmatpush2.bf16.msra.mxu0 0
        %1043 = vmatprep.subr.bf16.mxu0 0
        %1044 = vmatpush2.bf16.msra.mxu0 0
        %1045 = vmatprep.mubr.bf16.mxu0 0
        %1046 = vmatmul.mubr.bf16.gmra.mxu0 %v966
        %v1047 = vpop.f32.mrf.mxu0
        %v1048 = vadd.f32 0.0, %v1047
        %v1049 = vpop.f32.mrf.mxu0
        %v1050 = vpop.f32.mrf.mxu0
        %v1051 = vadd.f32 0.0, %v1050
        %v1052 = vpop.f32.mrf.mxu0
        %1053 = vmatprep.mubr.bf16.mxu0 0
        %1054 = vmatmul.mubr.bf16.gmra.mxu0 %v969
        %v1055 = vpop.f32.mrf.mxu0
        %v1056 = vadd.f32 0.0, %v1055
        %v1057 = vpop.f32.mrf.mxu0
        %v1058 = vpop.f32.mrf.mxu0
        %v1059 = vadd.f32 0.0, %v1058
        %v1060 = vpop.f32.mrf.mxu0
        %1061 = vmatprep.mubr.bf16.mxu0 0
        %1062 = vmatmul.mubr.bf16.gmra.mxu0 %v972
        %v1063 = vpop.f32.mrf.mxu0
        %v1064 = vadd.f32 0.0, %v1063
        %v1065 = vpop.f32.mrf.mxu0
        %v1066 = vpop.f32.mrf.mxu0
        %v1067 = vadd.f32 0.0, %v1066
        %v1068 = vpop.f32.mrf.mxu0
        %1069 = vmatprep.mubr.bf16.mxu0 0
        %1070 = vmatmul.mubr.bf16.gmra.mxu0 %v975
        %v1071 = vpop.f32.mrf.mxu0
        %v1072 = vadd.f32 0.0, %v1071
        %v1073 = vpop.f32.mrf.mxu0
        %v1074 = vpop.f32.mrf.mxu0
        %v1075 = vadd.f32 0.0, %v1074
        %v1076 = vpop.f32.mrf.mxu0
        %1077 = vmatprep.mubr.bf16.mxu0 0
        %1078 = vmatmul.mubr.bf16.gmra.mxu0 %v978
        %v1079 = vpop.f32.mrf.mxu0
        %v1080 = vadd.f32 0.0, %v1079
        %v1081 = vpop.f32.mrf.mxu0
        %v1082 = vpop.f32.mrf.mxu0
        %v1083 = vadd.f32 0.0, %v1082
        %v1084 = vpop.f32.mrf.mxu0
        %1085 = vmatprep.mubr.bf16.mxu0 0
        %1086 = vmatmul.mubr.bf16.gmra.mxu0 %v981
        %v1087 = vpop.f32.mrf.mxu0
        %v1088 = vadd.f32 0.0, %v1087
        %v1089 = vpop.f32.mrf.mxu0
        %v1090 = vpop.f32.mrf.mxu0
        %v1091 = vadd.f32 0.0, %v1090
        %v1092 = vpop.f32.mrf.mxu0
        %1093 = vmatprep.mubr.bf16.mxu0 0
        %1094 = vmatmul.mubr.bf16.gmra.mxu0 %v984
        %v1095 = vpop.f32.mrf.mxu0
        %v1096 = vadd.f32 0.0, %v1095
        %v1097 = vpop.f32.mrf.mxu0
        %v1098 = vpop.f32.mrf.mxu0
        %v1099 = vadd.f32 0.0, %v1098
        %v1100 = vpop.f32.mrf.mxu0
        %1101 = vmatprep.mubr.bf16.mxu0 0
        %1102 = vmatmul.mubr.bf16.gmra.mxu0 %v987
        %v1103 = vpop.f32.mrf.mxu0
        %v1104 = vadd.f32 0.0, %v1103
        %v1105 = vpop.f32.mrf.mxu0
        %v1106 = vpop.f32.mrf.mxu0
        %v1107 = vadd.f32 0.0, %v1106
        %v1108 = vpop.f32.mrf.mxu0
        %1109 = vmatprep.mubr.bf16.mxu0 0
        %1110 = vmatmul.mubr.bf16.gmra.mxu0 %v990
        %v1111 = vpop.f32.mrf.mxu0
        %v1112 = vadd.f32 0.0, %v1111
        %v1113 = vpop.f32.mrf.mxu0
        %v1114 = vpop.f32.mrf.mxu0
        %v1115 = vadd.f32 0.0, %v1114
        %v1116 = vpop.f32.mrf.mxu0
        %1117 = vmatprep.mubr.bf16.mxu0 0
        %1118 = vmatmul.mubr.bf16.gmra.mxu0 %v993
        %v1119 = vpop.f32.mrf.mxu0
        %v1120 = vadd.f32 0.0, %v1119
        %v1121 = vpop.f32.mrf.mxu0
        %v1122 = vpop.f32.mrf.mxu0
        %v1123 = vadd.f32 0.0, %v1122
        %v1124 = vpop.f32.mrf.mxu0
        %1125 = vmatprep.mubr.bf16.mxu0 0
        %1126 = vmatmul.mubr.bf16.gmra.mxu0 %v996
        %v1127 = vpop.f32.mrf.mxu0
        %v1128 = vadd.f32 0.0, %v1127
        %v1129 = vpop.f32.mrf.mxu0
        %v1130 = vpop.f32.mrf.mxu0
        %v1131 = vadd.f32 0.0, %v1130
        %v1132 = vpop.f32.mrf.mxu0
        %1133 = vmatprep.mubr.bf16.mxu0 0
        %1134 = vmatmul.mubr.bf16.gmra.mxu0 %v999
        %v1135 = vpop.f32.mrf.mxu0
        %v1136 = vadd.f32 0.0, %v1135
        %v1137 = vpop.f32.mrf.mxu0
        %v1138 = vpop.f32.mrf.mxu0
        %v1139 = vadd.f32 0.0, %v1138
        %v1140 = vpop.f32.mrf.mxu0
        %1141 = vmatprep.mubr.bf16.mxu0 0
        %1142 = vmatmul.mubr.bf16.gmra.mxu0 %v1002
        %v1143 = vpop.f32.mrf.mxu0
        %v1144 = vadd.f32 0.0, %v1143
        %v1145 = vpop.f32.mrf.mxu0
        %v1146 = vpop.f32.mrf.mxu0
        %v1147 = vadd.f32 0.0, %v1146
        %v1148 = vpop.f32.mrf.mxu0
        %1149 = vmatprep.mubr.bf16.mxu0 0
        %1150 = vmatmul.mubr.bf16.gmra.mxu0 %v1005
        %v1151 = vpop.f32.mrf.mxu0
        %v1152 = vadd.f32 0.0, %v1151
        %v1153 = vpop.f32.mrf.mxu0
        %v1154 = vpop.f32.mrf.mxu0
        %v1155 = vadd.f32 0.0, %v1154
        %v1156 = vpop.f32.mrf.mxu0
        %1157 = vmatprep.mubr.bf16.mxu0 0
        %1158 = vmatmul.mubr.bf16.gmra.mxu0 %v1008
        %v1159 = vpop.f32.mrf.mxu0
        %v1160 = vadd.f32 0.0, %v1159
        %v1161 = vpop.f32.mrf.mxu0
        %v1162 = vpop.f32.mrf.mxu0
        %v1163 = vadd.f32 0.0, %v1162
        %v1164 = vpop.f32.mrf.mxu0
        %1165 = vmatprep.mubr.bf16.mxu0 0
        %1166 = vmatmul.mubr.bf16.gmra.mxu0 %v1011
        %v1167 = vpop.f32.mrf.mxu0
        %v1168 = vadd.f32 0.0, %v1167
        %v1169 = vpop.f32.mrf.mxu0
        %v1170 = vpop.f32.mrf.mxu0
        %v1171 = vadd.f32 0.0, %v1170
        %v1172 = vpop.f32.mrf.mxu0
        %1173 = vdwg.mxu0
        %v1174 = vadd.f32 %v782, %v1048
        %v1175 = vadd.f32 %v785, %v1051
        %v1176 = vadd.f32 %v790, %v1056
        %v1177 = vadd.f32 %v793, %v1059
        %v1178 = vadd.f32 %v798, %v1064
        %v1179 = vadd.f32 %v801, %v1067
        %v1180 = vadd.f32 %v806, %v1072
        %v1181 = vadd.f32 %v809, %v1075
        %v1182 = vadd.f32 %v814, %v1080
        %v1183 = vadd.f32 %v817, %v1083
        %v1184 = vadd.f32 %v822, %v1088
        %v1185 = vadd.f32 %v825, %v1091
        %v1186 = vadd.f32 %v830, %v1096
        %v1187 = vadd.f32 %v833, %v1099
        %v1188 = vadd.f32 %v838, %v1104
        %v1189 = vadd.f32 %v841, %v1107
        %v1190 = vadd.f32 %v846, %v1112
        %v1191 = vadd.f32 %v849, %v1115
        %v1192 = vadd.f32 %v854, %v1120
        %v1193 = vadd.f32 %v857, %v1123
        %v1194 = vadd.f32 %v862, %v1128
        %v1195 = vadd.f32 %v865, %v1131
        %v1196 = vadd.f32 %v870, %v1136
        %v1197 = vadd.f32 %v873, %v1139
        %v1198 = vadd.f32 %v878, %v1144
        %v1199 = vadd.f32 %v881, %v1147
        %v1200 = vadd.f32 %v886, %v1152
        %v1201 = vadd.f32 %v889, %v1155
        %v1202 = vadd.f32 %v894, %v1160
        %v1203 = vadd.f32 %v897, %v1163
        %v1204 = vadd.f32 %v902, %v1168
        %v1205 = vadd.f32 %v905, %v1171
        %v1206 = vld [vmem:[%s344] sm:$0xff]
        %v1207 = vld [vmem:[%s344 + $0x8] sm:$0xff]
        %v1208 = vld [vmem:[%s344 + $0x18] sm:$0xff]
        %v1209 = vld [vmem:[%s344 + $0x20] sm:$0xff]
        %v1210 = vld [vmem:[%s344 + $0x30] sm:$0xff]
        %v1211 = vld [vmem:[%s344 + $0x38] sm:$0xff]
        %v1212 = vld [vmem:[%s344 + $0x48] sm:$0xff]
        %v1213 = vld [vmem:[%s344 + $0x50] sm:$0xff]
        %v1214 = vld [vmem:[%s344 + $0x60] sm:$0xff]
        %v1215 = vld [vmem:[%s344 + $0x68] sm:$0xff]
        %v1216 = vld [vmem:[%s344 + $0x78] sm:$0xff]
        %v1217 = vld [vmem:[%s344 + $0x80] sm:$0xff]
        %v1218 = vld [vmem:[%s344 + $0x90] sm:$0xff]
        %v1219 = vld [vmem:[%s344 + $0x98] sm:$0xff]
        %v1220 = vld [vmem:[%s344 + $0xa8] sm:$0xff]
        %v1221 = vld [vmem:[%s344 + $0xb0] sm:$0xff]
        %v1222 = vld [vmem:[%s344 + $0xc0] sm:$0xff]
        %v1223 = vld [vmem:[%s344 + $0xc8] sm:$0xff]
        %v1224 = vld [vmem:[%s344 + $0xd8] sm:$0xff]
        %v1225 = vld [vmem:[%s344 + $0xe0] sm:$0xff]
        %v1226 = vld [vmem:[%s344 + $0xf0] sm:$0xff]
        %v1227 = vld [vmem:[%s344 + $0xf8] sm:$0xff]
        %v1228 = vld [vmem:[%s344 + $0x108] sm:$0xff]
        %v1229 = vld [vmem:[%s344 + $0x110] sm:$0xff]
        %v1230 = vld [vmem:[%s344 + $0x120] sm:$0xff]
        %v1231 = vld [vmem:[%s344 + $0x128] sm:$0xff]
        %v1232 = vld [vmem:[%s344 + $0x138] sm:$0xff]
        %v1233 = vld [vmem:[%s344 + $0x140] sm:$0xff]
        %v1234 = vld [vmem:[%s344 + $0x150] sm:$0xff]
        %v1235 = vld [vmem:[%s344 + $0x158] sm:$0xff]
        %v1236 = vld [vmem:[%s344 + $0x168] sm:$0xff]
        %v1237 = vld [vmem:[%s344 + $0x170] sm:$0xff]
        %v1238 = vpack.c.bf16 %v1207, %v1206
        %v1239 = vpack.c.bf16 %v1209, %v1208
        %v1240 = vpack.c.bf16 %v1211, %v1210
        %v1241 = vpack.c.bf16 %v1213, %v1212
        %v1242 = vpack.c.bf16 %v1215, %v1214
        %v1243 = vpack.c.bf16 %v1217, %v1216
        %v1244 = vpack.c.bf16 %v1219, %v1218
        %v1245 = vpack.c.bf16 %v1221, %v1220
        %v1246 = vpack.c.bf16 %v1223, %v1222
        %v1247 = vpack.c.bf16 %v1225, %v1224
        %v1248 = vpack.c.bf16 %v1227, %v1226
        %v1249 = vpack.c.bf16 %v1229, %v1228
        %v1250 = vpack.c.bf16 %v1231, %v1230
        %v1251 = vpack.c.bf16 %v1233, %v1232
        %v1252 = vpack.c.bf16 %v1235, %v1234
        %v1253 = vpack.c.bf16 %v1237, %v1236
        %s1254 = scalar_lea.vmem %s1, 24
        %v1255 = vld [vmem:[%s1254] sm:$0xf]
        %v1256 = vld [vmem:[%s1254 + $0x4] sm:$0xf]
        %v1259 = vunpack.c.l.b16 %v1255
        %v1260 = vunpack.c.l.b16 %v1256
        %v1261 = vpack.c.b16 %v1260, %v1259
        %v1264 = vsel %vm224, %v1238, 0
        %v1267 = vsel %vm224, %v1239, 0
        %v1270 = vsel %vm224, %v1240, 0
        %v1273 = vsel %vm224, %v1241, 0
        %v1276 = vsel %vm224, %v1242, 0
        %v1279 = vsel %vm224, %v1243, 0
        %v1282 = vsel %vm224, %v1244, 0
        %v1285 = vsel %vm224, %v1245, 0
        %v1288 = vsel %vm224, %v1246, 0
        %v1291 = vsel %vm224, %v1247, 0
        %v1294 = vsel %vm224, %v1248, 0
        %v1297 = vsel %vm224, %v1249, 0
        %v1300 = vsel %vm224, %v1250, 0
        %v1303 = vsel %vm224, %v1251, 0
        %v1306 = vsel %vm224, %v1252, 0
        %v1309 = vsel %vm224, %v1253, 0
        %1311 = vmatprep.subr.bf16.mxu0 0
        %1312 = vmatpush1.bf16.msra.mxu0 0
        %1313 = vmatprep.subr.bf16.mxu0 0
        %1314 = vmatpush1.bf16.msra.mxu0 0
        %1315 = vmatprep.subr.bf16.mxu0 0
        %1316 = vmatpush1.bf16.msra.mxu0 0
        %1317 = vmatprep.subr.bf16.mxu0 0
        %1318 = vmatpush1.bf16.msra.mxu0 0
        %1319 = vmatprep.subr.bf16.mxu0 0
        %1320 = vmatpush1.bf16.msra.mxu0 0
        %1321 = vmatprep.subr.bf16.mxu0 0
        %1322 = vmatpush1.bf16.msra.mxu0 0
        %1323 = vmatprep.subr.bf16.mxu0 0
        %1324 = vmatpush1.bf16.msra.mxu0 0
        %1325 = vmatprep.subr.bf16.mxu0 0
        %1326 = vmatpush1.bf16.msra.mxu0 %v1261
        %1327 = vmatprep.subr.bf16.mxu0 0
        %1328 = vmatpush2.bf16.msra.mxu0 0
        %1329 = vmatprep.subr.bf16.mxu0 0
        %1330 = vmatpush2.bf16.msra.mxu0 0
        %1331 = vmatprep.subr.bf16.mxu0 0
        %1332 = vmatpush2.bf16.msra.mxu0 0
        %1333 = vmatprep.subr.bf16.mxu0 0
        %1334 = vmatpush2.bf16.msra.mxu0 0
        %1335 = vmatprep.subr.bf16.mxu0 0
        %1336 = vmatpush2.bf16.msra.mxu0 0
        %1337 = vmatprep.subr.bf16.mxu0 0
        %1338 = vmatpush2.bf16.msra.mxu0 0
        %1339 = vmatprep.subr.bf16.mxu0 0
        %1340 = vmatpush2.bf16.msra.mxu0 0
        %1341 = vmatprep.subr.bf16.mxu0 0
        %1342 = vmatpush2.bf16.msra.mxu0 0
        %1343 = vmatprep.mubr.bf16.mxu0 0
        %1344 = vmatmul.mubr.bf16.gmra.mxu0 %v1264
        %v1345 = vpop.f32.mrf.mxu0
        %v1346 = vadd.f32 0.0, %v1345
        %v1347 = vpop.f32.mrf.mxu0
        %v1348 = vpop.f32.mrf.mxu0
        %v1349 = vadd.f32 0.0, %v1348
        %v1350 = vpop.f32.mrf.mxu0
        %1351 = vmatprep.mubr.bf16.mxu0 0
        %1352 = vmatmul.mubr.bf16.gmra.mxu0 %v1267
        %v1353 = vpop.f32.mrf.mxu0
        %v1354 = vadd.f32 0.0, %v1353
        %v1355 = vpop.f32.mrf.mxu0
        %v1356 = vpop.f32.mrf.mxu0
        %v1357 = vadd.f32 0.0, %v1356
        %v1358 = vpop.f32.mrf.mxu0
        %1359 = vmatprep.mubr.bf16.mxu0 0
        %1360 = vmatmul.mubr.bf16.gmra.mxu0 %v1270
        %v1361 = vpop.f32.mrf.mxu0
        %v1362 = vadd.f32 0.0, %v1361
        %v1363 = vpop.f32.mrf.mxu0
        %v1364 = vpop.f32.mrf.mxu0
        %v1365 = vadd.f32 0.0, %v1364
        %v1366 = vpop.f32.mrf.mxu0
        %1367 = vmatprep.mubr.bf16.mxu0 0
        %1368 = vmatmul.mubr.bf16.gmra.mxu0 %v1273
        %v1369 = vpop.f32.mrf.mxu0
        %v1370 = vadd.f32 0.0, %v1369
        %v1371 = vpop.f32.mrf.mxu0
        %v1372 = vpop.f32.mrf.mxu0
        %v1373 = vadd.f32 0.0, %v1372
        %v1374 = vpop.f32.mrf.mxu0
        %1375 = vmatprep.mubr.bf16.mxu0 0
        %1376 = vmatmul.mubr.bf16.gmra.mxu0 %v1276
        %v1377 = vpop.f32.mrf.mxu0
        %v1378 = vadd.f32 0.0, %v1377
        %v1379 = vpop.f32.mrf.mxu0
        %v1380 = vpop.f32.mrf.mxu0
        %v1381 = vadd.f32 0.0, %v1380
        %v1382 = vpop.f32.mrf.mxu0
        %1383 = vmatprep.mubr.bf16.mxu0 0
        %1384 = vmatmul.mubr.bf16.gmra.mxu0 %v1279
        %v1385 = vpop.f32.mrf.mxu0
        %v1386 = vadd.f32 0.0, %v1385
        %v1387 = vpop.f32.mrf.mxu0
        %v1388 = vpop.f32.mrf.mxu0
        %v1389 = vadd.f32 0.0, %v1388
        %v1390 = vpop.f32.mrf.mxu0
        %1391 = vmatprep.mubr.bf16.mxu0 0
        %1392 = vmatmul.mubr.bf16.gmra.mxu0 %v1282
        %v1393 = vpop.f32.mrf.mxu0
        %v1394 = vadd.f32 0.0, %v1393
        %v1395 = vpop.f32.mrf.mxu0
        %v1396 = vpop.f32.mrf.mxu0
        %v1397 = vadd.f32 0.0, %v1396
        %v1398 = vpop.f32.mrf.mxu0
        %1399 = vmatprep.mubr.bf16.mxu0 0
        %1400 = vmatmul.mubr.bf16.gmra.mxu0 %v1285
        %v1401 = vpop.f32.mrf.mxu0
        %v1402 = vadd.f32 0.0, %v1401
        %v1403 = vpop.f32.mrf.mxu0
        %v1404 = vpop.f32.mrf.mxu0
        %v1405 = vadd.f32 0.0, %v1404
        %v1406 = vpop.f32.mrf.mxu0
        %1407 = vmatprep.mubr.bf16.mxu0 0
        %1408 = vmatmul.mubr.bf16.gmra.mxu0 %v1288
        %v1409 = vpop.f32.mrf.mxu0
        %v1410 = vadd.f32 0.0, %v1409
        %v1411 = vpop.f32.mrf.mxu0
        %v1412 = vpop.f32.mrf.mxu0
        %v1413 = vadd.f32 0.0, %v1412
        %v1414 = vpop.f32.mrf.mxu0
        %1415 = vmatprep.mubr.bf16.mxu0 0
        %1416 = vmatmul.mubr.bf16.gmra.mxu0 %v1291
        %v1417 = vpop.f32.mrf.mxu0
        %v1418 = vadd.f32 0.0, %v1417
        %v1419 = vpop.f32.mrf.mxu0
        %v1420 = vpop.f32.mrf.mxu0
        %v1421 = vadd.f32 0.0, %v1420
        %v1422 = vpop.f32.mrf.mxu0
        %1423 = vmatprep.mubr.bf16.mxu0 0
        %1424 = vmatmul.mubr.bf16.gmra.mxu0 %v1294
        %v1425 = vpop.f32.mrf.mxu0
        %v1426 = vadd.f32 0.0, %v1425
        %v1427 = vpop.f32.mrf.mxu0
        %v1428 = vpop.f32.mrf.mxu0
        %v1429 = vadd.f32 0.0, %v1428
        %v1430 = vpop.f32.mrf.mxu0
        %1431 = vmatprep.mubr.bf16.mxu0 0
        %1432 = vmatmul.mubr.bf16.gmra.mxu0 %v1297
        %v1433 = vpop.f32.mrf.mxu0
        %v1434 = vadd.f32 0.0, %v1433
        %v1435 = vpop.f32.mrf.mxu0
        %v1436 = vpop.f32.mrf.mxu0
        %v1437 = vadd.f32 0.0, %v1436
        %v1438 = vpop.f32.mrf.mxu0
        %1439 = vmatprep.mubr.bf16.mxu0 0
        %1440 = vmatmul.mubr.bf16.gmra.mxu0 %v1300
        %v1441 = vpop.f32.mrf.mxu0
        %v1442 = vadd.f32 0.0, %v1441
        %v1443 = vpop.f32.mrf.mxu0
        %v1444 = vpop.f32.mrf.mxu0
        %v1445 = vadd.f32 0.0, %v1444
        %v1446 = vpop.f32.mrf.mxu0
        %1447 = vmatprep.mubr.bf16.mxu0 0
        %1448 = vmatmul.mubr.bf16.gmra.mxu0 %v1303
        %v1449 = vpop.f32.mrf.mxu0
        %v1450 = vadd.f32 0.0, %v1449
        %v1451 = vpop.f32.mrf.mxu0
        %v1452 = vpop.f32.mrf.mxu0
        %v1453 = vadd.f32 0.0, %v1452
        %v1454 = vpop.f32.mrf.mxu0
        %1455 = vmatprep.mubr.bf16.mxu0 0
        %1456 = vmatmul.mubr.bf16.gmra.mxu0 %v1306
        %v1457 = vpop.f32.mrf.mxu0
        %v1458 = vadd.f32 0.0, %v1457
        %v1459 = vpop.f32.mrf.mxu0
        %v1460 = vpop.f32.mrf.mxu0
        %v1461 = vadd.f32 0.0, %v1460
        %v1462 = vpop.f32.mrf.mxu0
        %1463 = vmatprep.mubr.bf16.mxu0 0
        %1464 = vmatmul.mubr.bf16.gmra.mxu0 %v1309
        %v1465 = vpop.f32.mrf.mxu0
        %v1466 = vadd.f32 0.0, %v1465
        %v1467 = vpop.f32.mrf.mxu0
        %v1468 = vpop.f32.mrf.mxu0
        %v1469 = vadd.f32 0.0, %v1468
        %v1470 = vpop.f32.mrf.mxu0
        %1471 = vdwg.mxu0
        %v1472 = vadd.f32 %v1174, %v1346
        %v1473 = vadd.f32 %v1175, %v1349
        %v1474 = vadd.f32 %v1176, %v1354
        %v1475 = vadd.f32 %v1177, %v1357
        %v1476 = vadd.f32 %v1178, %v1362
        %v1477 = vadd.f32 %v1179, %v1365
        %v1478 = vadd.f32 %v1180, %v1370
        %v1479 = vadd.f32 %v1181, %v1373
        %v1480 = vadd.f32 %v1182, %v1378
        %v1481 = vadd.f32 %v1183, %v1381
        %v1482 = vadd.f32 %v1184, %v1386
        %v1483 = vadd.f32 %v1185, %v1389
        %v1484 = vadd.f32 %v1186, %v1394
        %v1485 = vadd.f32 %v1187, %v1397
        %v1486 = vadd.f32 %v1188, %v1402
        %v1487 = vadd.f32 %v1189, %v1405
        %v1488 = vadd.f32 %v1190, %v1410
        %v1489 = vadd.f32 %v1191, %v1413
        %v1490 = vadd.f32 %v1192, %v1418
        %v1491 = vadd.f32 %v1193, %v1421
        %v1492 = vadd.f32 %v1194, %v1426
        %v1493 = vadd.f32 %v1195, %v1429
        %v1494 = vadd.f32 %v1196, %v1434
        %v1495 = vadd.f32 %v1197, %v1437
        %v1496 = vadd.f32 %v1198, %v1442
        %v1497 = vadd.f32 %v1199, %v1445
        %v1498 = vadd.f32 %v1200, %v1450
        %v1499 = vadd.f32 %v1201, %v1453
        %v1500 = vadd.f32 %v1202, %v1458
        %v1501 = vadd.f32 %v1203, %v1461
        %v1502 = vadd.f32 %v1204, %v1466
        %v1503 = vadd.f32 %v1205, %v1469
        %v1504 = vld [vmem:[%s344 + $0x1] sm:$0xff]
        %v1505 = vld [vmem:[%s344 + $0x9] sm:$0xff]
        %v1506 = vld [vmem:[%s344 + $0x19] sm:$0xff]
        %v1507 = vld [vmem:[%s344 + $0x21] sm:$0xff]
        %v1508 = vld [vmem:[%s344 + $0x31] sm:$0xff]
        %v1509 = vld [vmem:[%s344 + $0x39] sm:$0xff]
        %v1510 = vld [vmem:[%s344 + $0x49] sm:$0xff]
        %v1511 = vld [vmem:[%s344 + $0x51] sm:$0xff]
        %v1512 = vld [vmem:[%s344 + $0x61] sm:$0xff]
        %v1513 = vld [vmem:[%s344 + $0x69] sm:$0xff]
        %v1514 = vld [vmem:[%s344 + $0x79] sm:$0xff]
        %v1515 = vld [vmem:[%s344 + $0x81] sm:$0xff]
        %v1516 = vld [vmem:[%s344 + $0x91] sm:$0xff]
        %v1517 = vld [vmem:[%s344 + $0x99] sm:$0xff]
        %v1518 = vld [vmem:[%s344 + $0xa9] sm:$0xff]
        %v1519 = vld [vmem:[%s344 + $0xb1] sm:$0xff]
        %v1520 = vld [vmem:[%s344 + $0xc1] sm:$0xff]
        %v1521 = vld [vmem:[%s344 + $0xc9] sm:$0xff]
        %v1522 = vld [vmem:[%s344 + $0xd9] sm:$0xff]
        %v1523 = vld [vmem:[%s344 + $0xe1] sm:$0xff]
        %v1524 = vld [vmem:[%s344 + $0xf1] sm:$0xff]
        %v1525 = vld [vmem:[%s344 + $0xf9] sm:$0xff]
        %v1526 = vld [vmem:[%s344 + $0x109] sm:$0xff]
        %v1527 = vld [vmem:[%s344 + $0x111] sm:$0xff]
        %v1528 = vld [vmem:[%s344 + $0x121] sm:$0xff]
        %v1529 = vld [vmem:[%s344 + $0x129] sm:$0xff]
        %v1530 = vld [vmem:[%s344 + $0x139] sm:$0xff]
        %v1531 = vld [vmem:[%s344 + $0x141] sm:$0xff]
        %v1532 = vld [vmem:[%s344 + $0x151] sm:$0xff]
        %v1533 = vld [vmem:[%s344 + $0x159] sm:$0xff]
        %v1534 = vld [vmem:[%s344 + $0x169] sm:$0xff]
        %v1535 = vld [vmem:[%s344 + $0x171] sm:$0xff]
        %v1536 = vpack.c.bf16 %v1505, %v1504
        %v1537 = vpack.c.bf16 %v1507, %v1506
        %v1538 = vpack.c.bf16 %v1509, %v1508
        %v1539 = vpack.c.bf16 %v1511, %v1510
        %v1540 = vpack.c.bf16 %v1513, %v1512
        %v1541 = vpack.c.bf16 %v1515, %v1514
        %v1542 = vpack.c.bf16 %v1517, %v1516
        %v1543 = vpack.c.bf16 %v1519, %v1518
        %v1544 = vpack.c.bf16 %v1521, %v1520
        %v1545 = vpack.c.bf16 %v1523, %v1522
        %v1546 = vpack.c.bf16 %v1525, %v1524
        %v1547 = vpack.c.bf16 %v1527, %v1526
        %v1548 = vpack.c.bf16 %v1529, %v1528
        %v1549 = vpack.c.bf16 %v1531, %v1530
        %v1550 = vpack.c.bf16 %v1533, %v1532
        %v1551 = vpack.c.bf16 %v1535, %v1534
        %s1552 = scalar_lea.vmem %s1, 32
        %v1553 = vld [vmem:[%s1552] sm:$0xf]
        %v1554 = vld [vmem:[%s1552 + $0x4] sm:$0xf]
        %v1557 = vunpack.c.l.b16 %v1553
        %v1558 = vunpack.c.l.b16 %v1554
        %v1559 = vpack.c.b16 %v1558, %v1557
        %v1562 = vsel %vm224, %v1536, 0
        %v1565 = vsel %vm224, %v1537, 0
        %v1568 = vsel %vm224, %v1538, 0
        %v1571 = vsel %vm224, %v1539, 0
        %v1574 = vsel %vm224, %v1540, 0
        %v1577 = vsel %vm224, %v1541, 0
        %v1580 = vsel %vm224, %v1542, 0
        %v1583 = vsel %vm224, %v1543, 0
        %v1586 = vsel %vm224, %v1544, 0
        %v1589 = vsel %vm224, %v1545, 0
        %v1592 = vsel %vm224, %v1546, 0
        %v1595 = vsel %vm224, %v1547, 0
        %v1598 = vsel %vm224, %v1548, 0
        %v1601 = vsel %vm224, %v1549, 0
        %v1604 = vsel %vm224, %v1550, 0
        %v1607 = vsel %vm224, %v1551, 0
        %1609 = vmatprep.subr.bf16.mxu0 0
        %1610 = vmatpush1.bf16.msra.mxu0 0
        %1611 = vmatprep.subr.bf16.mxu0 0
        %1612 = vmatpush1.bf16.msra.mxu0 0
        %1613 = vmatprep.subr.bf16.mxu0 0
        %1614 = vmatpush1.bf16.msra.mxu0 0
        %1615 = vmatprep.subr.bf16.mxu0 0
        %1616 = vmatpush1.bf16.msra.mxu0 0
        %1617 = vmatprep.subr.bf16.mxu0 0
        %1618 = vmatpush1.bf16.msra.mxu0 0
        %1619 = vmatprep.subr.bf16.mxu0 0
        %1620 = vmatpush1.bf16.msra.mxu0 0
        %1621 = vmatprep.subr.bf16.mxu0 0
        %1622 = vmatpush1.bf16.msra.mxu0 0
        %1623 = vmatprep.subr.bf16.mxu0 0
        %1624 = vmatpush1.bf16.msra.mxu0 %v1559
        %1625 = vmatprep.subr.bf16.mxu0 0
        %1626 = vmatpush2.bf16.msra.mxu0 0
        %1627 = vmatprep.subr.bf16.mxu0 0
        %1628 = vmatpush2.bf16.msra.mxu0 0
        %1629 = vmatprep.subr.bf16.mxu0 0
        %1630 = vmatpush2.bf16.msra.mxu0 0
        %1631 = vmatprep.subr.bf16.mxu0 0
        %1632 = vmatpush2.bf16.msra.mxu0 0
        %1633 = vmatprep.subr.bf16.mxu0 0
        %1634 = vmatpush2.bf16.msra.mxu0 0
        %1635 = vmatprep.subr.bf16.mxu0 0
        %1636 = vmatpush2.bf16.msra.mxu0 0
        %1637 = vmatprep.subr.bf16.mxu0 0
        %1638 = vmatpush2.bf16.msra.mxu0 0
        %1639 = vmatprep.subr.bf16.mxu0 0
        %1640 = vmatpush2.bf16.msra.mxu0 0
        %1641 = vmatprep.mubr.bf16.mxu0 0
        %1642 = vmatmul.mubr.bf16.gmra.mxu0 %v1562
        %v1643 = vpop.f32.mrf.mxu0
        %v1644 = vadd.f32 0.0, %v1643
        %v1645 = vpop.f32.mrf.mxu0
        %v1646 = vpop.f32.mrf.mxu0
        %v1647 = vadd.f32 0.0, %v1646
        %v1648 = vpop.f32.mrf.mxu0
        %1649 = vmatprep.mubr.bf16.mxu0 0
        %1650 = vmatmul.mubr.bf16.gmra.mxu0 %v1565
        %v1651 = vpop.f32.mrf.mxu0
        %v1652 = vadd.f32 0.0, %v1651
        %v1653 = vpop.f32.mrf.mxu0
        %v1654 = vpop.f32.mrf.mxu0
        %v1655 = vadd.f32 0.0, %v1654
        %v1656 = vpop.f32.mrf.mxu0
        %1657 = vmatprep.mubr.bf16.mxu0 0
        %1658 = vmatmul.mubr.bf16.gmra.mxu0 %v1568
        %v1659 = vpop.f32.mrf.mxu0
        %v1660 = vadd.f32 0.0, %v1659
        %v1661 = vpop.f32.mrf.mxu0
        %v1662 = vpop.f32.mrf.mxu0
        %v1663 = vadd.f32 0.0, %v1662
        %v1664 = vpop.f32.mrf.mxu0
        %1665 = vmatprep.mubr.bf16.mxu0 0
        %1666 = vmatmul.mubr.bf16.gmra.mxu0 %v1571
        %v1667 = vpop.f32.mrf.mxu0
        %v1668 = vadd.f32 0.0, %v1667
        %v1669 = vpop.f32.mrf.mxu0
        %v1670 = vpop.f32.mrf.mxu0
        %v1671 = vadd.f32 0.0, %v1670
        %v1672 = vpop.f32.mrf.mxu0
        %1673 = vmatprep.mubr.bf16.mxu0 0
        %1674 = vmatmul.mubr.bf16.gmra.mxu0 %v1574
        %v1675 = vpop.f32.mrf.mxu0
        %v1676 = vadd.f32 0.0, %v1675
        %v1677 = vpop.f32.mrf.mxu0
        %v1678 = vpop.f32.mrf.mxu0
        %v1679 = vadd.f32 0.0, %v1678
        %v1680 = vpop.f32.mrf.mxu0
        %1681 = vmatprep.mubr.bf16.mxu0 0
        %1682 = vmatmul.mubr.bf16.gmra.mxu0 %v1577
        %v1683 = vpop.f32.mrf.mxu0
        %v1684 = vadd.f32 0.0, %v1683
        %v1685 = vpop.f32.mrf.mxu0
        %v1686 = vpop.f32.mrf.mxu0
        %v1687 = vadd.f32 0.0, %v1686
        %v1688 = vpop.f32.mrf.mxu0
        %1689 = vmatprep.mubr.bf16.mxu0 0
        %1690 = vmatmul.mubr.bf16.gmra.mxu0 %v1580
        %v1691 = vpop.f32.mrf.mxu0
        %v1692 = vadd.f32 0.0, %v1691
        %v1693 = vpop.f32.mrf.mxu0
        %v1694 = vpop.f32.mrf.mxu0
        %v1695 = vadd.f32 0.0, %v1694
        %v1696 = vpop.f32.mrf.mxu0
        %1697 = vmatprep.mubr.bf16.mxu0 0
        %1698 = vmatmul.mubr.bf16.gmra.mxu0 %v1583
        %v1699 = vpop.f32.mrf.mxu0
        %v1700 = vadd.f32 0.0, %v1699
        %v1701 = vpop.f32.mrf.mxu0
        %v1702 = vpop.f32.mrf.mxu0
        %v1703 = vadd.f32 0.0, %v1702
        %v1704 = vpop.f32.mrf.mxu0
        %1705 = vmatprep.mubr.bf16.mxu0 0
        %1706 = vmatmul.mubr.bf16.gmra.mxu0 %v1586
        %v1707 = vpop.f32.mrf.mxu0
        %v1708 = vadd.f32 0.0, %v1707
        %v1709 = vpop.f32.mrf.mxu0
        %v1710 = vpop.f32.mrf.mxu0
        %v1711 = vadd.f32 0.0, %v1710
        %v1712 = vpop.f32.mrf.mxu0
        %1713 = vmatprep.mubr.bf16.mxu0 0
        %1714 = vmatmul.mubr.bf16.gmra.mxu0 %v1589
        %v1715 = vpop.f32.mrf.mxu0
        %v1716 = vadd.f32 0.0, %v1715
        %v1717 = vpop.f32.mrf.mxu0
        %v1718 = vpop.f32.mrf.mxu0
        %v1719 = vadd.f32 0.0, %v1718
        %v1720 = vpop.f32.mrf.mxu0
        %1721 = vmatprep.mubr.bf16.mxu0 0
        %1722 = vmatmul.mubr.bf16.gmra.mxu0 %v1592
        %v1723 = vpop.f32.mrf.mxu0
        %v1724 = vadd.f32 0.0, %v1723
        %v1725 = vpop.f32.mrf.mxu0
        %v1726 = vpop.f32.mrf.mxu0
        %v1727 = vadd.f32 0.0, %v1726
        %v1728 = vpop.f32.mrf.mxu0
        %1729 = vmatprep.mubr.bf16.mxu0 0
        %1730 = vmatmul.mubr.bf16.gmra.mxu0 %v1595
        %v1731 = vpop.f32.mrf.mxu0
        %v1732 = vadd.f32 0.0, %v1731
        %v1733 = vpop.f32.mrf.mxu0
        %v1734 = vpop.f32.mrf.mxu0
        %v1735 = vadd.f32 0.0, %v1734
        %v1736 = vpop.f32.mrf.mxu0
        %1737 = vmatprep.mubr.bf16.mxu0 0
        %1738 = vmatmul.mubr.bf16.gmra.mxu0 %v1598
        %v1739 = vpop.f32.mrf.mxu0
        %v1740 = vadd.f32 0.0, %v1739
        %v1741 = vpop.f32.mrf.mxu0
        %v1742 = vpop.f32.mrf.mxu0
        %v1743 = vadd.f32 0.0, %v1742
        %v1744 = vpop.f32.mrf.mxu0
        %1745 = vmatprep.mubr.bf16.mxu0 0
        %1746 = vmatmul.mubr.bf16.gmra.mxu0 %v1601
        %v1747 = vpop.f32.mrf.mxu0
        %v1748 = vadd.f32 0.0, %v1747
        %v1749 = vpop.f32.mrf.mxu0
        %v1750 = vpop.f32.mrf.mxu0
        %v1751 = vadd.f32 0.0, %v1750
        %v1752 = vpop.f32.mrf.mxu0
        %1753 = vmatprep.mubr.bf16.mxu0 0
        %1754 = vmatmul.mubr.bf16.gmra.mxu0 %v1604
        %v1755 = vpop.f32.mrf.mxu0
        %v1756 = vadd.f32 0.0, %v1755
        %v1757 = vpop.f32.mrf.mxu0
        %v1758 = vpop.f32.mrf.mxu0
        %v1759 = vadd.f32 0.0, %v1758
        %v1760 = vpop.f32.mrf.mxu0
        %1761 = vmatprep.mubr.bf16.mxu0 0
        %1762 = vmatmul.mubr.bf16.gmra.mxu0 %v1607
        %v1763 = vpop.f32.mrf.mxu0
        %v1764 = vadd.f32 0.0, %v1763
        %v1765 = vpop.f32.mrf.mxu0
        %v1766 = vpop.f32.mrf.mxu0
        %v1767 = vadd.f32 0.0, %v1766
        %v1768 = vpop.f32.mrf.mxu0
        %1769 = vdwg.mxu0
        %v1770 = vadd.f32 %v1472, %v1644
        %v1771 = vadd.f32 %v1473, %v1647
        %v1772 = vadd.f32 %v1474, %v1652
        %v1773 = vadd.f32 %v1475, %v1655
        %v1774 = vadd.f32 %v1476, %v1660
        %v1775 = vadd.f32 %v1477, %v1663
        %v1776 = vadd.f32 %v1478, %v1668
        %v1777 = vadd.f32 %v1479, %v1671
        %v1778 = vadd.f32 %v1480, %v1676
        %v1779 = vadd.f32 %v1481, %v1679
        %v1780 = vadd.f32 %v1482, %v1684
        %v1781 = vadd.f32 %v1483, %v1687
        %v1782 = vadd.f32 %v1484, %v1692
        %v1783 = vadd.f32 %v1485, %v1695
        %v1784 = vadd.f32 %v1486, %v1700
        %v1785 = vadd.f32 %v1487, %v1703
        %v1786 = vadd.f32 %v1488, %v1708
        %v1787 = vadd.f32 %v1489, %v1711
        %v1788 = vadd.f32 %v1490, %v1716
        %v1789 = vadd.f32 %v1491, %v1719
        %v1790 = vadd.f32 %v1492, %v1724
        %v1791 = vadd.f32 %v1493, %v1727
        %v1792 = vadd.f32 %v1494, %v1732
        %v1793 = vadd.f32 %v1495, %v1735
        %v1794 = vadd.f32 %v1496, %v1740
        %v1795 = vadd.f32 %v1497, %v1743
        %v1796 = vadd.f32 %v1498, %v1748
        %v1797 = vadd.f32 %v1499, %v1751
        %v1798 = vadd.f32 %v1500, %v1756
        %v1799 = vadd.f32 %v1501, %v1759
        %v1800 = vadd.f32 %v1502, %v1764
        %v1801 = vadd.f32 %v1503, %v1767
        %v1802 = vld [vmem:[%s344 + $0x2] sm:$0xff]
        %v1803 = vld [vmem:[%s344 + $0xa] sm:$0xff]
        %v1804 = vld [vmem:[%s344 + $0x1a] sm:$0xff]
        %v1805 = vld [vmem:[%s344 + $0x22] sm:$0xff]
        %v1806 = vld [vmem:[%s344 + $0x32] sm:$0xff]
        %v1807 = vld [vmem:[%s344 + $0x3a] sm:$0xff]
        %v1808 = vld [vmem:[%s344 + $0x4a] sm:$0xff]
        %v1809 = vld [vmem:[%s344 + $0x52] sm:$0xff]
        %v1810 = vld [vmem:[%s344 + $0x62] sm:$0xff]
        %v1811 = vld [vmem:[%s344 + $0x6a] sm:$0xff]
        %v1812 = vld [vmem:[%s344 + $0x7a] sm:$0xff]
        %v1813 = vld [vmem:[%s344 + $0x82] sm:$0xff]
        %v1814 = vld [vmem:[%s344 + $0x92] sm:$0xff]
        %v1815 = vld [vmem:[%s344 + $0x9a] sm:$0xff]
        %v1816 = vld [vmem:[%s344 + $0xaa] sm:$0xff]
        %v1817 = vld [vmem:[%s344 + $0xb2] sm:$0xff]
        %v1818 = vld [vmem:[%s344 + $0xc2] sm:$0xff]
        %v1819 = vld [vmem:[%s344 + $0xca] sm:$0xff]
        %v1820 = vld [vmem:[%s344 + $0xda] sm:$0xff]
        %v1821 = vld [vmem:[%s344 + $0xe2] sm:$0xff]
        %v1822 = vld [vmem:[%s344 + $0xf2] sm:$0xff]
        %v1823 = vld [vmem:[%s344 + $0xfa] sm:$0xff]
        %v1824 = vld [vmem:[%s344 + $0x10a] sm:$0xff]
        %v1825 = vld [vmem:[%s344 + $0x112] sm:$0xff]
        %v1826 = vld [vmem:[%s344 + $0x122] sm:$0xff]
        %v1827 = vld [vmem:[%s344 + $0x12a] sm:$0xff]
        %v1828 = vld [vmem:[%s344 + $0x13a] sm:$0xff]
        %v1829 = vld [vmem:[%s344 + $0x142] sm:$0xff]
        %v1830 = vld [vmem:[%s344 + $0x152] sm:$0xff]
        %v1831 = vld [vmem:[%s344 + $0x15a] sm:$0xff]
        %v1832 = vld [vmem:[%s344 + $0x16a] sm:$0xff]
        %v1833 = vld [vmem:[%s344 + $0x172] sm:$0xff]
        %v1834 = vpack.c.bf16 %v1803, %v1802
        %v1835 = vpack.c.bf16 %v1805, %v1804
        %v1836 = vpack.c.bf16 %v1807, %v1806
        %v1837 = vpack.c.bf16 %v1809, %v1808
        %v1838 = vpack.c.bf16 %v1811, %v1810
        %v1839 = vpack.c.bf16 %v1813, %v1812
        %v1840 = vpack.c.bf16 %v1815, %v1814
        %v1841 = vpack.c.bf16 %v1817, %v1816
        %v1842 = vpack.c.bf16 %v1819, %v1818
        %v1843 = vpack.c.bf16 %v1821, %v1820
        %v1844 = vpack.c.bf16 %v1823, %v1822
        %v1845 = vpack.c.bf16 %v1825, %v1824
        %v1846 = vpack.c.bf16 %v1827, %v1826
        %v1847 = vpack.c.bf16 %v1829, %v1828
        %v1848 = vpack.c.bf16 %v1831, %v1830
        %v1849 = vpack.c.bf16 %v1833, %v1832
        %s1850 = scalar_lea.vmem %s1, 40
        %v1851 = vld [vmem:[%s1850] sm:$0xf]
        %v1852 = vld [vmem:[%s1850 + $0x4] sm:$0xf]
        %v1855 = vunpack.c.l.b16 %v1851
        %v1856 = vunpack.c.l.b16 %v1852
        %v1857 = vpack.c.b16 %v1856, %v1855
        %v1860 = vsel %vm224, %v1834, 0
        %v1863 = vsel %vm224, %v1835, 0
        %v1866 = vsel %vm224, %v1836, 0
        %v1869 = vsel %vm224, %v1837, 0
        %v1872 = vsel %vm224, %v1838, 0
        %v1875 = vsel %vm224, %v1839, 0
        %v1878 = vsel %vm224, %v1840, 0
        %v1881 = vsel %vm224, %v1841, 0
        %v1884 = vsel %vm224, %v1842, 0
        %v1887 = vsel %vm224, %v1843, 0
        %v1890 = vsel %vm224, %v1844, 0
        %v1893 = vsel %vm224, %v1845, 0
        %v1896 = vsel %vm224, %v1846, 0
        %v1899 = vsel %vm224, %v1847, 0
        %v1902 = vsel %vm224, %v1848, 0
        %v1905 = vsel %vm224, %v1849, 0
        %1907 = vmatprep.subr.bf16.mxu0 0
        %1908 = vmatpush1.bf16.msra.mxu0 0
        %1909 = vmatprep.subr.bf16.mxu0 0
        %1910 = vmatpush1.bf16.msra.mxu0 0
        %1911 = vmatprep.subr.bf16.mxu0 0
        %1912 = vmatpush1.bf16.msra.mxu0 0
        %1913 = vmatprep.subr.bf16.mxu0 0
        %1914 = vmatpush1.bf16.msra.mxu0 0
        %1915 = vmatprep.subr.bf16.mxu0 0
        %1916 = vmatpush1.bf16.msra.mxu0 0
        %1917 = vmatprep.subr.bf16.mxu0 0
        %1918 = vmatpush1.bf16.msra.mxu0 0
        %1919 = vmatprep.subr.bf16.mxu0 0
        %1920 = vmatpush1.bf16.msra.mxu0 0
        %1921 = vmatprep.subr.bf16.mxu0 0
        %1922 = vmatpush1.bf16.msra.mxu0 %v1857
        %1923 = vmatprep.subr.bf16.mxu0 0
        %1924 = vmatpush2.bf16.msra.mxu0 0
        %1925 = vmatprep.subr.bf16.mxu0 0
        %1926 = vmatpush2.bf16.msra.mxu0 0
        %1927 = vmatprep.subr.bf16.mxu0 0
        %1928 = vmatpush2.bf16.msra.mxu0 0
        %1929 = vmatprep.subr.bf16.mxu0 0
        %1930 = vmatpush2.bf16.msra.mxu0 0
        %1931 = vmatprep.subr.bf16.mxu0 0
        %1932 = vmatpush2.bf16.msra.mxu0 0
        %1933 = vmatprep.subr.bf16.mxu0 0
        %1934 = vmatpush2.bf16.msra.mxu0 0
        %1935 = vmatprep.subr.bf16.mxu0 0
        %1936 = vmatpush2.bf16.msra.mxu0 0
        %1937 = vmatprep.subr.bf16.mxu0 0
        %1938 = vmatpush2.bf16.msra.mxu0 0
        %1939 = vmatprep.mubr.bf16.mxu0 0
        %1940 = vmatmul.mubr.bf16.gmra.mxu0 %v1860
        %v1941 = vpop.f32.mrf.mxu0
        %v1942 = vadd.f32 0.0, %v1941
        %v1943 = vpop.f32.mrf.mxu0
        %v1944 = vpop.f32.mrf.mxu0
        %v1945 = vadd.f32 0.0, %v1944
        %v1946 = vpop.f32.mrf.mxu0
        %1947 = vmatprep.mubr.bf16.mxu0 0
        %1948 = vmatmul.mubr.bf16.gmra.mxu0 %v1863
        %v1949 = vpop.f32.mrf.mxu0
        %v1950 = vadd.f32 0.0, %v1949
        %v1951 = vpop.f32.mrf.mxu0
        %v1952 = vpop.f32.mrf.mxu0
        %v1953 = vadd.f32 0.0, %v1952
        %v1954 = vpop.f32.mrf.mxu0
        %1955 = vmatprep.mubr.bf16.mxu0 0
        %1956 = vmatmul.mubr.bf16.gmra.mxu0 %v1866
        %v1957 = vpop.f32.mrf.mxu0
        %v1958 = vadd.f32 0.0, %v1957
        %v1959 = vpop.f32.mrf.mxu0
        %v1960 = vpop.f32.mrf.mxu0
        %v1961 = vadd.f32 0.0, %v1960
        %v1962 = vpop.f32.mrf.mxu0
        %1963 = vmatprep.mubr.bf16.mxu0 0
        %1964 = vmatmul.mubr.bf16.gmra.mxu0 %v1869
        %v1965 = vpop.f32.mrf.mxu0
        %v1966 = vadd.f32 0.0, %v1965
        %v1967 = vpop.f32.mrf.mxu0
        %v1968 = vpop.f32.mrf.mxu0
        %v1969 = vadd.f32 0.0, %v1968
        %v1970 = vpop.f32.mrf.mxu0
        %1971 = vmatprep.mubr.bf16.mxu0 0
        %1972 = vmatmul.mubr.bf16.gmra.mxu0 %v1872
        %v1973 = vpop.f32.mrf.mxu0
        %v1974 = vadd.f32 0.0, %v1973
        %v1975 = vpop.f32.mrf.mxu0
        %v1976 = vpop.f32.mrf.mxu0
        %v1977 = vadd.f32 0.0, %v1976
        %v1978 = vpop.f32.mrf.mxu0
        %1979 = vmatprep.mubr.bf16.mxu0 0
        %1980 = vmatmul.mubr.bf16.gmra.mxu0 %v1875
        %v1981 = vpop.f32.mrf.mxu0
        %v1982 = vadd.f32 0.0, %v1981
        %v1983 = vpop.f32.mrf.mxu0
        %v1984 = vpop.f32.mrf.mxu0
        %v1985 = vadd.f32 0.0, %v1984
        %v1986 = vpop.f32.mrf.mxu0
        %1987 = vmatprep.mubr.bf16.mxu0 0
        %1988 = vmatmul.mubr.bf16.gmra.mxu0 %v1878
        %v1989 = vpop.f32.mrf.mxu0
        %v1990 = vadd.f32 0.0, %v1989
        %v1991 = vpop.f32.mrf.mxu0
        %v1992 = vpop.f32.mrf.mxu0
        %v1993 = vadd.f32 0.0, %v1992
        %v1994 = vpop.f32.mrf.mxu0
        %1995 = vmatprep.mubr.bf16.mxu0 0
        %1996 = vmatmul.mubr.bf16.gmra.mxu0 %v1881
        %v1997 = vpop.f32.mrf.mxu0
        %v1998 = vadd.f32 0.0, %v1997
        %v1999 = vpop.f32.mrf.mxu0
        %v2000 = vpop.f32.mrf.mxu0
        %v2001 = vadd.f32 0.0, %v2000
        %v2002 = vpop.f32.mrf.mxu0
        %2003 = vmatprep.mubr.bf16.mxu0 0
        %2004 = vmatmul.mubr.bf16.gmra.mxu0 %v1884
        %v2005 = vpop.f32.mrf.mxu0
        %v2006 = vadd.f32 0.0, %v2005
        %v2007 = vpop.f32.mrf.mxu0
        %v2008 = vpop.f32.mrf.mxu0
        %v2009 = vadd.f32 0.0, %v2008
        %v2010 = vpop.f32.mrf.mxu0
        %2011 = vmatprep.mubr.bf16.mxu0 0
        %2012 = vmatmul.mubr.bf16.gmra.mxu0 %v1887
        %v2013 = vpop.f32.mrf.mxu0
        %v2014 = vadd.f32 0.0, %v2013
        %v2015 = vpop.f32.mrf.mxu0
        %v2016 = vpop.f32.mrf.mxu0
        %v2017 = vadd.f32 0.0, %v2016
        %v2018 = vpop.f32.mrf.mxu0
        %2019 = vmatprep.mubr.bf16.mxu0 0
        %2020 = vmatmul.mubr.bf16.gmra.mxu0 %v1890
        %v2021 = vpop.f32.mrf.mxu0
        %v2022 = vadd.f32 0.0, %v2021
        %v2023 = vpop.f32.mrf.mxu0
        %v2024 = vpop.f32.mrf.mxu0
        %v2025 = vadd.f32 0.0, %v2024
        %v2026 = vpop.f32.mrf.mxu0
        %2027 = vmatprep.mubr.bf16.mxu0 0
        %2028 = vmatmul.mubr.bf16.gmra.mxu0 %v1893
        %v2029 = vpop.f32.mrf.mxu0
        %v2030 = vadd.f32 0.0, %v2029
        %v2031 = vpop.f32.mrf.mxu0
        %v2032 = vpop.f32.mrf.mxu0
        %v2033 = vadd.f32 0.0, %v2032
        %v2034 = vpop.f32.mrf.mxu0
        %2035 = vmatprep.mubr.bf16.mxu0 0
        %2036 = vmatmul.mubr.bf16.gmra.mxu0 %v1896
        %v2037 = vpop.f32.mrf.mxu0
        %v2038 = vadd.f32 0.0, %v2037
        %v2039 = vpop.f32.mrf.mxu0
        %v2040 = vpop.f32.mrf.mxu0
        %v2041 = vadd.f32 0.0, %v2040
        %v2042 = vpop.f32.mrf.mxu0
        %2043 = vmatprep.mubr.bf16.mxu0 0
        %2044 = vmatmul.mubr.bf16.gmra.mxu0 %v1899
        %v2045 = vpop.f32.mrf.mxu0
        %v2046 = vadd.f32 0.0, %v2045
        %v2047 = vpop.f32.mrf.mxu0
        %v2048 = vpop.f32.mrf.mxu0
        %v2049 = vadd.f32 0.0, %v2048
        %v2050 = vpop.f32.mrf.mxu0
        %2051 = vmatprep.mubr.bf16.mxu0 0
        %2052 = vmatmul.mubr.bf16.gmra.mxu0 %v1902
        %v2053 = vpop.f32.mrf.mxu0
        %v2054 = vadd.f32 0.0, %v2053
        %v2055 = vpop.f32.mrf.mxu0
        %v2056 = vpop.f32.mrf.mxu0
        %v2057 = vadd.f32 0.0, %v2056
        %v2058 = vpop.f32.mrf.mxu0
        %2059 = vmatprep.mubr.bf16.mxu0 0
        %2060 = vmatmul.mubr.bf16.gmra.mxu0 %v1905
        %v2061 = vpop.f32.mrf.mxu0
        %v2062 = vadd.f32 0.0, %v2061
        %v2063 = vpop.f32.mrf.mxu0
        %v2064 = vpop.f32.mrf.mxu0
        %v2065 = vadd.f32 0.0, %v2064
        %v2066 = vpop.f32.mrf.mxu0
        %2067 = vdwg.mxu0
        %v2068 = vadd.f32 %v1770, %v1942
        %v2069 = vadd.f32 %v1771, %v1945
        %v2070 = vadd.f32 %v1772, %v1950
        %v2071 = vadd.f32 %v1773, %v1953
        %v2072 = vadd.f32 %v1774, %v1958
        %v2073 = vadd.f32 %v1775, %v1961
        %v2074 = vadd.f32 %v1776, %v1966
        %v2075 = vadd.f32 %v1777, %v1969
        %v2076 = vadd.f32 %v1778, %v1974
        %v2077 = vadd.f32 %v1779, %v1977
        %v2078 = vadd.f32 %v1780, %v1982
        %v2079 = vadd.f32 %v1781, %v1985
        %v2080 = vadd.f32 %v1782, %v1990
        %v2081 = vadd.f32 %v1783, %v1993
        %v2082 = vadd.f32 %v1784, %v1998
        %v2083 = vadd.f32 %v1785, %v2001
        %v2084 = vadd.f32 %v1786, %v2006
        %v2085 = vadd.f32 %v1787, %v2009
        %v2086 = vadd.f32 %v1788, %v2014
        %v2087 = vadd.f32 %v1789, %v2017
        %v2088 = vadd.f32 %v1790, %v2022
        %v2089 = vadd.f32 %v1791, %v2025
        %v2090 = vadd.f32 %v1792, %v2030
        %v2091 = vadd.f32 %v1793, %v2033
        %v2092 = vadd.f32 %v1794, %v2038
        %v2093 = vadd.f32 %v1795, %v2041
        %v2094 = vadd.f32 %v1796, %v2046
        %v2095 = vadd.f32 %v1797, %v2049
        %v2096 = vadd.f32 %v1798, %v2054
        %v2097 = vadd.f32 %v1799, %v2057
        %v2098 = vadd.f32 %v1800, %v2062
        %v2099 = vadd.f32 %v1801, %v2065
        %s2100 = scalar_lea.vmem [#allocation2], 48
        %v2101 = vld [vmem:[%s2100] sm:$0xff]
        %v2102 = vld [vmem:[%s2100 + $0x8] sm:$0xff]
        %v2103 = vld [vmem:[%s2100 + $0x18] sm:$0xff]
        %v2104 = vld [vmem:[%s2100 + $0x20] sm:$0xff]
        %v2105 = vld [vmem:[%s2100 + $0x30] sm:$0xff]
        %v2106 = vld [vmem:[%s2100 + $0x38] sm:$0xff]
        %v2107 = vld [vmem:[%s2100 + $0x48] sm:$0xff]
        %v2108 = vld [vmem:[%s2100 + $0x50] sm:$0xff]
        %v2109 = vld [vmem:[%s2100 + $0x60] sm:$0xff]
        %v2110 = vld [vmem:[%s2100 + $0x68] sm:$0xff]
        %v2111 = vld [vmem:[%s2100 + $0x78] sm:$0xff]
        %v2112 = vld [vmem:[%s2100 + $0x80] sm:$0xff]
        %v2113 = vld [vmem:[%s2100 + $0x90] sm:$0xff]
        %v2114 = vld [vmem:[%s2100 + $0x98] sm:$0xff]
        %v2115 = vld [vmem:[%s2100 + $0xa8] sm:$0xff]
        %v2116 = vld [vmem:[%s2100 + $0xb0] sm:$0xff]
        %v2117 = vld [vmem:[%s2100 + $0xc0] sm:$0xff]
        %v2118 = vld [vmem:[%s2100 + $0xc8] sm:$0xff]
        %v2119 = vld [vmem:[%s2100 + $0xd8] sm:$0xff]
        %v2120 = vld [vmem:[%s2100 + $0xe0] sm:$0xff]
        %v2121 = vld [vmem:[%s2100 + $0xf0] sm:$0xff]
        %v2122 = vld [vmem:[%s2100 + $0xf8] sm:$0xff]
        %v2123 = vld [vmem:[%s2100 + $0x108] sm:$0xff]
        %v2124 = vld [vmem:[%s2100 + $0x110] sm:$0xff]
        %v2125 = vld [vmem:[%s2100 + $0x120] sm:$0xff]
        %v2126 = vld [vmem:[%s2100 + $0x128] sm:$0xff]
        %v2127 = vld [vmem:[%s2100 + $0x138] sm:$0xff]
        %v2128 = vld [vmem:[%s2100 + $0x140] sm:$0xff]
        %v2129 = vld [vmem:[%s2100 + $0x150] sm:$0xff]
        %v2130 = vld [vmem:[%s2100 + $0x158] sm:$0xff]
        %v2131 = vld [vmem:[%s2100 + $0x168] sm:$0xff]
        %v2132 = vld [vmem:[%s2100 + $0x170] sm:$0xff]
        %v2133 = vpack.c.bf16 %v2102, %v2101
        %v2134 = vpack.c.bf16 %v2104, %v2103
        %v2135 = vpack.c.bf16 %v2106, %v2105
        %v2136 = vpack.c.bf16 %v2108, %v2107
        %v2137 = vpack.c.bf16 %v2110, %v2109
        %v2138 = vpack.c.bf16 %v2112, %v2111
        %v2139 = vpack.c.bf16 %v2114, %v2113
        %v2140 = vpack.c.bf16 %v2116, %v2115
        %v2141 = vpack.c.bf16 %v2118, %v2117
        %v2142 = vpack.c.bf16 %v2120, %v2119
        %v2143 = vpack.c.bf16 %v2122, %v2121
        %v2144 = vpack.c.bf16 %v2124, %v2123
        %v2145 = vpack.c.bf16 %v2126, %v2125
        %v2146 = vpack.c.bf16 %v2128, %v2127
        %v2147 = vpack.c.bf16 %v2130, %v2129
        %v2148 = vpack.c.bf16 %v2132, %v2131
        %s2149 = scalar_lea.vmem %s1, 48
        %v2150 = vld [vmem:[%s2149] sm:$0xf]
        %v2151 = vld [vmem:[%s2149 + $0x4] sm:$0xf]
        %v2154 = vunpack.c.l.b16 %v2150
        %v2155 = vunpack.c.l.b16 %v2151
        %v2156 = vpack.c.b16 %v2155, %v2154
        %v2159 = vsel %vm224, %v2133, 0
        %v2162 = vsel %vm224, %v2134, 0
        %v2165 = vsel %vm224, %v2135, 0
        %v2168 = vsel %vm224, %v2136, 0
        %v2171 = vsel %vm224, %v2137, 0
        %v2174 = vsel %vm224, %v2138, 0
        %v2177 = vsel %vm224, %v2139, 0
        %v2180 = vsel %vm224, %v2140, 0
        %v2183 = vsel %vm224, %v2141, 0
        %v2186 = vsel %vm224, %v2142, 0
        %v2189 = vsel %vm224, %v2143, 0
        %v2192 = vsel %vm224, %v2144, 0
        %v2195 = vsel %vm224, %v2145, 0
        %v2198 = vsel %vm224, %v2146, 0
        %v2201 = vsel %vm224, %v2147, 0
        %v2204 = vsel %vm224, %v2148, 0
        %2206 = vmatprep.subr.bf16.mxu0 0
        %2207 = vmatpush1.bf16.msra.mxu0 0
        %2208 = vmatprep.subr.bf16.mxu0 0
        %2209 = vmatpush1.bf16.msra.mxu0 0
        %2210 = vmatprep.subr.bf16.mxu0 0
        %2211 = vmatpush1.bf16.msra.mxu0 0
        %2212 = vmatprep.subr.bf16.mxu0 0
        %2213 = vmatpush1.bf16.msra.mxu0 0
        %2214 = vmatprep.subr.bf16.mxu0 0
        %2215 = vmatpush1.bf16.msra.mxu0 0
        %2216 = vmatprep.subr.bf16.mxu0 0
        %2217 = vmatpush1.bf16.msra.mxu0 0
        %2218 = vmatprep.subr.bf16.mxu0 0
        %2219 = vmatpush1.bf16.msra.mxu0 0
        %2220 = vmatprep.subr.bf16.mxu0 0
        %2221 = vmatpush1.bf16.msra.mxu0 %v2156
        %2222 = vmatprep.subr.bf16.mxu0 0
        %2223 = vmatpush2.bf16.msra.mxu0 0
        %2224 = vmatprep.subr.bf16.mxu0 0
        %2225 = vmatpush2.bf16.msra.mxu0 0
        %2226 = vmatprep.subr.bf16.mxu0 0
        %2227 = vmatpush2.bf16.msra.mxu0 0
        %2228 = vmatprep.subr.bf16.mxu0 0
        %2229 = vmatpush2.bf16.msra.mxu0 0
        %2230 = vmatprep.subr.bf16.mxu0 0
        %2231 = vmatpush2.bf16.msra.mxu0 0
        %2232 = vmatprep.subr.bf16.mxu0 0
        %2233 = vmatpush2.bf16.msra.mxu0 0
        %2234 = vmatprep.subr.bf16.mxu0 0
        %2235 = vmatpush2.bf16.msra.mxu0 0
        %2236 = vmatprep.subr.bf16.mxu0 0
        %2237 = vmatpush2.bf16.msra.mxu0 0
        %2238 = vmatprep.mubr.bf16.mxu0 0
        %2239 = vmatmul.mubr.bf16.gmra.mxu0 %v2159
        %v2240 = vpop.f32.mrf.mxu0
        %v2241 = vadd.f32 0.0, %v2240
        %v2242 = vpop.f32.mrf.mxu0
        %v2243 = vpop.f32.mrf.mxu0
        %v2244 = vadd.f32 0.0, %v2243
        %v2245 = vpop.f32.mrf.mxu0
        %2246 = vmatprep.mubr.bf16.mxu0 0
        %2247 = vmatmul.mubr.bf16.gmra.mxu0 %v2162
        %v2248 = vpop.f32.mrf.mxu0
        %v2249 = vadd.f32 0.0, %v2248
        %v2250 = vpop.f32.mrf.mxu0
        %v2251 = vpop.f32.mrf.mxu0
        %v2252 = vadd.f32 0.0, %v2251
        %v2253 = vpop.f32.mrf.mxu0
        %2254 = vmatprep.mubr.bf16.mxu0 0
        %2255 = vmatmul.mubr.bf16.gmra.mxu0 %v2165
        %v2256 = vpop.f32.mrf.mxu0
        %v2257 = vadd.f32 0.0, %v2256
        %v2258 = vpop.f32.mrf.mxu0
        %v2259 = vpop.f32.mrf.mxu0
        %v2260 = vadd.f32 0.0, %v2259
        %v2261 = vpop.f32.mrf.mxu0
        %2262 = vmatprep.mubr.bf16.mxu0 0
        %2263 = vmatmul.mubr.bf16.gmra.mxu0 %v2168
        %v2264 = vpop.f32.mrf.mxu0
        %v2265 = vadd.f32 0.0, %v2264
        %v2266 = vpop.f32.mrf.mxu0
        %v2267 = vpop.f32.mrf.mxu0
        %v2268 = vadd.f32 0.0, %v2267
        %v2269 = vpop.f32.mrf.mxu0
        %2270 = vmatprep.mubr.bf16.mxu0 0
        %2271 = vmatmul.mubr.bf16.gmra.mxu0 %v2171
        %v2272 = vpop.f32.mrf.mxu0
        %v2273 = vadd.f32 0.0, %v2272
        %v2274 = vpop.f32.mrf.mxu0
        %v2275 = vpop.f32.mrf.mxu0
        %v2276 = vadd.f32 0.0, %v2275
        %v2277 = vpop.f32.mrf.mxu0
        %2278 = vmatprep.mubr.bf16.mxu0 0
        %2279 = vmatmul.mubr.bf16.gmra.mxu0 %v2174
        %v2280 = vpop.f32.mrf.mxu0
        %v2281 = vadd.f32 0.0, %v2280
        %v2282 = vpop.f32.mrf.mxu0
        %v2283 = vpop.f32.mrf.mxu0
        %v2284 = vadd.f32 0.0, %v2283
        %v2285 = vpop.f32.mrf.mxu0
        %2286 = vmatprep.mubr.bf16.mxu0 0
        %2287 = vmatmul.mubr.bf16.gmra.mxu0 %v2177
        %v2288 = vpop.f32.mrf.mxu0
        %v2289 = vadd.f32 0.0, %v2288
        %v2290 = vpop.f32.mrf.mxu0
        %v2291 = vpop.f32.mrf.mxu0
        %v2292 = vadd.f32 0.0, %v2291
        %v2293 = vpop.f32.mrf.mxu0
        %2294 = vmatprep.mubr.bf16.mxu0 0
        %2295 = vmatmul.mubr.bf16.gmra.mxu0 %v2180
        %v2296 = vpop.f32.mrf.mxu0
        %v2297 = vadd.f32 0.0, %v2296
        %v2298 = vpop.f32.mrf.mxu0
        %v2299 = vpop.f32.mrf.mxu0
        %v2300 = vadd.f32 0.0, %v2299
        %v2301 = vpop.f32.mrf.mxu0
        %2302 = vmatprep.mubr.bf16.mxu0 0
        %2303 = vmatmul.mubr.bf16.gmra.mxu0 %v2183
        %v2304 = vpop.f32.mrf.mxu0
        %v2305 = vadd.f32 0.0, %v2304
        %v2306 = vpop.f32.mrf.mxu0
        %v2307 = vpop.f32.mrf.mxu0
        %v2308 = vadd.f32 0.0, %v2307
        %v2309 = vpop.f32.mrf.mxu0
        %2310 = vmatprep.mubr.bf16.mxu0 0
        %2311 = vmatmul.mubr.bf16.gmra.mxu0 %v2186
        %v2312 = vpop.f32.mrf.mxu0
        %v2313 = vadd.f32 0.0, %v2312
        %v2314 = vpop.f32.mrf.mxu0
        %v2315 = vpop.f32.mrf.mxu0
        %v2316 = vadd.f32 0.0, %v2315
        %v2317 = vpop.f32.mrf.mxu0
        %2318 = vmatprep.mubr.bf16.mxu0 0
        %2319 = vmatmul.mubr.bf16.gmra.mxu0 %v2189
        %v2320 = vpop.f32.mrf.mxu0
        %v2321 = vadd.f32 0.0, %v2320
        %v2322 = vpop.f32.mrf.mxu0
        %v2323 = vpop.f32.mrf.mxu0
        %v2324 = vadd.f32 0.0, %v2323
        %v2325 = vpop.f32.mrf.mxu0
        %2326 = vmatprep.mubr.bf16.mxu0 0
        %2327 = vmatmul.mubr.bf16.gmra.mxu0 %v2192
        %v2328 = vpop.f32.mrf.mxu0
        %v2329 = vadd.f32 0.0, %v2328
        %v2330 = vpop.f32.mrf.mxu0
        %v2331 = vpop.f32.mrf.mxu0
        %v2332 = vadd.f32 0.0, %v2331
        %v2333 = vpop.f32.mrf.mxu0
        %2334 = vmatprep.mubr.bf16.mxu0 0
        %2335 = vmatmul.mubr.bf16.gmra.mxu0 %v2195
        %v2336 = vpop.f32.mrf.mxu0
        %v2337 = vadd.f32 0.0, %v2336
        %v2338 = vpop.f32.mrf.mxu0
        %v2339 = vpop.f32.mrf.mxu0
        %v2340 = vadd.f32 0.0, %v2339
        %v2341 = vpop.f32.mrf.mxu0
        %2342 = vmatprep.mubr.bf16.mxu0 0
        %2343 = vmatmul.mubr.bf16.gmra.mxu0 %v2198
        %v2344 = vpop.f32.mrf.mxu0
        %v2345 = vadd.f32 0.0, %v2344
        %v2346 = vpop.f32.mrf.mxu0
        %v2347 = vpop.f32.mrf.mxu0
        %v2348 = vadd.f32 0.0, %v2347
        %v2349 = vpop.f32.mrf.mxu0
        %2350 = vmatprep.mubr.bf16.mxu0 0
        %2351 = vmatmul.mubr.bf16.gmra.mxu0 %v2201
        %v2352 = vpop.f32.mrf.mxu0
        %v2353 = vadd.f32 0.0, %v2352
        %v2354 = vpop.f32.mrf.mxu0
        %v2355 = vpop.f32.mrf.mxu0
        %v2356 = vadd.f32 0.0, %v2355
        %v2357 = vpop.f32.mrf.mxu0
        %2358 = vmatprep.mubr.bf16.mxu0 0
        %2359 = vmatmul.mubr.bf16.gmra.mxu0 %v2204
        %v2360 = vpop.f32.mrf.mxu0
        %v2361 = vadd.f32 0.0, %v2360
        %v2362 = vpop.f32.mrf.mxu0
        %v2363 = vpop.f32.mrf.mxu0
        %v2364 = vadd.f32 0.0, %v2363
        %v2365 = vpop.f32.mrf.mxu0
        %2366 = vdwg.mxu0
        %v2367 = vadd.f32 %v2068, %v2241
        %v2368 = vadd.f32 %v2069, %v2244
        %v2369 = vadd.f32 %v2070, %v2249
        %v2370 = vadd.f32 %v2071, %v2252
        %v2371 = vadd.f32 %v2072, %v2257
        %v2372 = vadd.f32 %v2073, %v2260
        %v2373 = vadd.f32 %v2074, %v2265
        %v2374 = vadd.f32 %v2075, %v2268
        %v2375 = vadd.f32 %v2076, %v2273
        %v2376 = vadd.f32 %v2077, %v2276
        %v2377 = vadd.f32 %v2078, %v2281
        %v2378 = vadd.f32 %v2079, %v2284
        %v2379 = vadd.f32 %v2080, %v2289
        %v2380 = vadd.f32 %v2081, %v2292
        %v2381 = vadd.f32 %v2082, %v2297
        %v2382 = vadd.f32 %v2083, %v2300
        %v2383 = vadd.f32 %v2084, %v2305
        %v2384 = vadd.f32 %v2085, %v2308
        %v2385 = vadd.f32 %v2086, %v2313
        %v2386 = vadd.f32 %v2087, %v2316
        %v2387 = vadd.f32 %v2088, %v2321
        %v2388 = vadd.f32 %v2089, %v2324
        %v2389 = vadd.f32 %v2090, %v2329
        %v2390 = vadd.f32 %v2091, %v2332
        %v2391 = vadd.f32 %v2092, %v2337
        %v2392 = vadd.f32 %v2093, %v2340
        %v2393 = vadd.f32 %v2094, %v2345
        %v2394 = vadd.f32 %v2095, %v2348
        %v2395 = vadd.f32 %v2096, %v2353
        %v2396 = vadd.f32 %v2097, %v2356
        %v2397 = vadd.f32 %v2098, %v2361
        %v2398 = vadd.f32 %v2099, %v2364
        %v2399 = vld [vmem:[%s2100 + $0x1] sm:$0xff]
        %v2400 = vld [vmem:[%s2100 + $0x9] sm:$0xff]
        %v2401 = vld [vmem:[%s2100 + $0x19] sm:$0xff]
        %v2402 = vld [vmem:[%s2100 + $0x21] sm:$0xff]
        %v2403 = vld [vmem:[%s2100 + $0x31] sm:$0xff]
        %v2404 = vld [vmem:[%s2100 + $0x39] sm:$0xff]
        %v2405 = vld [vmem:[%s2100 + $0x49] sm:$0xff]
        %v2406 = vld [vmem:[%s2100 + $0x51] sm:$0xff]
        %v2407 = vld [vmem:[%s2100 + $0x61] sm:$0xff]
        %v2408 = vld [vmem:[%s2100 + $0x69] sm:$0xff]
        %v2409 = vld [vmem:[%s2100 + $0x79] sm:$0xff]
        %v2410 = vld [vmem:[%s2100 + $0x81] sm:$0xff]
        %v2411 = vld [vmem:[%s2100 + $0x91] sm:$0xff]
        %v2412 = vld [vmem:[%s2100 + $0x99] sm:$0xff]
        %v2413 = vld [vmem:[%s2100 + $0xa9] sm:$0xff]
        %v2414 = vld [vmem:[%s2100 + $0xb1] sm:$0xff]
        %v2415 = vld [vmem:[%s2100 + $0xc1] sm:$0xff]
        %v2416 = vld [vmem:[%s2100 + $0xc9] sm:$0xff]
        %v2417 = vld [vmem:[%s2100 + $0xd9] sm:$0xff]
        %v2418 = vld [vmem:[%s2100 + $0xe1] sm:$0xff]
        %v2419 = vld [vmem:[%s2100 + $0xf1] sm:$0xff]
        %v2420 = vld [vmem:[%s2100 + $0xf9] sm:$0xff]
        %v2421 = vld [vmem:[%s2100 + $0x109] sm:$0xff]
        %v2422 = vld [vmem:[%s2100 + $0x111] sm:$0xff]
        %v2423 = vld [vmem:[%s2100 + $0x121] sm:$0xff]
        %v2424 = vld [vmem:[%s2100 + $0x129] sm:$0xff]
        %v2425 = vld [vmem:[%s2100 + $0x139] sm:$0xff]
        %v2426 = vld [vmem:[%s2100 + $0x141] sm:$0xff]
        %v2427 = vld [vmem:[%s2100 + $0x151] sm:$0xff]
        %v2428 = vld [vmem:[%s2100 + $0x159] sm:$0xff]
        %v2429 = vld [vmem:[%s2100 + $0x169] sm:$0xff]
        %v2430 = vld [vmem:[%s2100 + $0x171] sm:$0xff]
        %v2431 = vpack.c.bf16 %v2400, %v2399
        %v2432 = vpack.c.bf16 %v2402, %v2401
        %v2433 = vpack.c.bf16 %v2404, %v2403
        %v2434 = vpack.c.bf16 %v2406, %v2405
        %v2435 = vpack.c.bf16 %v2408, %v2407
        %v2436 = vpack.c.bf16 %v2410, %v2409
        %v2437 = vpack.c.bf16 %v2412, %v2411
        %v2438 = vpack.c.bf16 %v2414, %v2413
        %v2439 = vpack.c.bf16 %v2416, %v2415
        %v2440 = vpack.c.bf16 %v2418, %v2417
        %v2441 = vpack.c.bf16 %v2420, %v2419
        %v2442 = vpack.c.bf16 %v2422, %v2421
        %v2443 = vpack.c.bf16 %v2424, %v2423
        %v2444 = vpack.c.bf16 %v2426, %v2425
        %v2445 = vpack.c.bf16 %v2428, %v2427
        %v2446 = vpack.c.bf16 %v2430, %v2429
        %s2447 = scalar_lea.vmem %s1, 56
        %v2448 = vld [vmem:[%s2447] sm:$0xf]
        %v2449 = vld [vmem:[%s2447 + $0x4] sm:$0xf]
        %v2452 = vunpack.c.l.b16 %v2448
        %v2453 = vunpack.c.l.b16 %v2449
        %v2454 = vpack.c.b16 %v2453, %v2452
        %v2457 = vsel %vm224, %v2431, 0
        %v2460 = vsel %vm224, %v2432, 0
        %v2463 = vsel %vm224, %v2433, 0
        %v2466 = vsel %vm224, %v2434, 0
        %v2469 = vsel %vm224, %v2435, 0
        %v2472 = vsel %vm224, %v2436, 0
        %v2475 = vsel %vm224, %v2437, 0
        %v2478 = vsel %vm224, %v2438, 0
        %v2481 = vsel %vm224, %v2439, 0
        %v2484 = vsel %vm224, %v2440, 0
        %v2487 = vsel %vm224, %v2441, 0
        %v2490 = vsel %vm224, %v2442, 0
        %v2493 = vsel %vm224, %v2443, 0
        %v2496 = vsel %vm224, %v2444, 0
        %v2499 = vsel %vm224, %v2445, 0
        %v2502 = vsel %vm224, %v2446, 0
        %2504 = vmatprep.subr.bf16.mxu0 0
        %2505 = vmatpush1.bf16.msra.mxu0 0
        %2506 = vmatprep.subr.bf16.mxu0 0
        %2507 = vmatpush1.bf16.msra.mxu0 0
        %2508 = vmatprep.subr.bf16.mxu0 0
        %2509 = vmatpush1.bf16.msra.mxu0 0
        %2510 = vmatprep.subr.bf16.mxu0 0
        %2511 = vmatpush1.bf16.msra.mxu0 0
        %2512 = vmatprep.subr.bf16.mxu0 0
        %2513 = vmatpush1.bf16.msra.mxu0 0
        %2514 = vmatprep.subr.bf16.mxu0 0
        %2515 = vmatpush1.bf16.msra.mxu0 0
        %2516 = vmatprep.subr.bf16.mxu0 0
        %2517 = vmatpush1.bf16.msra.mxu0 0
        %2518 = vmatprep.subr.bf16.mxu0 0
        %2519 = vmatpush1.bf16.msra.mxu0 %v2454
        %2520 = vmatprep.subr.bf16.mxu0 0
        %2521 = vmatpush2.bf16.msra.mxu0 0
        %2522 = vmatprep.subr.bf16.mxu0 0
        %2523 = vmatpush2.bf16.msra.mxu0 0
        %2524 = vmatprep.subr.bf16.mxu0 0
        %2525 = vmatpush2.bf16.msra.mxu0 0
        %2526 = vmatprep.subr.bf16.mxu0 0
        %2527 = vmatpush2.bf16.msra.mxu0 0
        %2528 = vmatprep.subr.bf16.mxu0 0
        %2529 = vmatpush2.bf16.msra.mxu0 0
        %2530 = vmatprep.subr.bf16.mxu0 0
        %2531 = vmatpush2.bf16.msra.mxu0 0
        %2532 = vmatprep.subr.bf16.mxu0 0
        %2533 = vmatpush2.bf16.msra.mxu0 0
        %2534 = vmatprep.subr.bf16.mxu0 0
        %2535 = vmatpush2.bf16.msra.mxu0 0
        %2536 = vmatprep.mubr.bf16.mxu0 0
        %2537 = vmatmul.mubr.bf16.gmra.mxu0 %v2457
        %v2538 = vpop.f32.mrf.mxu0
        %v2539 = vadd.f32 0.0, %v2538
        %v2540 = vpop.f32.mrf.mxu0
        %v2541 = vpop.f32.mrf.mxu0
        %v2542 = vadd.f32 0.0, %v2541
        %v2543 = vpop.f32.mrf.mxu0
        %2544 = vmatprep.mubr.bf16.mxu0 0
        %2545 = vmatmul.mubr.bf16.gmra.mxu0 %v2460
        %v2546 = vpop.f32.mrf.mxu0
        %v2547 = vadd.f32 0.0, %v2546
        %v2548 = vpop.f32.mrf.mxu0
        %v2549 = vpop.f32.mrf.mxu0
        %v2550 = vadd.f32 0.0, %v2549
        %v2551 = vpop.f32.mrf.mxu0
        %2552 = vmatprep.mubr.bf16.mxu0 0
        %2553 = vmatmul.mubr.bf16.gmra.mxu0 %v2463
        %v2554 = vpop.f32.mrf.mxu0
        %v2555 = vadd.f32 0.0, %v2554
        %v2556 = vpop.f32.mrf.mxu0
        %v2557 = vpop.f32.mrf.mxu0
        %v2558 = vadd.f32 0.0, %v2557
        %v2559 = vpop.f32.mrf.mxu0
        %2560 = vmatprep.mubr.bf16.mxu0 0
        %2561 = vmatmul.mubr.bf16.gmra.mxu0 %v2466
        %v2562 = vpop.f32.mrf.mxu0
        %v2563 = vadd.f32 0.0, %v2562
        %v2564 = vpop.f32.mrf.mxu0
        %v2565 = vpop.f32.mrf.mxu0
        %v2566 = vadd.f32 0.0, %v2565
        %v2567 = vpop.f32.mrf.mxu0
        %2568 = vmatprep.mubr.bf16.mxu0 0
        %2569 = vmatmul.mubr.bf16.gmra.mxu0 %v2469
        %v2570 = vpop.f32.mrf.mxu0
        %v2571 = vadd.f32 0.0, %v2570
        %v2572 = vpop.f32.mrf.mxu0
        %v2573 = vpop.f32.mrf.mxu0
        %v2574 = vadd.f32 0.0, %v2573
        %v2575 = vpop.f32.mrf.mxu0
        %2576 = vmatprep.mubr.bf16.mxu0 0
        %2577 = vmatmul.mubr.bf16.gmra.mxu0 %v2472
        %v2578 = vpop.f32.mrf.mxu0
        %v2579 = vadd.f32 0.0, %v2578
        %v2580 = vpop.f32.mrf.mxu0
        %v2581 = vpop.f32.mrf.mxu0
        %v2582 = vadd.f32 0.0, %v2581
        %v2583 = vpop.f32.mrf.mxu0
        %2584 = vmatprep.mubr.bf16.mxu0 0
        %2585 = vmatmul.mubr.bf16.gmra.mxu0 %v2475
        %v2586 = vpop.f32.mrf.mxu0
        %v2587 = vadd.f32 0.0, %v2586
        %v2588 = vpop.f32.mrf.mxu0
        %v2589 = vpop.f32.mrf.mxu0
        %v2590 = vadd.f32 0.0, %v2589
        %v2591 = vpop.f32.mrf.mxu0
        %2592 = vmatprep.mubr.bf16.mxu0 0
        %2593 = vmatmul.mubr.bf16.gmra.mxu0 %v2478
        %v2594 = vpop.f32.mrf.mxu0
        %v2595 = vadd.f32 0.0, %v2594
        %v2596 = vpop.f32.mrf.mxu0
        %v2597 = vpop.f32.mrf.mxu0
        %v2598 = vadd.f32 0.0, %v2597
        %v2599 = vpop.f32.mrf.mxu0
        %2600 = vmatprep.mubr.bf16.mxu0 0
        %2601 = vmatmul.mubr.bf16.gmra.mxu0 %v2481
        %v2602 = vpop.f32.mrf.mxu0
        %v2603 = vadd.f32 0.0, %v2602
        %v2604 = vpop.f32.mrf.mxu0
        %v2605 = vpop.f32.mrf.mxu0
        %v2606 = vadd.f32 0.0, %v2605
        %v2607 = vpop.f32.mrf.mxu0
        %2608 = vmatprep.mubr.bf16.mxu0 0
        %2609 = vmatmul.mubr.bf16.gmra.mxu0 %v2484
        %v2610 = vpop.f32.mrf.mxu0
        %v2611 = vadd.f32 0.0, %v2610
        %v2612 = vpop.f32.mrf.mxu0
        %v2613 = vpop.f32.mrf.mxu0
        %v2614 = vadd.f32 0.0, %v2613
        %v2615 = vpop.f32.mrf.mxu0
        %2616 = vmatprep.mubr.bf16.mxu0 0
        %2617 = vmatmul.mubr.bf16.gmra.mxu0 %v2487
        %v2618 = vpop.f32.mrf.mxu0
        %v2619 = vadd.f32 0.0, %v2618
        %v2620 = vpop.f32.mrf.mxu0
        %v2621 = vpop.f32.mrf.mxu0
        %v2622 = vadd.f32 0.0, %v2621
        %v2623 = vpop.f32.mrf.mxu0
        %2624 = vmatprep.mubr.bf16.mxu0 0
        %2625 = vmatmul.mubr.bf16.gmra.mxu0 %v2490
        %v2626 = vpop.f32.mrf.mxu0
        %v2627 = vadd.f32 0.0, %v2626
        %v2628 = vpop.f32.mrf.mxu0
        %v2629 = vpop.f32.mrf.mxu0
        %v2630 = vadd.f32 0.0, %v2629
        %v2631 = vpop.f32.mrf.mxu0
        %2632 = vmatprep.mubr.bf16.mxu0 0
        %2633 = vmatmul.mubr.bf16.gmra.mxu0 %v2493
        %v2634 = vpop.f32.mrf.mxu0
        %v2635 = vadd.f32 0.0, %v2634
        %v2636 = vpop.f32.mrf.mxu0
        %v2637 = vpop.f32.mrf.mxu0
        %v2638 = vadd.f32 0.0, %v2637
        %v2639 = vpop.f32.mrf.mxu0
        %2640 = vmatprep.mubr.bf16.mxu0 0
        %2641 = vmatmul.mubr.bf16.gmra.mxu0 %v2496
        %v2642 = vpop.f32.mrf.mxu0
        %v2643 = vadd.f32 0.0, %v2642
        %v2644 = vpop.f32.mrf.mxu0
        %v2645 = vpop.f32.mrf.mxu0
        %v2646 = vadd.f32 0.0, %v2645
        %v2647 = vpop.f32.mrf.mxu0
        %2648 = vmatprep.mubr.bf16.mxu0 0
        %2649 = vmatmul.mubr.bf16.gmra.mxu0 %v2499
        %v2650 = vpop.f32.mrf.mxu0
        %v2651 = vadd.f32 0.0, %v2650
        %v2652 = vpop.f32.mrf.mxu0
        %v2653 = vpop.f32.mrf.mxu0
        %v2654 = vadd.f32 0.0, %v2653
        %v2655 = vpop.f32.mrf.mxu0
        %2656 = vmatprep.mubr.bf16.mxu0 0
        %2657 = vmatmul.mubr.bf16.gmra.mxu0 %v2502
        %v2658 = vpop.f32.mrf.mxu0
        %v2659 = vadd.f32 0.0, %v2658
        %v2660 = vpop.f32.mrf.mxu0
        %v2661 = vpop.f32.mrf.mxu0
        %v2662 = vadd.f32 0.0, %v2661
        %v2663 = vpop.f32.mrf.mxu0
        %2664 = vdwg.mxu0
        %v2665 = vadd.f32 %v2367, %v2539
        %v2666 = vadd.f32 %v2368, %v2542
        %v2667 = vadd.f32 %v2369, %v2547
        %v2668 = vadd.f32 %v2370, %v2550
        %v2669 = vadd.f32 %v2371, %v2555
        %v2670 = vadd.f32 %v2372, %v2558
        %v2671 = vadd.f32 %v2373, %v2563
        %v2672 = vadd.f32 %v2374, %v2566
        %v2673 = vadd.f32 %v2375, %v2571
        %v2674 = vadd.f32 %v2376, %v2574
        %v2675 = vadd.f32 %v2377, %v2579
        %v2676 = vadd.f32 %v2378, %v2582
        %v2677 = vadd.f32 %v2379, %v2587
        %v2678 = vadd.f32 %v2380, %v2590
        %v2679 = vadd.f32 %v2381, %v2595
        %v2680 = vadd.f32 %v2382, %v2598
        %v2681 = vadd.f32 %v2383, %v2603
        %v2682 = vadd.f32 %v2384, %v2606
        %v2683 = vadd.f32 %v2385, %v2611
        %v2684 = vadd.f32 %v2386, %v2614
        %v2685 = vadd.f32 %v2387, %v2619
        %v2686 = vadd.f32 %v2388, %v2622
        %v2687 = vadd.f32 %v2389, %v2627
        %v2688 = vadd.f32 %v2390, %v2630
        %v2689 = vadd.f32 %v2391, %v2635
        %v2690 = vadd.f32 %v2392, %v2638
        %v2691 = vadd.f32 %v2393, %v2643
        %v2692 = vadd.f32 %v2394, %v2646
        %v2693 = vadd.f32 %v2395, %v2651
        %v2694 = vadd.f32 %v2396, %v2654
        %v2695 = vadd.f32 %v2397, %v2659
        %v2696 = vadd.f32 %v2398, %v2662
        %v2697 = vld [vmem:[%s2100 + $0x2] sm:$0xff]
        %v2698 = vld [vmem:[%s2100 + $0xa] sm:$0xff]
        %v2699 = vld [vmem:[%s2100 + $0x1a] sm:$0xff]
        %v2700 = vld [vmem:[%s2100 + $0x22] sm:$0xff]
        %v2701 = vld [vmem:[%s2100 + $0x32] sm:$0xff]
        %v2702 = vld [vmem:[%s2100 + $0x3a] sm:$0xff]
        %v2703 = vld [vmem:[%s2100 + $0x4a] sm:$0xff]
        %v2704 = vld [vmem:[%s2100 + $0x52] sm:$0xff]
        %v2705 = vld [vmem:[%s2100 + $0x62] sm:$0xff]
        %v2706 = vld [vmem:[%s2100 + $0x6a] sm:$0xff]
        %v2707 = vld [vmem:[%s2100 + $0x7a] sm:$0xff]
        %v2708 = vld [vmem:[%s2100 + $0x82] sm:$0xff]
        %v2709 = vld [vmem:[%s2100 + $0x92] sm:$0xff]
        %v2710 = vld [vmem:[%s2100 + $0x9a] sm:$0xff]
        %v2711 = vld [vmem:[%s2100 + $0xaa] sm:$0xff]
        %v2712 = vld [vmem:[%s2100 + $0xb2] sm:$0xff]
        %v2713 = vld [vmem:[%s2100 + $0xc2] sm:$0xff]
        %v2714 = vld [vmem:[%s2100 + $0xca] sm:$0xff]
        %v2715 = vld [vmem:[%s2100 + $0xda] sm:$0xff]
        %v2716 = vld [vmem:[%s2100 + $0xe2] sm:$0xff]
        %v2717 = vld [vmem:[%s2100 + $0xf2] sm:$0xff]
        %v2718 = vld [vmem:[%s2100 + $0xfa] sm:$0xff]
        %v2719 = vld [vmem:[%s2100 + $0x10a] sm:$0xff]
        %v2720 = vld [vmem:[%s2100 + $0x112] sm:$0xff]
        %v2721 = vld [vmem:[%s2100 + $0x122] sm:$0xff]
        %v2722 = vld [vmem:[%s2100 + $0x12a] sm:$0xff]
        %v2723 = vld [vmem:[%s2100 + $0x13a] sm:$0xff]
        %v2724 = vld [vmem:[%s2100 + $0x142] sm:$0xff]
        %v2725 = vld [vmem:[%s2100 + $0x152] sm:$0xff]
        %v2726 = vld [vmem:[%s2100 + $0x15a] sm:$0xff]
        %v2727 = vld [vmem:[%s2100 + $0x16a] sm:$0xff]
        %v2728 = vld [vmem:[%s2100 + $0x172] sm:$0xff]
        %v2729 = vpack.c.bf16 %v2698, %v2697
        %v2730 = vpack.c.bf16 %v2700, %v2699
        %v2731 = vpack.c.bf16 %v2702, %v2701
        %v2732 = vpack.c.bf16 %v2704, %v2703
        %v2733 = vpack.c.bf16 %v2706, %v2705
        %v2734 = vpack.c.bf16 %v2708, %v2707
        %v2735 = vpack.c.bf16 %v2710, %v2709
        %v2736 = vpack.c.bf16 %v2712, %v2711
        %v2737 = vpack.c.bf16 %v2714, %v2713
        %v2738 = vpack.c.bf16 %v2716, %v2715
        %v2739 = vpack.c.bf16 %v2718, %v2717
        %v2740 = vpack.c.bf16 %v2720, %v2719
        %v2741 = vpack.c.bf16 %v2722, %v2721
        %v2742 = vpack.c.bf16 %v2724, %v2723
        %v2743 = vpack.c.bf16 %v2726, %v2725
        %v2744 = vpack.c.bf16 %v2728, %v2727
        %s2745 = scalar_lea.vmem %s1, 64
        %v2746 = vld [vmem:[%s2745] sm:$0xf]
        %v2747 = vld [vmem:[%s2745 + $0x4] sm:$0xf]
        %v2750 = vunpack.c.l.b16 %v2746
        %v2751 = vunpack.c.l.b16 %v2747
        %v2752 = vpack.c.b16 %v2751, %v2750
        %v2755 = vsel %vm224, %v2729, 0
        %v2758 = vsel %vm224, %v2730, 0
        %v2761 = vsel %vm224, %v2731, 0
        %v2764 = vsel %vm224, %v2732, 0
        %v2767 = vsel %vm224, %v2733, 0
        %v2770 = vsel %vm224, %v2734, 0
        %v2773 = vsel %vm224, %v2735, 0
        %v2776 = vsel %vm224, %v2736, 0
        %v2779 = vsel %vm224, %v2737, 0
        %v2782 = vsel %vm224, %v2738, 0
        %v2785 = vsel %vm224, %v2739, 0
        %v2788 = vsel %vm224, %v2740, 0
        %v2791 = vsel %vm224, %v2741, 0
        %v2794 = vsel %vm224, %v2742, 0
        %v2797 = vsel %vm224, %v2743, 0
        %v2800 = vsel %vm224, %v2744, 0
        %2802 = vmatprep.subr.bf16.mxu0 0
        %2803 = vmatpush1.bf16.msra.mxu0 0
        %2804 = vmatprep.subr.bf16.mxu0 0
        %2805 = vmatpush1.bf16.msra.mxu0 0
        %2806 = vmatprep.subr.bf16.mxu0 0
        %2807 = vmatpush1.bf16.msra.mxu0 0
        %2808 = vmatprep.subr.bf16.mxu0 0
        %2809 = vmatpush1.bf16.msra.mxu0 0
        %2810 = vmatprep.subr.bf16.mxu0 0
        %2811 = vmatpush1.bf16.msra.mxu0 0
        %2812 = vmatprep.subr.bf16.mxu0 0
        %2813 = vmatpush1.bf16.msra.mxu0 0
        %2814 = vmatprep.subr.bf16.mxu0 0
        %2815 = vmatpush1.bf16.msra.mxu0 0
        %2816 = vmatprep.subr.bf16.mxu0 0
        %2817 = vmatpush1.bf16.msra.mxu0 %v2752
        %2818 = vmatprep.subr.bf16.mxu0 0
        %2819 = vmatpush2.bf16.msra.mxu0 0
        %2820 = vmatprep.subr.bf16.mxu0 0
        %2821 = vmatpush2.bf16.msra.mxu0 0
        %2822 = vmatprep.subr.bf16.mxu0 0
        %2823 = vmatpush2.bf16.msra.mxu0 0
        %2824 = vmatprep.subr.bf16.mxu0 0
        %2825 = vmatpush2.bf16.msra.mxu0 0
        %2826 = vmatprep.subr.bf16.mxu0 0
        %2827 = vmatpush2.bf16.msra.mxu0 0
        %2828 = vmatprep.subr.bf16.mxu0 0
        %2829 = vmatpush2.bf16.msra.mxu0 0
        %2830 = vmatprep.subr.bf16.mxu0 0
        %2831 = vmatpush2.bf16.msra.mxu0 0
        %2832 = vmatprep.subr.bf16.mxu0 0
        %2833 = vmatpush2.bf16.msra.mxu0 0
        %2834 = vmatprep.mubr.bf16.mxu0 0
        %2835 = vmatmul.mubr.bf16.gmra.mxu0 %v2755
        %v2836 = vpop.f32.mrf.mxu0
        %v2837 = vadd.f32 0.0, %v2836
        %v2838 = vpop.f32.mrf.mxu0
        %v2839 = vpop.f32.mrf.mxu0
        %v2840 = vadd.f32 0.0, %v2839
        %v2841 = vpop.f32.mrf.mxu0
        %2842 = vmatprep.mubr.bf16.mxu0 0
        %2843 = vmatmul.mubr.bf16.gmra.mxu0 %v2758
        %v2844 = vpop.f32.mrf.mxu0
        %v2845 = vadd.f32 0.0, %v2844
        %v2846 = vpop.f32.mrf.mxu0
        %v2847 = vpop.f32.mrf.mxu0
        %v2848 = vadd.f32 0.0, %v2847
        %v2849 = vpop.f32.mrf.mxu0
        %2850 = vmatprep.mubr.bf16.mxu0 0
        %2851 = vmatmul.mubr.bf16.gmra.mxu0 %v2761
        %v2852 = vpop.f32.mrf.mxu0
        %v2853 = vadd.f32 0.0, %v2852
        %v2854 = vpop.f32.mrf.mxu0
        %v2855 = vpop.f32.mrf.mxu0
        %v2856 = vadd.f32 0.0, %v2855
        %v2857 = vpop.f32.mrf.mxu0
        %2858 = vmatprep.mubr.bf16.mxu0 0
        %2859 = vmatmul.mubr.bf16.gmra.mxu0 %v2764
        %v2860 = vpop.f32.mrf.mxu0
        %v2861 = vadd.f32 0.0, %v2860
        %v2862 = vpop.f32.mrf.mxu0
        %v2863 = vpop.f32.mrf.mxu0
        %v2864 = vadd.f32 0.0, %v2863
        %v2865 = vpop.f32.mrf.mxu0
        %2866 = vmatprep.mubr.bf16.mxu0 0
        %2867 = vmatmul.mubr.bf16.gmra.mxu0 %v2767
        %v2868 = vpop.f32.mrf.mxu0
        %v2869 = vadd.f32 0.0, %v2868
        %v2870 = vpop.f32.mrf.mxu0
        %v2871 = vpop.f32.mrf.mxu0
        %v2872 = vadd.f32 0.0, %v2871
        %v2873 = vpop.f32.mrf.mxu0
        %2874 = vmatprep.mubr.bf16.mxu0 0
        %2875 = vmatmul.mubr.bf16.gmra.mxu0 %v2770
        %v2876 = vpop.f32.mrf.mxu0
        %v2877 = vadd.f32 0.0, %v2876
        %v2878 = vpop.f32.mrf.mxu0
        %v2879 = vpop.f32.mrf.mxu0
        %v2880 = vadd.f32 0.0, %v2879
        %v2881 = vpop.f32.mrf.mxu0
        %2882 = vmatprep.mubr.bf16.mxu0 0
        %2883 = vmatmul.mubr.bf16.gmra.mxu0 %v2773
        %v2884 = vpop.f32.mrf.mxu0
        %v2885 = vadd.f32 0.0, %v2884
        %v2886 = vpop.f32.mrf.mxu0
        %v2887 = vpop.f32.mrf.mxu0
        %v2888 = vadd.f32 0.0, %v2887
        %v2889 = vpop.f32.mrf.mxu0
        %2890 = vmatprep.mubr.bf16.mxu0 0
        %2891 = vmatmul.mubr.bf16.gmra.mxu0 %v2776
        %v2892 = vpop.f32.mrf.mxu0
        %v2893 = vadd.f32 0.0, %v2892
        %v2894 = vpop.f32.mrf.mxu0
        %v2895 = vpop.f32.mrf.mxu0
        %v2896 = vadd.f32 0.0, %v2895
        %v2897 = vpop.f32.mrf.mxu0
        %2898 = vmatprep.mubr.bf16.mxu0 0
        %2899 = vmatmul.mubr.bf16.gmra.mxu0 %v2779
        %v2900 = vpop.f32.mrf.mxu0
        %v2901 = vadd.f32 0.0, %v2900
        %v2902 = vpop.f32.mrf.mxu0
        %v2903 = vpop.f32.mrf.mxu0
        %v2904 = vadd.f32 0.0, %v2903
        %v2905 = vpop.f32.mrf.mxu0
        %2906 = vmatprep.mubr.bf16.mxu0 0
        %2907 = vmatmul.mubr.bf16.gmra.mxu0 %v2782
        %v2908 = vpop.f32.mrf.mxu0
        %v2909 = vadd.f32 0.0, %v2908
        %v2910 = vpop.f32.mrf.mxu0
        %v2911 = vpop.f32.mrf.mxu0
        %v2912 = vadd.f32 0.0, %v2911
        %v2913 = vpop.f32.mrf.mxu0
        %2914 = vmatprep.mubr.bf16.mxu0 0
        %2915 = vmatmul.mubr.bf16.gmra.mxu0 %v2785
        %v2916 = vpop.f32.mrf.mxu0
        %v2917 = vadd.f32 0.0, %v2916
        %v2918 = vpop.f32.mrf.mxu0
        %v2919 = vpop.f32.mrf.mxu0
        %v2920 = vadd.f32 0.0, %v2919
        %v2921 = vpop.f32.mrf.mxu0
        %2922 = vmatprep.mubr.bf16.mxu0 0
        %2923 = vmatmul.mubr.bf16.gmra.mxu0 %v2788
        %v2924 = vpop.f32.mrf.mxu0
        %v2925 = vadd.f32 0.0, %v2924
        %v2926 = vpop.f32.mrf.mxu0
        %v2927 = vpop.f32.mrf.mxu0
        %v2928 = vadd.f32 0.0, %v2927
        %v2929 = vpop.f32.mrf.mxu0
        %2930 = vmatprep.mubr.bf16.mxu0 0
        %2931 = vmatmul.mubr.bf16.gmra.mxu0 %v2791
        %v2932 = vpop.f32.mrf.mxu0
        %v2933 = vadd.f32 0.0, %v2932
        %v2934 = vpop.f32.mrf.mxu0
        %v2935 = vpop.f32.mrf.mxu0
        %v2936 = vadd.f32 0.0, %v2935
        %v2937 = vpop.f32.mrf.mxu0
        %2938 = vmatprep.mubr.bf16.mxu0 0
        %2939 = vmatmul.mubr.bf16.gmra.mxu0 %v2794
        %v2940 = vpop.f32.mrf.mxu0
        %v2941 = vadd.f32 0.0, %v2940
        %v2942 = vpop.f32.mrf.mxu0
        %v2943 = vpop.f32.mrf.mxu0
        %v2944 = vadd.f32 0.0, %v2943
        %v2945 = vpop.f32.mrf.mxu0
        %2946 = vmatprep.mubr.bf16.mxu0 0
        %2947 = vmatmul.mubr.bf16.gmra.mxu0 %v2797
        %v2948 = vpop.f32.mrf.mxu0
        %v2949 = vadd.f32 0.0, %v2948
        %v2950 = vpop.f32.mrf.mxu0
        %v2951 = vpop.f32.mrf.mxu0
        %v2952 = vadd.f32 0.0, %v2951
        %v2953 = vpop.f32.mrf.mxu0
        %2954 = vmatprep.mubr.bf16.mxu0 0
        %2955 = vmatmul.mubr.bf16.gmra.mxu0 %v2800
        %v2956 = vpop.f32.mrf.mxu0
        %v2957 = vadd.f32 0.0, %v2956
        %v2958 = vpop.f32.mrf.mxu0
        %v2959 = vpop.f32.mrf.mxu0
        %v2960 = vadd.f32 0.0, %v2959
        %v2961 = vpop.f32.mrf.mxu0
        %2962 = vdwg.mxu0
        %v2963 = vadd.f32 %v2665, %v2837
        %v2964 = vadd.f32 %v2666, %v2840
        %v2965 = vadd.f32 %v2667, %v2845
        %v2966 = vadd.f32 %v2668, %v2848
        %v2967 = vadd.f32 %v2669, %v2853
        %v2968 = vadd.f32 %v2670, %v2856
        %v2969 = vadd.f32 %v2671, %v2861
        %v2970 = vadd.f32 %v2672, %v2864
        %v2971 = vadd.f32 %v2673, %v2869
        %v2972 = vadd.f32 %v2674, %v2872
        %v2973 = vadd.f32 %v2675, %v2877
        %v2974 = vadd.f32 %v2676, %v2880
        %v2975 = vadd.f32 %v2677, %v2885
        %v2976 = vadd.f32 %v2678, %v2888
        %v2977 = vadd.f32 %v2679, %v2893
        %v2978 = vadd.f32 %v2680, %v2896
        %v2979 = vadd.f32 %v2681, %v2901
        %v2980 = vadd.f32 %v2682, %v2904
        %v2981 = vadd.f32 %v2683, %v2909
        %v2982 = vadd.f32 %v2684, %v2912
        %v2983 = vadd.f32 %v2685, %v2917
        %v2984 = vadd.f32 %v2686, %v2920
        %v2985 = vadd.f32 %v2687, %v2925
        %v2986 = vadd.f32 %v2688, %v2928
        %v2987 = vadd.f32 %v2689, %v2933
        %v2988 = vadd.f32 %v2690, %v2936
        %v2989 = vadd.f32 %v2691, %v2941
        %v2990 = vadd.f32 %v2692, %v2944
        %v2991 = vadd.f32 %v2693, %v2949
        %v2992 = vadd.f32 %v2694, %v2952
        %v2993 = vadd.f32 %v2695, %v2957
        %v2994 = vadd.f32 %v2696, %v2960
        %v2995 = vld [vmem:[%s2] sm:$0x1]
        %v2997 = vlaneseq
        %v2998 = vshrl.u32 %v2997, 7
        %v2999 = vsub.s32 0, %v2998
        %v3000 = vrot.slane %v2995, %v2999
        %v3002 = vadd.f32 %v2963, %v3000
        %v3003 = vadd.f32 %v2964, %v3000
        %v3004 = vadd.f32 %v2965, %v3000
        %v3005 = vadd.f32 %v2966, %v3000
        %v3006 = vadd.f32 %v2967, %v3000
        %v3007 = vadd.f32 %v2968, %v3000
        %v3008 = vadd.f32 %v2969, %v3000
        %v3009 = vadd.f32 %v2970, %v3000
        %v3010 = vadd.f32 %v2971, %v3000
        %v3011 = vadd.f32 %v2972, %v3000
        %v3012 = vadd.f32 %v2973, %v3000
        %v3013 = vadd.f32 %v2974, %v3000
        %v3014 = vadd.f32 %v2975, %v3000
        %v3015 = vadd.f32 %v2976, %v3000
        %v3016 = vadd.f32 %v2977, %v3000
        %v3017 = vadd.f32 %v2978, %v3000
        %v3018 = vadd.f32 %v2979, %v3000
        %v3019 = vadd.f32 %v2980, %v3000
        %v3020 = vadd.f32 %v2981, %v3000
        %v3021 = vadd.f32 %v2982, %v3000
        %v3022 = vadd.f32 %v2983, %v3000
        %v3023 = vadd.f32 %v2984, %v3000
        %v3024 = vadd.f32 %v2985, %v3000
        %v3025 = vadd.f32 %v2986, %v3000
        %v3026 = vadd.f32 %v2987, %v3000
        %v3027 = vadd.f32 %v2988, %v3000
        %v3028 = vadd.f32 %v2989, %v3000
        %v3029 = vadd.f32 %v2990, %v3000
        %v3030 = vadd.f32 %v2991, %v3000
        %v3031 = vadd.f32 %v2992, %v3000
        %v3032 = vadd.f32 %v2993, %v3000
        %v3033 = vadd.f32 %v2994, %v3000
        %v3034 = vmax.f32 %v3002, 0.0
        %v3035 = vmax.f32 %v3003, 0.0
        %v3036 = vmax.f32 %v3004, 0.0
        %v3037 = vmax.f32 %v3005, 0.0
        %v3038 = vmax.f32 %v3006, 0.0
        %v3039 = vmax.f32 %v3007, 0.0
        %v3040 = vmax.f32 %v3008, 0.0
        %v3041 = vmax.f32 %v3009, 0.0
        %v3042 = vmax.f32 %v3010, 0.0
        %v3043 = vmax.f32 %v3011, 0.0
        %v3044 = vmax.f32 %v3012, 0.0
        %v3045 = vmax.f32 %v3013, 0.0
        %v3046 = vmax.f32 %v3014, 0.0
        %v3047 = vmax.f32 %v3015, 0.0
        %v3048 = vmax.f32 %v3016, 0.0
        %v3049 = vmax.f32 %v3017, 0.0
        %v3050 = vmax.f32 %v3018, 0.0
        %v3051 = vmax.f32 %v3019, 0.0
        %v3052 = vmax.f32 %v3020, 0.0
        %v3053 = vmax.f32 %v3021, 0.0
        %v3054 = vmax.f32 %v3022, 0.0
        %v3055 = vmax.f32 %v3023, 0.0
        %v3056 = vmax.f32 %v3024, 0.0
        %v3057 = vmax.f32 %v3025, 0.0
        %v3058 = vmax.f32 %v3026, 0.0
        %v3059 = vmax.f32 %v3027, 0.0
        %v3060 = vmax.f32 %v3028, 0.0
        %v3061 = vmax.f32 %v3029, 0.0
        %v3062 = vmax.f32 %v3030, 0.0
        %v3063 = vmax.f32 %v3031, 0.0
        %v3064 = vmax.f32 %v3032, 0.0
        %v3065 = vmax.f32 %v3033, 0.0
        %vm3066 = vcmask 261120
        %3067 = vst.msk [vmem:[#allocation3] sm:$0xff] %vm3066, 0.0
        %3068 = vst.msk [vmem:[#allocation3 + $0x8] sm:$0xff] %vm3066, 0.0
        %vm3069 = vcmask 254976
        %3070 = vst.msk [vmem:[#allocation3 + $0x10] sm:$0x3] %vm3069, 0.0
        %3071 = vst.msk [vmem:[#allocation3 + $0x18] sm:$0xff] %vm3066, 0.0
        %3072 = vst.msk [vmem:[#allocation3 + $0x20] sm:$0xff] %vm3066, 0.0
        %3073 = vst.msk [vmem:[#allocation3 + $0x28] sm:$0x3] %vm3069, 0.0
        %3074 = vst.msk [vmem:[#allocation3 + $0x30] sm:$0xff] %vm3066, 0.0
        %3075 = vst.msk [vmem:[#allocation3 + $0x38] sm:$0xff] %vm3066, 0.0
        %3076 = vst.msk [vmem:[#allocation3 + $0x40] sm:$0x3] %vm3069, 0.0
        %3077 = vst.msk [vmem:[#allocation3 + $0x48] sm:$0xff] %vm3066, 0.0
        %3078 = vst.msk [vmem:[#allocation3 + $0x50] sm:$0xff] %vm3066, 0.0
        %3079 = vst.msk [vmem:[#allocation3 + $0x58] sm:$0x3] %vm3069, 0.0
        %3080 = vst.msk [vmem:[#allocation3 + $0x60] sm:$0xff] %vm3066, 0.0
        %3081 = vst.msk [vmem:[#allocation3 + $0x68] sm:$0xff] %vm3066, 0.0
        %3082 = vst.msk [vmem:[#allocation3 + $0x70] sm:$0x3] %vm3069, 0.0
        %3083 = vst.msk [vmem:[#allocation3 + $0x78] sm:$0xff] %vm3066, 0.0
        %3084 = vst.msk [vmem:[#allocation3 + $0x80] sm:$0xff] %vm3066, 0.0
        %3085 = vst.msk [vmem:[#allocation3 + $0x88] sm:$0x3] %vm3069, 0.0
        %3086 = vst.msk [vmem:[#allocation3 + $0x90] sm:$0xff] %vm3066, 0.0
        %3087 = vst.msk [vmem:[#allocation3 + $0x98] sm:$0xff] %vm3066, 0.0
        %3088 = vst.msk [vmem:[#allocation3 + $0xa0] sm:$0x3] %vm3069, 0.0
        %3089 = vst.msk [vmem:[#allocation3 + $0xa8] sm:$0xff] %vm3066, 0.0
        %3090 = vst.msk [vmem:[#allocation3 + $0xb0] sm:$0xff] %vm3066, 0.0
        %3091 = vst.msk [vmem:[#allocation3 + $0xb8] sm:$0x3] %vm3069, 0.0
        %3092 = vst.msk [vmem:[#allocation3 + $0xc0] sm:$0xff] %vm3066, 0.0
        %3093 = vst.msk [vmem:[#allocation3 + $0xc8] sm:$0xff] %vm3066, 0.0
        %3094 = vst.msk [vmem:[#allocation3 + $0xd0] sm:$0x3] %vm3069, 0.0
        %3095 = vst.msk [vmem:[#allocation3 + $0xd8] sm:$0xff] %vm3066, 0.0
        %3096 = vst.msk [vmem:[#allocation3 + $0xe0] sm:$0xff] %vm3066, 0.0
        %3097 = vst.msk [vmem:[#allocation3 + $0xe8] sm:$0x3] %vm3069, 0.0
        %3098 = vst.msk [vmem:[#allocation3 + $0xf0] sm:$0xff] %vm3066, 0.0
        %3099 = vst.msk [vmem:[#allocation3 + $0xf8] sm:$0xff] %vm3066, 0.0
        %3100 = vst.msk [vmem:[#allocation3 + $0x100] sm:$0x3] %vm3069, 0.0
        %3101 = vst.msk [vmem:[#allocation3 + $0x108] sm:$0xff] %vm3066, 0.0
        %3102 = vst.msk [vmem:[#allocation3 + $0x110] sm:$0xff] %vm3066, 0.0
        %3103 = vst.msk [vmem:[#allocation3 + $0x118] sm:$0x3] %vm3069, 0.0
        %3104 = vst.msk [vmem:[#allocation3 + $0x120] sm:$0xff] %vm3066, 0.0
        %3105 = vst.msk [vmem:[#allocation3 + $0x128] sm:$0xff] %vm3066, 0.0
        %3106 = vst.msk [vmem:[#allocation3 + $0x130] sm:$0x3] %vm3069, 0.0
        %3107 = vst.msk [vmem:[#allocation3 + $0x138] sm:$0xff] %vm3066, 0.0
        %3108 = vst.msk [vmem:[#allocation3 + $0x140] sm:$0xff] %vm3066, 0.0
        %3109 = vst.msk [vmem:[#allocation3 + $0x148] sm:$0x3] %vm3069, 0.0
        %3110 = vst.msk [vmem:[#allocation3 + $0x150] sm:$0xff] %vm3066, 0.0
        %3111 = vst.msk [vmem:[#allocation3 + $0x158] sm:$0xff] %vm3066, 0.0
        %3112 = vst.msk [vmem:[#allocation3 + $0x160] sm:$0x3] %vm3069, 0.0
        %3113 = vst.msk [vmem:[#allocation3 + $0x168] sm:$0xff] %vm3066, 0.0
        %3114 = vst.msk [vmem:[#allocation3 + $0x170] sm:$0xff] %vm3066, 0.0
        %3115 = vst.msk [vmem:[#allocation3 + $0x178] sm:$0x3] %vm3069, 0.0
        %3116 = vst.msk [vmem:[#allocation3 + $0x180] sm:$0xff] %vm3066, 0.0
        %3117 = vst.msk [vmem:[#allocation3 + $0x188] sm:$0xff] %vm3066, 0.0
        %3118 = vst.msk [vmem:[#allocation3 + $0x190] sm:$0x3] %vm3069, 0.0
        %3119 = vst.msk [vmem:[#allocation3 + $0x198] sm:$0xff] %vm3066, 0.0
        %3120 = vst.msk [vmem:[#allocation3 + $0x1a0] sm:$0xff] %vm3066, 0.0
        %3121 = vst.msk [vmem:[#allocation3 + $0x1a8] sm:$0x3] %vm3069, 0.0
        %s3122 = scalar_lea.vmem [#allocation3], 24
        %3123 = vst.msk [vmem:[%s3122 + $0x1] sm:$0xff] %vm3066, %v3034
        %3124 = vst.msk [vmem:[%s3122 + $0x9] sm:$0xff] %vm3066, %v3035
        %3125 = vst.msk [vmem:[%s3122 + $0x19] sm:$0xff] %vm3066, %v3036
        %3126 = vst.msk [vmem:[%s3122 + $0x21] sm:$0xff] %vm3066, %v3037
        %3127 = vst.msk [vmem:[%s3122 + $0x31] sm:$0xff] %vm3066, %v3038
        %3128 = vst.msk [vmem:[%s3122 + $0x39] sm:$0xff] %vm3066, %v3039
        %3129 = vst.msk [vmem:[%s3122 + $0x49] sm:$0xff] %vm3066, %v3040
        %3130 = vst.msk [vmem:[%s3122 + $0x51] sm:$0xff] %vm3066, %v3041
        %3131 = vst.msk [vmem:[%s3122 + $0x61] sm:$0xff] %vm3066, %v3042
        %3132 = vst.msk [vmem:[%s3122 + $0x69] sm:$0xff] %vm3066, %v3043
        %3133 = vst.msk [vmem:[%s3122 + $0x79] sm:$0xff] %vm3066, %v3044
        %3134 = vst.msk [vmem:[%s3122 + $0x81] sm:$0xff] %vm3066, %v3045
        %3135 = vst.msk [vmem:[%s3122 + $0x91] sm:$0xff] %vm3066, %v3046
        %3136 = vst.msk [vmem:[%s3122 + $0x99] sm:$0xff] %vm3066, %v3047
        %3137 = vst.msk [vmem:[%s3122 + $0xa9] sm:$0xff] %vm3066, %v3048
        %3138 = vst.msk [vmem:[%s3122 + $0xb1] sm:$0xff] %vm3066, %v3049
        %3139 = vst.msk [vmem:[%s3122 + $0xc1] sm:$0xff] %vm3066, %v3050
        %3140 = vst.msk [vmem:[%s3122 + $0xc9] sm:$0xff] %vm3066, %v3051
        %3141 = vst.msk [vmem:[%s3122 + $0xd9] sm:$0xff] %vm3066, %v3052
        %3142 = vst.msk [vmem:[%s3122 + $0xe1] sm:$0xff] %vm3066, %v3053
        %3143 = vst.msk [vmem:[%s3122 + $0xf1] sm:$0xff] %vm3066, %v3054
        %3144 = vst.msk [vmem:[%s3122 + $0xf9] sm:$0xff] %vm3066, %v3055
        %3145 = vst.msk [vmem:[%s3122 + $0x109] sm:$0xff] %vm3066, %v3056
        %3146 = vst.msk [vmem:[%s3122 + $0x111] sm:$0xff] %vm3066, %v3057
        %3147 = vst.msk [vmem:[%s3122 + $0x121] sm:$0xff] %vm3066, %v3058
        %3148 = vst.msk [vmem:[%s3122 + $0x129] sm:$0xff] %vm3066, %v3059
        %3149 = vst.msk [vmem:[%s3122 + $0x139] sm:$0xff] %vm3066, %v3060
        %3150 = vst.msk [vmem:[%s3122 + $0x141] sm:$0xff] %vm3066, %v3061
        %3151 = vst.msk [vmem:[%s3122 + $0x151] sm:$0xff] %vm3066, %v3062
        %3152 = vst.msk [vmem:[%s3122 + $0x159] sm:$0xff] %vm3066, %v3063
        %3153 = vst.msk [vmem:[%s3122 + $0x169] sm:$0xff] %vm3066, %v3064
        %3154 = vst.msk [vmem:[%s3122 + $0x171] sm:$0xff] %vm3066, %v3065
        %v3155 = vld [vmem:[#allocation3] sm:$0xff]
        %v3156 = vld [vmem:[#allocation3 + $0x8] sm:$0xff]
        %v3157 = vld [vmem:[#allocation3 + $0x18] sm:$0xff]
        %v3158 = vld [vmem:[#allocation3 + $0x20] sm:$0xff]
        %v3159 = vld [vmem:[#allocation3 + $0x30] sm:$0xff]
        %v3160 = vld [vmem:[#allocation3 + $0x38] sm:$0xff]
        %v3161 = vld [vmem:[#allocation3 + $0x48] sm:$0xff]
        %v3162 = vld [vmem:[#allocation3 + $0x50] sm:$0xff]
        %v3163 = vld [vmem:[#allocation3 + $0x60] sm:$0xff]
        %v3164 = vld [vmem:[#allocation3 + $0x68] sm:$0xff]
        %v3165 = vld [vmem:[#allocation3 + $0x78] sm:$0xff]
        %v3166 = vld [vmem:[#allocation3 + $0x80] sm:$0xff]
        %v3167 = vld [vmem:[#allocation3 + $0x90] sm:$0xff]
        %v3168 = vld [vmem:[#allocation3 + $0x98] sm:$0xff]
        %v3169 = vld [vmem:[#allocation3 + $0xa8] sm:$0xff]
        %v3170 = vld [vmem:[#allocation3 + $0xb0] sm:$0xff]
        %v3171 = vld [vmem:[#allocation3 + $0xc0] sm:$0xff]
        %v3172 = vld [vmem:[#allocation3 + $0xc8] sm:$0xff]
        %v3173 = vld [vmem:[#allocation3 + $0xd8] sm:$0xff]
        %v3174 = vld [vmem:[#allocation3 + $0xe0] sm:$0xff]
        %v3175 = vld [vmem:[#allocation3 + $0xf0] sm:$0xff]
        %v3176 = vld [vmem:[#allocation3 + $0xf8] sm:$0xff]
        %v3177 = vld [vmem:[#allocation3 + $0x108] sm:$0xff]
        %v3178 = vld [vmem:[#allocation3 + $0x110] sm:$0xff]
        %v3179 = vld [vmem:[#allocation3 + $0x120] sm:$0xff]
        %v3180 = vld [vmem:[#allocation3 + $0x128] sm:$0xff]
        %v3181 = vld [vmem:[#allocation3 + $0x138] sm:$0xff]
        %v3182 = vld [vmem:[#allocation3 + $0x140] sm:$0xff]
        %v3183 = vld [vmem:[#allocation3 + $0x150] sm:$0xff]
        %v3184 = vld [vmem:[#allocation3 + $0x158] sm:$0xff]
        %v3185 = vld [vmem:[#allocation3 + $0x168] sm:$0xff]
        %v3186 = vld [vmem:[#allocation3 + $0x170] sm:$0xff]
        %v3187 = vpack.c.bf16 %v3156, %v3155
        %v3188 = vpack.c.bf16 %v3158, %v3157
        %v3189 = vpack.c.bf16 %v3160, %v3159
        %v3190 = vpack.c.bf16 %v3162, %v3161
        %v3191 = vpack.c.bf16 %v3164, %v3163
        %v3192 = vpack.c.bf16 %v3166, %v3165
        %v3193 = vpack.c.bf16 %v3168, %v3167
        %v3194 = vpack.c.bf16 %v3170, %v3169
        %v3195 = vpack.c.bf16 %v3172, %v3171
        %v3196 = vpack.c.bf16 %v3174, %v3173
        %v3197 = vpack.c.bf16 %v3176, %v3175
        %v3198 = vpack.c.bf16 %v3178, %v3177
        %v3199 = vpack.c.bf16 %v3180, %v3179
        %v3200 = vpack.c.bf16 %v3182, %v3181
        %v3201 = vpack.c.bf16 %v3184, %v3183
        %v3202 = vpack.c.bf16 %v3186, %v3185
        %v3203 = vld [vmem:[%s3] sm:$0xf]
        %v3204 = vld [vmem:[%s3 + $0x4] sm:$0xf]
        %v3205 = vld [vmem:[%s3 + $0x8] sm:$0xf]
        %v3206 = vld [vmem:[%s3 + $0xc] sm:$0xf]
        %v3207 = vld [vmem:[#allocation3 + $0x1] sm:$0xff]
        %v3208 = vld [vmem:[#allocation3 + $0x9] sm:$0xff]
        %v3209 = vld [vmem:[#allocation3 + $0x19] sm:$0xff]
        %v3210 = vld [vmem:[#allocation3 + $0x21] sm:$0xff]
        %v3211 = vld [vmem:[#allocation3 + $0x31] sm:$0xff]
        %v3212 = vld [vmem:[#allocation3 + $0x39] sm:$0xff]
        %v3213 = vld [vmem:[#allocation3 + $0x49] sm:$0xff]
        %v3214 = vld [vmem:[#allocation3 + $0x51] sm:$0xff]
        %v3215 = vld [vmem:[#allocation3 + $0x61] sm:$0xff]
        %v3216 = vld [vmem:[#allocation3 + $0x69] sm:$0xff]
        %v3217 = vld [vmem:[#allocation3 + $0x79] sm:$0xff]
        %v3218 = vld [vmem:[#allocation3 + $0x81] sm:$0xff]
        %v3219 = vld [vmem:[#allocation3 + $0x91] sm:$0xff]
        %v3220 = vld [vmem:[#allocation3 + $0x99] sm:$0xff]
        %v3221 = vld [vmem:[#allocation3 + $0xa9] sm:$0xff]
        %v3222 = vld [vmem:[#allocation3 + $0xb1] sm:$0xff]
        %v3223 = vld [vmem:[#allocation3 + $0xc1] sm:$0xff]
        %v3224 = vld [vmem:[#allocation3 + $0xc9] sm:$0xff]
        %v3225 = vld [vmem:[#allocation3 + $0xd9] sm:$0xff]
        %v3226 = vld [vmem:[#allocation3 + $0xe1] sm:$0xff]
        %v3227 = vld [vmem:[#allocation3 + $0xf1] sm:$0xff]
        %v3228 = vld [vmem:[#allocation3 + $0xf9] sm:$0xff]
        %v3229 = vld [vmem:[#allocation3 + $0x109] sm:$0xff]
        %v3230 = vld [vmem:[#allocation3 + $0x111] sm:$0xff]
        %v3231 = vld [vmem:[#allocation3 + $0x121] sm:$0xff]
        %v3232 = vld [vmem:[#allocation3 + $0x129] sm:$0xff]
        %v3233 = vld [vmem:[#allocation3 + $0x139] sm:$0xff]
        %v3234 = vld [vmem:[#allocation3 + $0x141] sm:$0xff]
        %v3235 = vld [vmem:[#allocation3 + $0x151] sm:$0xff]
        %v3236 = vld [vmem:[#allocation3 + $0x159] sm:$0xff]
        %v3237 = vld [vmem:[#allocation3 + $0x169] sm:$0xff]
        %v3238 = vld [vmem:[#allocation3 + $0x171] sm:$0xff]
        %v3239 = vpack.c.bf16 %v3208, %v3207
        %v3240 = vpack.c.bf16 %v3210, %v3209
        %v3241 = vpack.c.bf16 %v3212, %v3211
        %v3242 = vpack.c.bf16 %v3214, %v3213
        %v3243 = vpack.c.bf16 %v3216, %v3215
        %v3244 = vpack.c.bf16 %v3218, %v3217
        %v3245 = vpack.c.bf16 %v3220, %v3219
        %v3246 = vpack.c.bf16 %v3222, %v3221
        %v3247 = vpack.c.bf16 %v3224, %v3223
        %v3248 = vpack.c.bf16 %v3226, %v3225
        %v3249 = vpack.c.bf16 %v3228, %v3227
        %v3250 = vpack.c.bf16 %v3230, %v3229
        %v3251 = vpack.c.bf16 %v3232, %v3231
        %v3252 = vpack.c.bf16 %v3234, %v3233
        %v3253 = vpack.c.bf16 %v3236, %v3235
        %v3254 = vpack.c.bf16 %v3238, %v3237
        %s3255 = scalar_lea.vmem %s3, 16
        %v3256 = vld [vmem:[%s3255] sm:$0xf]
        %v3257 = vld [vmem:[%s3255 + $0x4] sm:$0xf]
        %v3258 = vld [vmem:[%s3255 + $0x8] sm:$0xf]
        %v3259 = vld [vmem:[%s3255 + $0xc] sm:$0xf]
        %v3264 = vunpack.c.l.b16 %v3256
        %v3265 = vunpack.c.l.b16 %v3257
        %v3266 = vunpack.c.l.b16 %v3258
        %v3267 = vunpack.c.l.b16 %v3259
        %v3268 = vpack.c.b16 %v3265, %v3264
        %v3269 = vpack.c.b16 %v3267, %v3266
        %v3273 = vsel %vm3066, %v3239, 0
        %v3276 = vsel %vm3066, %v3240, 0
        %v3279 = vsel %vm3066, %v3241, 0
        %v3282 = vsel %vm3066, %v3242, 0
        %v3285 = vsel %vm3066, %v3243, 0
        %v3288 = vsel %vm3066, %v3244, 0
        %v3291 = vsel %vm3066, %v3245, 0
        %v3294 = vsel %vm3066, %v3246, 0
        %v3297 = vsel %vm3066, %v3247, 0
        %v3300 = vsel %vm3066, %v3248, 0
        %v3303 = vsel %vm3066, %v3249, 0
        %v3306 = vsel %vm3066, %v3250, 0
        %v3309 = vsel %vm3066, %v3251, 0
        %v3312 = vsel %vm3066, %v3252, 0
        %v3315 = vsel %vm3066, %v3253, 0
        %v3318 = vsel %vm3066, %v3254, 0
        %3320 = vmatprep.subr.bf16.mxu0 0
        %3321 = vmatpush1.bf16.msra.mxu0 0
        %3322 = vmatprep.subr.bf16.mxu0 0
        %3323 = vmatpush1.bf16.msra.mxu0 0
        %3324 = vmatprep.subr.bf16.mxu0 0
        %3325 = vmatpush1.bf16.msra.mxu0 0
        %3326 = vmatprep.subr.bf16.mxu0 0
        %3327 = vmatpush1.bf16.msra.mxu0 0
        %3328 = vmatprep.subr.bf16.mxu0 0
        %3329 = vmatpush1.bf16.msra.mxu0 0
        %3330 = vmatprep.subr.bf16.mxu0 0
        %3331 = vmatpush1.bf16.msra.mxu0 0
        %3332 = vmatprep.subr.bf16.mxu0 0
        %3333 = vmatpush1.bf16.msra.mxu0 %v3269
        %3334 = vmatprep.subr.bf16.mxu0 0
        %3335 = vmatpush1.bf16.msra.mxu0 %v3268
        %3336 = vmatprep.subr.bf16.mxu0 0
        %3337 = vmatpush2.bf16.msra.mxu0 0
        %3338 = vmatprep.subr.bf16.mxu0 0
        %3339 = vmatpush2.bf16.msra.mxu0 0
        %3340 = vmatprep.subr.bf16.mxu0 0
        %3341 = vmatpush2.bf16.msra.mxu0 0
        %3342 = vmatprep.subr.bf16.mxu0 0
        %3343 = vmatpush2.bf16.msra.mxu0 0
        %3344 = vmatprep.subr.bf16.mxu0 0
        %3345 = vmatpush2.bf16.msra.mxu0 0
        %3346 = vmatprep.subr.bf16.mxu0 0
        %3347 = vmatpush2.bf16.msra.mxu0 0
        %3348 = vmatprep.subr.bf16.mxu0 0
        %3349 = vmatpush2.bf16.msra.mxu0 0
        %3350 = vmatprep.subr.bf16.mxu0 0
        %3351 = vmatpush2.bf16.msra.mxu0 0
        %3352 = vmatprep.mubr.bf16.mxu0 0
        %3353 = vmatmul.mubr.bf16.gmra.mxu0 %v3273
        %v3354 = vpop.f32.mrf.mxu0
        %v3355 = vadd.f32 0.0, %v3354
        %v3356 = vpop.f32.mrf.mxu0
        %v3357 = vpop.f32.mrf.mxu0
        %v3358 = vadd.f32 0.0, %v3357
        %v3359 = vpop.f32.mrf.mxu0
        %3360 = vmatprep.mubr.bf16.mxu0 0
        %3361 = vmatmul.mubr.bf16.gmra.mxu0 %v3276
        %v3362 = vpop.f32.mrf.mxu0
        %v3363 = vadd.f32 0.0, %v3362
        %v3364 = vpop.f32.mrf.mxu0
        %v3365 = vpop.f32.mrf.mxu0
        %v3366 = vadd.f32 0.0, %v3365
        %v3367 = vpop.f32.mrf.mxu0
        %3368 = vmatprep.mubr.bf16.mxu0 0
        %3369 = vmatmul.mubr.bf16.gmra.mxu0 %v3279
        %v3370 = vpop.f32.mrf.mxu0
        %v3371 = vadd.f32 0.0, %v3370
        %v3372 = vpop.f32.mrf.mxu0
        %v3373 = vpop.f32.mrf.mxu0
        %v3374 = vadd.f32 0.0, %v3373
        %v3375 = vpop.f32.mrf.mxu0
        %3376 = vmatprep.mubr.bf16.mxu0 0
        %3377 = vmatmul.mubr.bf16.gmra.mxu0 %v3282
        %v3378 = vpop.f32.mrf.mxu0
        %v3379 = vadd.f32 0.0, %v3378
        %v3380 = vpop.f32.mrf.mxu0
        %v3381 = vpop.f32.mrf.mxu0
        %v3382 = vadd.f32 0.0, %v3381
        %v3383 = vpop.f32.mrf.mxu0
        %3384 = vmatprep.mubr.bf16.mxu0 0
        %3385 = vmatmul.mubr.bf16.gmra.mxu0 %v3285
        %v3386 = vpop.f32.mrf.mxu0
        %v3387 = vadd.f32 0.0, %v3386
        %v3388 = vpop.f32.mrf.mxu0
        %v3389 = vpop.f32.mrf.mxu0
        %v3390 = vadd.f32 0.0, %v3389
        %v3391 = vpop.f32.mrf.mxu0
        %3392 = vmatprep.mubr.bf16.mxu0 0
        %3393 = vmatmul.mubr.bf16.gmra.mxu0 %v3288
        %v3394 = vpop.f32.mrf.mxu0
        %v3395 = vadd.f32 0.0, %v3394
        %v3396 = vpop.f32.mrf.mxu0
        %v3397 = vpop.f32.mrf.mxu0
        %v3398 = vadd.f32 0.0, %v3397
        %v3399 = vpop.f32.mrf.mxu0
        %3400 = vmatprep.mubr.bf16.mxu0 0
        %3401 = vmatmul.mubr.bf16.gmra.mxu0 %v3291
        %v3402 = vpop.f32.mrf.mxu0
        %v3403 = vadd.f32 0.0, %v3402
        %v3404 = vpop.f32.mrf.mxu0
        %v3405 = vpop.f32.mrf.mxu0
        %v3406 = vadd.f32 0.0, %v3405
        %v3407 = vpop.f32.mrf.mxu0
        %3408 = vmatprep.mubr.bf16.mxu0 0
        %3409 = vmatmul.mubr.bf16.gmra.mxu0 %v3294
        %v3410 = vpop.f32.mrf.mxu0
        %v3411 = vadd.f32 0.0, %v3410
        %v3412 = vpop.f32.mrf.mxu0
        %v3413 = vpop.f32.mrf.mxu0
        %v3414 = vadd.f32 0.0, %v3413
        %v3415 = vpop.f32.mrf.mxu0
        %3416 = vmatprep.mubr.bf16.mxu0 0
        %3417 = vmatmul.mubr.bf16.gmra.mxu0 %v3297
        %v3418 = vpop.f32.mrf.mxu0
        %v3419 = vadd.f32 0.0, %v3418
        %v3420 = vpop.f32.mrf.mxu0
        %v3421 = vpop.f32.mrf.mxu0
        %v3422 = vadd.f32 0.0, %v3421
        %v3423 = vpop.f32.mrf.mxu0
        %3424 = vmatprep.mubr.bf16.mxu0 0
        %3425 = vmatmul.mubr.bf16.gmra.mxu0 %v3300
        %v3426 = vpop.f32.mrf.mxu0
        %v3427 = vadd.f32 0.0, %v3426
        %v3428 = vpop.f32.mrf.mxu0
        %v3429 = vpop.f32.mrf.mxu0
        %v3430 = vadd.f32 0.0, %v3429
        %v3431 = vpop.f32.mrf.mxu0
        %3432 = vmatprep.mubr.bf16.mxu0 0
        %3433 = vmatmul.mubr.bf16.gmra.mxu0 %v3303
        %v3434 = vpop.f32.mrf.mxu0
        %v3435 = vadd.f32 0.0, %v3434
        %v3436 = vpop.f32.mrf.mxu0
        %v3437 = vpop.f32.mrf.mxu0
        %v3438 = vadd.f32 0.0, %v3437
        %v3439 = vpop.f32.mrf.mxu0
        %3440 = vmatprep.mubr.bf16.mxu0 0
        %3441 = vmatmul.mubr.bf16.gmra.mxu0 %v3306
        %v3442 = vpop.f32.mrf.mxu0
        %v3443 = vadd.f32 0.0, %v3442
        %v3444 = vpop.f32.mrf.mxu0
        %v3445 = vpop.f32.mrf.mxu0
        %v3446 = vadd.f32 0.0, %v3445
        %v3447 = vpop.f32.mrf.mxu0
        %3448 = vmatprep.mubr.bf16.mxu0 0
        %3449 = vmatmul.mubr.bf16.gmra.mxu0 %v3309
        %v3450 = vpop.f32.mrf.mxu0
        %v3451 = vadd.f32 0.0, %v3450
        %v3452 = vpop.f32.mrf.mxu0
        %v3453 = vpop.f32.mrf.mxu0
        %v3454 = vadd.f32 0.0, %v3453
        %v3455 = vpop.f32.mrf.mxu0
        %3456 = vmatprep.mubr.bf16.mxu0 0
        %3457 = vmatmul.mubr.bf16.gmra.mxu0 %v3312
        %v3458 = vpop.f32.mrf.mxu0
        %v3459 = vadd.f32 0.0, %v3458
        %v3460 = vpop.f32.mrf.mxu0
        %v3461 = vpop.f32.mrf.mxu0
        %v3462 = vadd.f32 0.0, %v3461
        %v3463 = vpop.f32.mrf.mxu0
        %3464 = vmatprep.mubr.bf16.mxu0 0
        %3465 = vmatmul.mubr.bf16.gmra.mxu0 %v3315
        %v3466 = vpop.f32.mrf.mxu0
        %v3467 = vadd.f32 0.0, %v3466
        %v3468 = vpop.f32.mrf.mxu0
        %v3469 = vpop.f32.mrf.mxu0
        %v3470 = vadd.f32 0.0, %v3469
        %v3471 = vpop.f32.mrf.mxu0
        %3472 = vmatprep.mubr.bf16.mxu0 0
        %3473 = vmatmul.mubr.bf16.gmra.mxu0 %v3318
        %v3474 = vpop.f32.mrf.mxu0
        %v3475 = vadd.f32 0.0, %v3474
        %v3476 = vpop.f32.mrf.mxu0
        %v3477 = vpop.f32.mrf.mxu0
        %v3478 = vadd.f32 0.0, %v3477
        %v3479 = vpop.f32.mrf.mxu0
        %3480 = vdwg.mxu0
        %v3485 = vunpack.c.l.b16 %v3203
        %v3486 = vunpack.c.l.b16 %v3204
        %v3487 = vunpack.c.l.b16 %v3205
        %v3488 = vunpack.c.l.b16 %v3206
        %v3489 = vpack.c.b16 %v3486, %v3485
        %v3490 = vpack.c.b16 %v3488, %v3487
        %v3494 = vsel %vm3066, %v3187, 0
        %v3497 = vsel %vm3066, %v3188, 0
        %v3500 = vsel %vm3066, %v3189, 0
        %v3503 = vsel %vm3066, %v3190, 0
        %v3506 = vsel %vm3066, %v3191, 0
        %v3509 = vsel %vm3066, %v3192, 0
        %v3512 = vsel %vm3066, %v3193, 0
        %v3515 = vsel %vm3066, %v3194, 0
        %v3518 = vsel %vm3066, %v3195, 0
        %v3521 = vsel %vm3066, %v3196, 0
        %v3524 = vsel %vm3066, %v3197, 0
        %v3527 = vsel %vm3066, %v3198, 0
        %v3530 = vsel %vm3066, %v3199, 0
        %v3533 = vsel %vm3066, %v3200, 0
        %v3536 = vsel %vm3066, %v3201, 0
        %v3539 = vsel %vm3066, %v3202, 0
        %3541 = vmatprep.subr.bf16.mxu0 0
        %3542 = vmatpush1.bf16.msra.mxu0 0
        %3543 = vmatprep.subr.bf16.mxu0 0
        %3544 = vmatpush1.bf16.msra.mxu0 0
        %3545 = vmatprep.subr.bf16.mxu0 0
        %3546 = vmatpush1.bf16.msra.mxu0 0
        %3547 = vmatprep.subr.bf16.mxu0 0
        %3548 = vmatpush1.bf16.msra.mxu0 0
        %3549 = vmatprep.subr.bf16.mxu0 0
        %3550 = vmatpush1.bf16.msra.mxu0 0
        %3551 = vmatprep.subr.bf16.mxu0 0
        %3552 = vmatpush1.bf16.msra.mxu0 0
        %3553 = vmatprep.subr.bf16.mxu0 0
        %3554 = vmatpush1.bf16.msra.mxu0 %v3490
        %3555 = vmatprep.subr.bf16.mxu0 0
        %3556 = vmatpush1.bf16.msra.mxu0 %v3489
        %3557 = vmatprep.subr.bf16.mxu0 0
        %3558 = vmatpush2.bf16.msra.mxu0 0
        %3559 = vmatprep.subr.bf16.mxu0 0
        %3560 = vmatpush2.bf16.msra.mxu0 0
        %3561 = vmatprep.subr.bf16.mxu0 0
        %3562 = vmatpush2.bf16.msra.mxu0 0
        %3563 = vmatprep.subr.bf16.mxu0 0
        %3564 = vmatpush2.bf16.msra.mxu0 0
        %3565 = vmatprep.subr.bf16.mxu0 0
        %3566 = vmatpush2.bf16.msra.mxu0 0
        %3567 = vmatprep.subr.bf16.mxu0 0
        %3568 = vmatpush2.bf16.msra.mxu0 0
        %3569 = vmatprep.subr.bf16.mxu0 0
        %3570 = vmatpush2.bf16.msra.mxu0 0
        %3571 = vmatprep.subr.bf16.mxu0 0
        %3572 = vmatpush2.bf16.msra.mxu0 0
        %3573 = vmatprep.mubr.bf16.mxu0 0
        %3574 = vmatmul.mubr.bf16.gmra.mxu0 %v3494
        %v3575 = vpop.f32.mrf.mxu0
        %v3576 = vadd.f32 %v3355, %v3575
        %v3577 = vpop.f32.mrf.mxu0
        %v3578 = vpop.f32.mrf.mxu0
        %v3579 = vadd.f32 %v3358, %v3578
        %v3580 = vpop.f32.mrf.mxu0
        %3581 = vmatprep.mubr.bf16.mxu0 0
        %3582 = vmatmul.mubr.bf16.gmra.mxu0 %v3497
        %v3583 = vpop.f32.mrf.mxu0
        %v3584 = vadd.f32 %v3363, %v3583
        %v3585 = vpop.f32.mrf.mxu0
        %v3586 = vpop.f32.mrf.mxu0
        %v3587 = vadd.f32 %v3366, %v3586
        %v3588 = vpop.f32.mrf.mxu0
        %3589 = vmatprep.mubr.bf16.mxu0 0
        %3590 = vmatmul.mubr.bf16.gmra.mxu0 %v3500
        %v3591 = vpop.f32.mrf.mxu0
        %v3592 = vadd.f32 %v3371, %v3591
        %v3593 = vpop.f32.mrf.mxu0
        %v3594 = vpop.f32.mrf.mxu0
        %v3595 = vadd.f32 %v3374, %v3594
        %v3596 = vpop.f32.mrf.mxu0
        %3597 = vmatprep.mubr.bf16.mxu0 0
        %3598 = vmatmul.mubr.bf16.gmra.mxu0 %v3503
        %v3599 = vpop.f32.mrf.mxu0
        %v3600 = vadd.f32 %v3379, %v3599
        %v3601 = vpop.f32.mrf.mxu0
        %v3602 = vpop.f32.mrf.mxu0
        %v3603 = vadd.f32 %v3382, %v3602
        %v3604 = vpop.f32.mrf.mxu0
        %3605 = vmatprep.mubr.bf16.mxu0 0
        %3606 = vmatmul.mubr.bf16.gmra.mxu0 %v3506
        %v3607 = vpop.f32.mrf.mxu0
        %v3608 = vadd.f32 %v3387, %v3607
        %v3609 = vpop.f32.mrf.mxu0
        %v3610 = vpop.f32.mrf.mxu0
        %v3611 = vadd.f32 %v3390, %v3610
        %v3612 = vpop.f32.mrf.mxu0
        %3613 = vmatprep.mubr.bf16.mxu0 0
        %3614 = vmatmul.mubr.bf16.gmra.mxu0 %v3509
        %v3615 = vpop.f32.mrf.mxu0
        %v3616 = vadd.f32 %v3395, %v3615
        %v3617 = vpop.f32.mrf.mxu0
        %v3618 = vpop.f32.mrf.mxu0
        %v3619 = vadd.f32 %v3398, %v3618
        %v3620 = vpop.f32.mrf.mxu0
        %3621 = vmatprep.mubr.bf16.mxu0 0
        %3622 = vmatmul.mubr.bf16.gmra.mxu0 %v3512
        %v3623 = vpop.f32.mrf.mxu0
        %v3624 = vadd.f32 %v3403, %v3623
        %v3625 = vpop.f32.mrf.mxu0
        %v3626 = vpop.f32.mrf.mxu0
        %v3627 = vadd.f32 %v3406, %v3626
        %v3628 = vpop.f32.mrf.mxu0
        %3629 = vmatprep.mubr.bf16.mxu0 0
        %3630 = vmatmul.mubr.bf16.gmra.mxu0 %v3515
        %v3631 = vpop.f32.mrf.mxu0
        %v3632 = vadd.f32 %v3411, %v3631
        %v3633 = vpop.f32.mrf.mxu0
        %v3634 = vpop.f32.mrf.mxu0
        %v3635 = vadd.f32 %v3414, %v3634
        %v3636 = vpop.f32.mrf.mxu0
        %3637 = vmatprep.mubr.bf16.mxu0 0
        %3638 = vmatmul.mubr.bf16.gmra.mxu0 %v3518
        %v3639 = vpop.f32.mrf.mxu0
        %v3640 = vadd.f32 %v3419, %v3639
        %v3641 = vpop.f32.mrf.mxu0
        %v3642 = vpop.f32.mrf.mxu0
        %v3643 = vadd.f32 %v3422, %v3642
        %v3644 = vpop.f32.mrf.mxu0
        %3645 = vmatprep.mubr.bf16.mxu0 0
        %3646 = vmatmul.mubr.bf16.gmra.mxu0 %v3521
        %v3647 = vpop.f32.mrf.mxu0
        %v3648 = vadd.f32 %v3427, %v3647
        %v3649 = vpop.f32.mrf.mxu0
        %v3650 = vpop.f32.mrf.mxu0
        %v3651 = vadd.f32 %v3430, %v3650
        %v3652 = vpop.f32.mrf.mxu0
        %3653 = vmatprep.mubr.bf16.mxu0 0
        %3654 = vmatmul.mubr.bf16.gmra.mxu0 %v3524
        %v3655 = vpop.f32.mrf.mxu0
        %v3656 = vadd.f32 %v3435, %v3655
        %v3657 = vpop.f32.mrf.mxu0
        %v3658 = vpop.f32.mrf.mxu0
        %v3659 = vadd.f32 %v3438, %v3658
        %v3660 = vpop.f32.mrf.mxu0
        %3661 = vmatprep.mubr.bf16.mxu0 0
        %3662 = vmatmul.mubr.bf16.gmra.mxu0 %v3527
        %v3663 = vpop.f32.mrf.mxu0
        %v3664 = vadd.f32 %v3443, %v3663
        %v3665 = vpop.f32.mrf.mxu0
        %v3666 = vpop.f32.mrf.mxu0
        %v3667 = vadd.f32 %v3446, %v3666
        %v3668 = vpop.f32.mrf.mxu0
        %3669 = vmatprep.mubr.bf16.mxu0 0
        %3670 = vmatmul.mubr.bf16.gmra.mxu0 %v3530
        %v3671 = vpop.f32.mrf.mxu0
        %v3672 = vadd.f32 %v3451, %v3671
        %v3673 = vpop.f32.mrf.mxu0
        %v3674 = vpop.f32.mrf.mxu0
        %v3675 = vadd.f32 %v3454, %v3674
        %v3676 = vpop.f32.mrf.mxu0
        %3677 = vmatprep.mubr.bf16.mxu0 0
        %3678 = vmatmul.mubr.bf16.gmra.mxu0 %v3533
        %v3679 = vpop.f32.mrf.mxu0
        %v3680 = vadd.f32 %v3459, %v3679
        %v3681 = vpop.f32.mrf.mxu0
        %v3682 = vpop.f32.mrf.mxu0
        %v3683 = vadd.f32 %v3462, %v3682
        %v3684 = vpop.f32.mrf.mxu0
        %3685 = vmatprep.mubr.bf16.mxu0 0
        %3686 = vmatmul.mubr.bf16.gmra.mxu0 %v3536
        %v3687 = vpop.f32.mrf.mxu0
        %v3688 = vadd.f32 %v3467, %v3687
        %v3689 = vpop.f32.mrf.mxu0
        %v3690 = vpop.f32.mrf.mxu0
        %v3691 = vadd.f32 %v3470, %v3690
        %v3692 = vpop.f32.mrf.mxu0
        %3693 = vmatprep.mubr.bf16.mxu0 0
        %3694 = vmatmul.mubr.bf16.gmra.mxu0 %v3539
        %v3695 = vpop.f32.mrf.mxu0
        %v3696 = vadd.f32 %v3475, %v3695
        %v3697 = vpop.f32.mrf.mxu0
        %v3698 = vpop.f32.mrf.mxu0
        %v3699 = vadd.f32 %v3478, %v3698
        %v3700 = vpop.f32.mrf.mxu0
        %3701 = vdwg.mxu0
        %v3702 = vld [vmem:[#allocation3 + $0x2] sm:$0xff]
        %v3703 = vld [vmem:[#allocation3 + $0xa] sm:$0xff]
        %v3704 = vld [vmem:[#allocation3 + $0x1a] sm:$0xff]
        %v3705 = vld [vmem:[#allocation3 + $0x22] sm:$0xff]
        %v3706 = vld [vmem:[#allocation3 + $0x32] sm:$0xff]
        %v3707 = vld [vmem:[#allocation3 + $0x3a] sm:$0xff]
        %v3708 = vld [vmem:[#allocation3 + $0x4a] sm:$0xff]
        %v3709 = vld [vmem:[#allocation3 + $0x52] sm:$0xff]
        %v3710 = vld [vmem:[#allocation3 + $0x62] sm:$0xff]
        %v3711 = vld [vmem:[#allocation3 + $0x6a] sm:$0xff]
        %v3712 = vld [vmem:[#allocation3 + $0x7a] sm:$0xff]
        %v3713 = vld [vmem:[#allocation3 + $0x82] sm:$0xff]
        %v3714 = vld [vmem:[#allocation3 + $0x92] sm:$0xff]
        %v3715 = vld [vmem:[#allocation3 + $0x9a] sm:$0xff]
        %v3716 = vld [vmem:[#allocation3 + $0xaa] sm:$0xff]
        %v3717 = vld [vmem:[#allocation3 + $0xb2] sm:$0xff]
        %v3718 = vld [vmem:[#allocation3 + $0xc2] sm:$0xff]
        %v3719 = vld [vmem:[#allocation3 + $0xca] sm:$0xff]
        %v3720 = vld [vmem:[#allocation3 + $0xda] sm:$0xff]
        %v3721 = vld [vmem:[#allocation3 + $0xe2] sm:$0xff]
        %v3722 = vld [vmem:[#allocation3 + $0xf2] sm:$0xff]
        %v3723 = vld [vmem:[#allocation3 + $0xfa] sm:$0xff]
        %v3724 = vld [vmem:[#allocation3 + $0x10a] sm:$0xff]
        %v3725 = vld [vmem:[#allocation3 + $0x112] sm:$0xff]
        %v3726 = vld [vmem:[#allocation3 + $0x122] sm:$0xff]
        %v3727 = vld [vmem:[#allocation3 + $0x12a] sm:$0xff]
        %v3728 = vld [vmem:[#allocation3 + $0x13a] sm:$0xff]
        %v3729 = vld [vmem:[#allocation3 + $0x142] sm:$0xff]
        %v3730 = vld [vmem:[#allocation3 + $0x152] sm:$0xff]
        %v3731 = vld [vmem:[#allocation3 + $0x15a] sm:$0xff]
        %v3732 = vld [vmem:[#allocation3 + $0x16a] sm:$0xff]
        %v3733 = vld [vmem:[#allocation3 + $0x172] sm:$0xff]
        %v3734 = vpack.c.bf16 %v3703, %v3702
        %v3735 = vpack.c.bf16 %v3705, %v3704
        %v3736 = vpack.c.bf16 %v3707, %v3706
        %v3737 = vpack.c.bf16 %v3709, %v3708
        %v3738 = vpack.c.bf16 %v3711, %v3710
        %v3739 = vpack.c.bf16 %v3713, %v3712
        %v3740 = vpack.c.bf16 %v3715, %v3714
        %v3741 = vpack.c.bf16 %v3717, %v3716
        %v3742 = vpack.c.bf16 %v3719, %v3718
        %v3743 = vpack.c.bf16 %v3721, %v3720
        %v3744 = vpack.c.bf16 %v3723, %v3722
        %v3745 = vpack.c.bf16 %v3725, %v3724
        %v3746 = vpack.c.bf16 %v3727, %v3726
        %v3747 = vpack.c.bf16 %v3729, %v3728
        %v3748 = vpack.c.bf16 %v3731, %v3730
        %v3749 = vpack.c.bf16 %v3733, %v3732
        %s3750 = scalar_lea.vmem %s3, 32
        %v3751 = vld [vmem:[%s3750] sm:$0xf]
        %v3752 = vld [vmem:[%s3750 + $0x4] sm:$0xf]
        %v3753 = vld [vmem:[%s3750 + $0x8] sm:$0xf]
        %v3754 = vld [vmem:[%s3750 + $0xc] sm:$0xf]
        %v3759 = vunpack.c.l.b16 %v3751
        %v3760 = vunpack.c.l.b16 %v3752
        %v3761 = vunpack.c.l.b16 %v3753
        %v3762 = vunpack.c.l.b16 %v3754
        %v3763 = vpack.c.b16 %v3760, %v3759
        %v3764 = vpack.c.b16 %v3762, %v3761
        %v3768 = vsel %vm3066, %v3734, 0
        %v3771 = vsel %vm3066, %v3735, 0
        %v3774 = vsel %vm3066, %v3736, 0
        %v3777 = vsel %vm3066, %v3737, 0
        %v3780 = vsel %vm3066, %v3738, 0
        %v3783 = vsel %vm3066, %v3739, 0
        %v3786 = vsel %vm3066, %v3740, 0
        %v3789 = vsel %vm3066, %v3741, 0
        %v3792 = vsel %vm3066, %v3742, 0
        %v3795 = vsel %vm3066, %v3743, 0
        %v3798 = vsel %vm3066, %v3744, 0
        %v3801 = vsel %vm3066, %v3745, 0
        %v3804 = vsel %vm3066, %v3746, 0
        %v3807 = vsel %vm3066, %v3747, 0
        %v3810 = vsel %vm3066, %v3748, 0
        %v3813 = vsel %vm3066, %v3749, 0
        %3815 = vmatprep.subr.bf16.mxu0 0
        %3816 = vmatpush1.bf16.msra.mxu0 0
        %3817 = vmatprep.subr.bf16.mxu0 0
        %3818 = vmatpush1.bf16.msra.mxu0 0
        %3819 = vmatprep.subr.bf16.mxu0 0
        %3820 = vmatpush1.bf16.msra.mxu0 0
        %3821 = vmatprep.subr.bf16.mxu0 0
        %3822 = vmatpush1.bf16.msra.mxu0 0
        %3823 = vmatprep.subr.bf16.mxu0 0
        %3824 = vmatpush1.bf16.msra.mxu0 0
        %3825 = vmatprep.subr.bf16.mxu0 0
        %3826 = vmatpush1.bf16.msra.mxu0 0
        %3827 = vmatprep.subr.bf16.mxu0 0
        %3828 = vmatpush1.bf16.msra.mxu0 %v3764
        %3829 = vmatprep.subr.bf16.mxu0 0
        %3830 = vmatpush1.bf16.msra.mxu0 %v3763
        %3831 = vmatprep.subr.bf16.mxu0 0
        %3832 = vmatpush2.bf16.msra.mxu0 0
        %3833 = vmatprep.subr.bf16.mxu0 0
        %3834 = vmatpush2.bf16.msra.mxu0 0
        %3835 = vmatprep.subr.bf16.mxu0 0
        %3836 = vmatpush2.bf16.msra.mxu0 0
        %3837 = vmatprep.subr.bf16.mxu0 0
        %3838 = vmatpush2.bf16.msra.mxu0 0
        %3839 = vmatprep.subr.bf16.mxu0 0
        %3840 = vmatpush2.bf16.msra.mxu0 0
        %3841 = vmatprep.subr.bf16.mxu0 0
        %3842 = vmatpush2.bf16.msra.mxu0 0
        %3843 = vmatprep.subr.bf16.mxu0 0
        %3844 = vmatpush2.bf16.msra.mxu0 0
        %3845 = vmatprep.subr.bf16.mxu0 0
        %3846 = vmatpush2.bf16.msra.mxu0 0
        %3847 = vmatprep.mubr.bf16.mxu0 0
        %3848 = vmatmul.mubr.bf16.gmra.mxu0 %v3768
        %v3849 = vpop.f32.mrf.mxu0
        %v3850 = vadd.f32 0.0, %v3849
        %v3851 = vpop.f32.mrf.mxu0
        %v3852 = vpop.f32.mrf.mxu0
        %v3853 = vadd.f32 0.0, %v3852
        %v3854 = vpop.f32.mrf.mxu0
        %3855 = vmatprep.mubr.bf16.mxu0 0
        %3856 = vmatmul.mubr.bf16.gmra.mxu0 %v3771
        %v3857 = vpop.f32.mrf.mxu0
        %v3858 = vadd.f32 0.0, %v3857
        %v3859 = vpop.f32.mrf.mxu0
        %v3860 = vpop.f32.mrf.mxu0
        %v3861 = vadd.f32 0.0, %v3860
        %v3862 = vpop.f32.mrf.mxu0
        %3863 = vmatprep.mubr.bf16.mxu0 0
        %3864 = vmatmul.mubr.bf16.gmra.mxu0 %v3774
        %v3865 = vpop.f32.mrf.mxu0
        %v3866 = vadd.f32 0.0, %v3865
        %v3867 = vpop.f32.mrf.mxu0
        %v3868 = vpop.f32.mrf.mxu0
        %v3869 = vadd.f32 0.0, %v3868
        %v3870 = vpop.f32.mrf.mxu0
        %3871 = vmatprep.mubr.bf16.mxu0 0
        %3872 = vmatmul.mubr.bf16.gmra.mxu0 %v3777
        %v3873 = vpop.f32.mrf.mxu0
        %v3874 = vadd.f32 0.0, %v3873
        %v3875 = vpop.f32.mrf.mxu0
        %v3876 = vpop.f32.mrf.mxu0
        %v3877 = vadd.f32 0.0, %v3876
        %v3878 = vpop.f32.mrf.mxu0
        %3879 = vmatprep.mubr.bf16.mxu0 0
        %3880 = vmatmul.mubr.bf16.gmra.mxu0 %v3780
        %v3881 = vpop.f32.mrf.mxu0
        %v3882 = vadd.f32 0.0, %v3881
        %v3883 = vpop.f32.mrf.mxu0
        %v3884 = vpop.f32.mrf.mxu0
        %v3885 = vadd.f32 0.0, %v3884
        %v3886 = vpop.f32.mrf.mxu0
        %3887 = vmatprep.mubr.bf16.mxu0 0
        %3888 = vmatmul.mubr.bf16.gmra.mxu0 %v3783
        %v3889 = vpop.f32.mrf.mxu0
        %v3890 = vadd.f32 0.0, %v3889
        %v3891 = vpop.f32.mrf.mxu0
        %v3892 = vpop.f32.mrf.mxu0
        %v3893 = vadd.f32 0.0, %v3892
        %v3894 = vpop.f32.mrf.mxu0
        %3895 = vmatprep.mubr.bf16.mxu0 0
        %3896 = vmatmul.mubr.bf16.gmra.mxu0 %v3786
        %v3897 = vpop.f32.mrf.mxu0
        %v3898 = vadd.f32 0.0, %v3897
        %v3899 = vpop.f32.mrf.mxu0
        %v3900 = vpop.f32.mrf.mxu0
        %v3901 = vadd.f32 0.0, %v3900
        %v3902 = vpop.f32.mrf.mxu0
        %3903 = vmatprep.mubr.bf16.mxu0 0
        %3904 = vmatmul.mubr.bf16.gmra.mxu0 %v3789
        %v3905 = vpop.f32.mrf.mxu0
        %v3906 = vadd.f32 0.0, %v3905
        %v3907 = vpop.f32.mrf.mxu0
        %v3908 = vpop.f32.mrf.mxu0
        %v3909 = vadd.f32 0.0, %v3908
        %v3910 = vpop.f32.mrf.mxu0
        %3911 = vmatprep.mubr.bf16.mxu0 0
        %3912 = vmatmul.mubr.bf16.gmra.mxu0 %v3792
        %v3913 = vpop.f32.mrf.mxu0
        %v3914 = vadd.f32 0.0, %v3913
        %v3915 = vpop.f32.mrf.mxu0
        %v3916 = vpop.f32.mrf.mxu0
        %v3917 = vadd.f32 0.0, %v3916
        %v3918 = vpop.f32.mrf.mxu0
        %3919 = vmatprep.mubr.bf16.mxu0 0
        %3920 = vmatmul.mubr.bf16.gmra.mxu0 %v3795
        %v3921 = vpop.f32.mrf.mxu0
        %v3922 = vadd.f32 0.0, %v3921
        %v3923 = vpop.f32.mrf.mxu0
        %v3924 = vpop.f32.mrf.mxu0
        %v3925 = vadd.f32 0.0, %v3924
        %v3926 = vpop.f32.mrf.mxu0
        %3927 = vmatprep.mubr.bf16.mxu0 0
        %3928 = vmatmul.mubr.bf16.gmra.mxu0 %v3798
        %v3929 = vpop.f32.mrf.mxu0
        %v3930 = vadd.f32 0.0, %v3929
        %v3931 = vpop.f32.mrf.mxu0
        %v3932 = vpop.f32.mrf.mxu0
        %v3933 = vadd.f32 0.0, %v3932
        %v3934 = vpop.f32.mrf.mxu0
        %3935 = vmatprep.mubr.bf16.mxu0 0
        %3936 = vmatmul.mubr.bf16.gmra.mxu0 %v3801
        %v3937 = vpop.f32.mrf.mxu0
        %v3938 = vadd.f32 0.0, %v3937
        %v3939 = vpop.f32.mrf.mxu0
        %v3940 = vpop.f32.mrf.mxu0
        %v3941 = vadd.f32 0.0, %v3940
        %v3942 = vpop.f32.mrf.mxu0
        %3943 = vmatprep.mubr.bf16.mxu0 0
        %3944 = vmatmul.mubr.bf16.gmra.mxu0 %v3804
        %v3945 = vpop.f32.mrf.mxu0
        %v3946 = vadd.f32 0.0, %v3945
        %v3947 = vpop.f32.mrf.mxu0
        %v3948 = vpop.f32.mrf.mxu0
        %v3949 = vadd.f32 0.0, %v3948
        %v3950 = vpop.f32.mrf.mxu0
        %3951 = vmatprep.mubr.bf16.mxu0 0
        %3952 = vmatmul.mubr.bf16.gmra.mxu0 %v3807
        %v3953 = vpop.f32.mrf.mxu0
        %v3954 = vadd.f32 0.0, %v3953
        %v3955 = vpop.f32.mrf.mxu0
        %v3956 = vpop.f32.mrf.mxu0
        %v3957 = vadd.f32 0.0, %v3956
        %v3958 = vpop.f32.mrf.mxu0
        %3959 = vmatprep.mubr.bf16.mxu0 0
        %3960 = vmatmul.mubr.bf16.gmra.mxu0 %v3810
        %v3961 = vpop.f32.mrf.mxu0
        %v3962 = vadd.f32 0.0, %v3961
        %v3963 = vpop.f32.mrf.mxu0
        %v3964 = vpop.f32.mrf.mxu0
        %v3965 = vadd.f32 0.0, %v3964
        %v3966 = vpop.f32.mrf.mxu0
        %3967 = vmatprep.mubr.bf16.mxu0 0
        %3968 = vmatmul.mubr.bf16.gmra.mxu0 %v3813
        %v3969 = vpop.f32.mrf.mxu0
        %v3970 = vadd.f32 0.0, %v3969
        %v3971 = vpop.f32.mrf.mxu0
        %v3972 = vpop.f32.mrf.mxu0
        %v3973 = vadd.f32 0.0, %v3972
        %v3974 = vpop.f32.mrf.mxu0
        %3975 = vdwg.mxu0
        %v3976 = vadd.f32 %v3576, %v3850
        %v3977 = vadd.f32 %v3579, %v3853
        %v3978 = vadd.f32 %v3584, %v3858
        %v3979 = vadd.f32 %v3587, %v3861
        %v3980 = vadd.f32 %v3592, %v3866
        %v3981 = vadd.f32 %v3595, %v3869
        %v3982 = vadd.f32 %v3600, %v3874
        %v3983 = vadd.f32 %v3603, %v3877
        %v3984 = vadd.f32 %v3608, %v3882
        %v3985 = vadd.f32 %v3611, %v3885
        %v3986 = vadd.f32 %v3616, %v3890
        %v3987 = vadd.f32 %v3619, %v3893
        %v3988 = vadd.f32 %v3624, %v3898
        %v3989 = vadd.f32 %v3627, %v3901
        %v3990 = vadd.f32 %v3632, %v3906
        %v3991 = vadd.f32 %v3635, %v3909
        %v3992 = vadd.f32 %v3640, %v3914
        %v3993 = vadd.f32 %v3643, %v3917
        %v3994 = vadd.f32 %v3648, %v3922
        %v3995 = vadd.f32 %v3651, %v3925
        %v3996 = vadd.f32 %v3656, %v3930
        %v3997 = vadd.f32 %v3659, %v3933
        %v3998 = vadd.f32 %v3664, %v3938
        %v3999 = vadd.f32 %v3667, %v3941
        %v4000 = vadd.f32 %v3672, %v3946
        %v4001 = vadd.f32 %v3675, %v3949
        %v4002 = vadd.f32 %v3680, %v3954
        %v4003 = vadd.f32 %v3683, %v3957
        %v4004 = vadd.f32 %v3688, %v3962
        %v4005 = vadd.f32 %v3691, %v3965
        %v4006 = vadd.f32 %v3696, %v3970
        %v4007 = vadd.f32 %v3699, %v3973
        %v4008 = vld [vmem:[%s3122] sm:$0xff]
        %v4009 = vld [vmem:[%s3122 + $0x8] sm:$0xff]
        %v4010 = vld [vmem:[%s3122 + $0x18] sm:$0xff]
        %v4011 = vld [vmem:[%s3122 + $0x20] sm:$0xff]
        %v4012 = vld [vmem:[%s3122 + $0x30] sm:$0xff]
        %v4013 = vld [vmem:[%s3122 + $0x38] sm:$0xff]
        %v4014 = vld [vmem:[%s3122 + $0x48] sm:$0xff]
        %v4015 = vld [vmem:[%s3122 + $0x50] sm:$0xff]
        %v4016 = vld [vmem:[%s3122 + $0x60] sm:$0xff]
        %v4017 = vld [vmem:[%s3122 + $0x68] sm:$0xff]
        %v4018 = vld [vmem:[%s3122 + $0x78] sm:$0xff]
        %v4019 = vld [vmem:[%s3122 + $0x80] sm:$0xff]
        %v4020 = vld [vmem:[%s3122 + $0x90] sm:$0xff]
        %v4021 = vld [vmem:[%s3122 + $0x98] sm:$0xff]
        %v4022 = vld [vmem:[%s3122 + $0xa8] sm:$0xff]
        %v4023 = vld [vmem:[%s3122 + $0xb0] sm:$0xff]
        %v4024 = vld [vmem:[%s3122 + $0xc0] sm:$0xff]
        %v4025 = vld [vmem:[%s3122 + $0xc8] sm:$0xff]
        %v4026 = vld [vmem:[%s3122 + $0xd8] sm:$0xff]
        %v4027 = vld [vmem:[%s3122 + $0xe0] sm:$0xff]
        %v4028 = vld [vmem:[%s3122 + $0xf0] sm:$0xff]
        %v4029 = vld [vmem:[%s3122 + $0xf8] sm:$0xff]
        %v4030 = vld [vmem:[%s3122 + $0x108] sm:$0xff]
        %v4031 = vld [vmem:[%s3122 + $0x110] sm:$0xff]
        %v4032 = vld [vmem:[%s3122 + $0x120] sm:$0xff]
        %v4033 = vld [vmem:[%s3122 + $0x128] sm:$0xff]
        %v4034 = vld [vmem:[%s3122 + $0x138] sm:$0xff]
        %v4035 = vld [vmem:[%s3122 + $0x140] sm:$0xff]
        %v4036 = vld [vmem:[%s3122 + $0x150] sm:$0xff]
        %v4037 = vld [vmem:[%s3122 + $0x158] sm:$0xff]
        %v4038 = vld [vmem:[%s3122 + $0x168] sm:$0xff]
        %v4039 = vld [vmem:[%s3122 + $0x170] sm:$0xff]
        %v4040 = vpack.c.bf16 %v4009, %v4008
        %v4041 = vpack.c.bf16 %v4011, %v4010
        %v4042 = vpack.c.bf16 %v4013, %v4012
        %v4043 = vpack.c.bf16 %v4015, %v4014
        %v4044 = vpack.c.bf16 %v4017, %v4016
        %v4045 = vpack.c.bf16 %v4019, %v4018
        %v4046 = vpack.c.bf16 %v4021, %v4020
        %v4047 = vpack.c.bf16 %v4023, %v4022
        %v4048 = vpack.c.bf16 %v4025, %v4024
        %v4049 = vpack.c.bf16 %v4027, %v4026
        %v4050 = vpack.c.bf16 %v4029, %v4028
        %v4051 = vpack.c.bf16 %v4031, %v4030
        %v4052 = vpack.c.bf16 %v4033, %v4032
        %v4053 = vpack.c.bf16 %v4035, %v4034
        %v4054 = vpack.c.bf16 %v4037, %v4036
        %v4055 = vpack.c.bf16 %v4039, %v4038
        %s4056 = scalar_lea.vmem %s3, 48
        %v4057 = vld [vmem:[%s4056] sm:$0xf]
        %v4058 = vld [vmem:[%s4056 + $0x4] sm:$0xf]
        %v4059 = vld [vmem:[%s4056 + $0x8] sm:$0xf]
        %v4060 = vld [vmem:[%s4056 + $0xc] sm:$0xf]
        %v4065 = vunpack.c.l.b16 %v4057
        %v4066 = vunpack.c.l.b16 %v4058
        %v4067 = vunpack.c.l.b16 %v4059
        %v4068 = vunpack.c.l.b16 %v4060
        %v4069 = vpack.c.b16 %v4066, %v4065
        %v4070 = vpack.c.b16 %v4068, %v4067
        %v4074 = vsel %vm3066, %v4040, 0
        %v4077 = vsel %vm3066, %v4041, 0
        %v4080 = vsel %vm3066, %v4042, 0
        %v4083 = vsel %vm3066, %v4043, 0
        %v4086 = vsel %vm3066, %v4044, 0
        %v4089 = vsel %vm3066, %v4045, 0
        %v4092 = vsel %vm3066, %v4046, 0
        %v4095 = vsel %vm3066, %v4047, 0
        %v4098 = vsel %vm3066, %v4048, 0
        %v4101 = vsel %vm3066, %v4049, 0
        %v4104 = vsel %vm3066, %v4050, 0
        %v4107 = vsel %vm3066, %v4051, 0
        %v4110 = vsel %vm3066, %v4052, 0
        %v4113 = vsel %vm3066, %v4053, 0
        %v4116 = vsel %vm3066, %v4054, 0
        %v4119 = vsel %vm3066, %v4055, 0
        %4121 = vmatprep.subr.bf16.mxu0 0
        %4122 = vmatpush1.bf16.msra.mxu0 0
        %4123 = vmatprep.subr.bf16.mxu0 0
        %4124 = vmatpush1.bf16.msra.mxu0 0
        %4125 = vmatprep.subr.bf16.mxu0 0
        %4126 = vmatpush1.bf16.msra.mxu0 0
        %4127 = vmatprep.subr.bf16.mxu0 0
        %4128 = vmatpush1.bf16.msra.mxu0 0
        %4129 = vmatprep.subr.bf16.mxu0 0
        %4130 = vmatpush1.bf16.msra.mxu0 0
        %4131 = vmatprep.subr.bf16.mxu0 0
        %4132 = vmatpush1.bf16.msra.mxu0 0
        %4133 = vmatprep.subr.bf16.mxu0 0
        %4134 = vmatpush1.bf16.msra.mxu0 %v4070
        %4135 = vmatprep.subr.bf16.mxu0 0
        %4136 = vmatpush1.bf16.msra.mxu0 %v4069
        %4137 = vmatprep.subr.bf16.mxu0 0
        %4138 = vmatpush2.bf16.msra.mxu0 0
        %4139 = vmatprep.subr.bf16.mxu0 0
        %4140 = vmatpush2.bf16.msra.mxu0 0
        %4141 = vmatprep.subr.bf16.mxu0 0
        %4142 = vmatpush2.bf16.msra.mxu0 0
        %4143 = vmatprep.subr.bf16.mxu0 0
        %4144 = vmatpush2.bf16.msra.mxu0 0
        %4145 = vmatprep.subr.bf16.mxu0 0
        %4146 = vmatpush2.bf16.msra.mxu0 0
        %4147 = vmatprep.subr.bf16.mxu0 0
        %4148 = vmatpush2.bf16.msra.mxu0 0
        %4149 = vmatprep.subr.bf16.mxu0 0
        %4150 = vmatpush2.bf16.msra.mxu0 0
        %4151 = vmatprep.subr.bf16.mxu0 0
        %4152 = vmatpush2.bf16.msra.mxu0 0
        %4153 = vmatprep.mubr.bf16.mxu0 0
        %4154 = vmatmul.mubr.bf16.gmra.mxu0 %v4074
        %v4155 = vpop.f32.mrf.mxu0
        %v4156 = vadd.f32 0.0, %v4155
        %v4157 = vpop.f32.mrf.mxu0
        %v4158 = vpop.f32.mrf.mxu0
        %v4159 = vadd.f32 0.0, %v4158
        %v4160 = vpop.f32.mrf.mxu0
        %4161 = vmatprep.mubr.bf16.mxu0 0
        %4162 = vmatmul.mubr.bf16.gmra.mxu0 %v4077
        %v4163 = vpop.f32.mrf.mxu0
        %v4164 = vadd.f32 0.0, %v4163
        %v4165 = vpop.f32.mrf.mxu0
        %v4166 = vpop.f32.mrf.mxu0
        %v4167 = vadd.f32 0.0, %v4166
        %v4168 = vpop.f32.mrf.mxu0
        %4169 = vmatprep.mubr.bf16.mxu0 0
        %4170 = vmatmul.mubr.bf16.gmra.mxu0 %v4080
        %v4171 = vpop.f32.mrf.mxu0
        %v4172 = vadd.f32 0.0, %v4171
        %v4173 = vpop.f32.mrf.mxu0
        %v4174 = vpop.f32.mrf.mxu0
        %v4175 = vadd.f32 0.0, %v4174
        %v4176 = vpop.f32.mrf.mxu0
        %4177 = vmatprep.mubr.bf16.mxu0 0
        %4178 = vmatmul.mubr.bf16.gmra.mxu0 %v4083
        %v4179 = vpop.f32.mrf.mxu0
        %v4180 = vadd.f32 0.0, %v4179
        %v4181 = vpop.f32.mrf.mxu0
        %v4182 = vpop.f32.mrf.mxu0
        %v4183 = vadd.f32 0.0, %v4182
        %v4184 = vpop.f32.mrf.mxu0
        %4185 = vmatprep.mubr.bf16.mxu0 0
        %4186 = vmatmul.mubr.bf16.gmra.mxu0 %v4086
        %v4187 = vpop.f32.mrf.mxu0
        %v4188 = vadd.f32 0.0, %v4187
        %v4189 = vpop.f32.mrf.mxu0
        %v4190 = vpop.f32.mrf.mxu0
        %v4191 = vadd.f32 0.0, %v4190
        %v4192 = vpop.f32.mrf.mxu0
        %4193 = vmatprep.mubr.bf16.mxu0 0
        %4194 = vmatmul.mubr.bf16.gmra.mxu0 %v4089
        %v4195 = vpop.f32.mrf.mxu0
        %v4196 = vadd.f32 0.0, %v4195
        %v4197 = vpop.f32.mrf.mxu0
        %v4198 = vpop.f32.mrf.mxu0
        %v4199 = vadd.f32 0.0, %v4198
        %v4200 = vpop.f32.mrf.mxu0
        %4201 = vmatprep.mubr.bf16.mxu0 0
        %4202 = vmatmul.mubr.bf16.gmra.mxu0 %v4092
        %v4203 = vpop.f32.mrf.mxu0
        %v4204 = vadd.f32 0.0, %v4203
        %v4205 = vpop.f32.mrf.mxu0
        %v4206 = vpop.f32.mrf.mxu0
        %v4207 = vadd.f32 0.0, %v4206
        %v4208 = vpop.f32.mrf.mxu0
        %4209 = vmatprep.mubr.bf16.mxu0 0
        %4210 = vmatmul.mubr.bf16.gmra.mxu0 %v4095
        %v4211 = vpop.f32.mrf.mxu0
        %v4212 = vadd.f32 0.0, %v4211
        %v4213 = vpop.f32.mrf.mxu0
        %v4214 = vpop.f32.mrf.mxu0
        %v4215 = vadd.f32 0.0, %v4214
        %v4216 = vpop.f32.mrf.mxu0
        %4217 = vmatprep.mubr.bf16.mxu0 0
        %4218 = vmatmul.mubr.bf16.gmra.mxu0 %v4098
        %v4219 = vpop.f32.mrf.mxu0
        %v4220 = vadd.f32 0.0, %v4219
        %v4221 = vpop.f32.mrf.mxu0
        %v4222 = vpop.f32.mrf.mxu0
        %v4223 = vadd.f32 0.0, %v4222
        %v4224 = vpop.f32.mrf.mxu0
        %4225 = vmatprep.mubr.bf16.mxu0 0
        %4226 = vmatmul.mubr.bf16.gmra.mxu0 %v4101
        %v4227 = vpop.f32.mrf.mxu0
        %v4228 = vadd.f32 0.0, %v4227
        %v4229 = vpop.f32.mrf.mxu0
        %v4230 = vpop.f32.mrf.mxu0
        %v4231 = vadd.f32 0.0, %v4230
        %v4232 = vpop.f32.mrf.mxu0
        %4233 = vmatprep.mubr.bf16.mxu0 0
        %4234 = vmatmul.mubr.bf16.gmra.mxu0 %v4104
        %v4235 = vpop.f32.mrf.mxu0
        %v4236 = vadd.f32 0.0, %v4235
        %v4237 = vpop.f32.mrf.mxu0
        %v4238 = vpop.f32.mrf.mxu0
        %v4239 = vadd.f32 0.0, %v4238
        %v4240 = vpop.f32.mrf.mxu0
        %4241 = vmatprep.mubr.bf16.mxu0 0
        %4242 = vmatmul.mubr.bf16.gmra.mxu0 %v4107
        %v4243 = vpop.f32.mrf.mxu0
        %v4244 = vadd.f32 0.0, %v4243
        %v4245 = vpop.f32.mrf.mxu0
        %v4246 = vpop.f32.mrf.mxu0
        %v4247 = vadd.f32 0.0, %v4246
        %v4248 = vpop.f32.mrf.mxu0
        %4249 = vmatprep.mubr.bf16.mxu0 0
        %4250 = vmatmul.mubr.bf16.gmra.mxu0 %v4110
        %v4251 = vpop.f32.mrf.mxu0
        %v4252 = vadd.f32 0.0, %v4251
        %v4253 = vpop.f32.mrf.mxu0
        %v4254 = vpop.f32.mrf.mxu0
        %v4255 = vadd.f32 0.0, %v4254
        %v4256 = vpop.f32.mrf.mxu0
        %4257 = vmatprep.mubr.bf16.mxu0 0
        %4258 = vmatmul.mubr.bf16.gmra.mxu0 %v4113
        %v4259 = vpop.f32.mrf.mxu0
        %v4260 = vadd.f32 0.0, %v4259
        %v4261 = vpop.f32.mrf.mxu0
        %v4262 = vpop.f32.mrf.mxu0
        %v4263 = vadd.f32 0.0, %v4262
        %v4264 = vpop.f32.mrf.mxu0
        %4265 = vmatprep.mubr.bf16.mxu0 0
        %4266 = vmatmul.mubr.bf16.gmra.mxu0 %v4116
        %v4267 = vpop.f32.mrf.mxu0
        %v4268 = vadd.f32 0.0, %v4267
        %v4269 = vpop.f32.mrf.mxu0
        %v4270 = vpop.f32.mrf.mxu0
        %v4271 = vadd.f32 0.0, %v4270
        %v4272 = vpop.f32.mrf.mxu0
        %4273 = vmatprep.mubr.bf16.mxu0 0
        %4274 = vmatmul.mubr.bf16.gmra.mxu0 %v4119
        %v4275 = vpop.f32.mrf.mxu0
        %v4276 = vadd.f32 0.0, %v4275
        %v4277 = vpop.f32.mrf.mxu0
        %v4278 = vpop.f32.mrf.mxu0
        %v4279 = vadd.f32 0.0, %v4278
        %v4280 = vpop.f32.mrf.mxu0
        %4281 = vdwg.mxu0
        %v4282 = vadd.f32 %v3976, %v4156
        %v4283 = vadd.f32 %v3977, %v4159
        %v4284 = vadd.f32 %v3978, %v4164
        %v4285 = vadd.f32 %v3979, %v4167
        %v4286 = vadd.f32 %v3980, %v4172
        %v4287 = vadd.f32 %v3981, %v4175
        %v4288 = vadd.f32 %v3982, %v4180
        %v4289 = vadd.f32 %v3983, %v4183
        %v4290 = vadd.f32 %v3984, %v4188
        %v4291 = vadd.f32 %v3985, %v4191
        %v4292 = vadd.f32 %v3986, %v4196
        %v4293 = vadd.f32 %v3987, %v4199
        %v4294 = vadd.f32 %v3988, %v4204
        %v4295 = vadd.f32 %v3989, %v4207
        %v4296 = vadd.f32 %v3990, %v4212
        %v4297 = vadd.f32 %v3991, %v4215
        %v4298 = vadd.f32 %v3992, %v4220
        %v4299 = vadd.f32 %v3993, %v4223
        %v4300 = vadd.f32 %v3994, %v4228
        %v4301 = vadd.f32 %v3995, %v4231
        %v4302 = vadd.f32 %v3996, %v4236
        %v4303 = vadd.f32 %v3997, %v4239
        %v4304 = vadd.f32 %v3998, %v4244
        %v4305 = vadd.f32 %v3999, %v4247
        %v4306 = vadd.f32 %v4000, %v4252
        %v4307 = vadd.f32 %v4001, %v4255
        %v4308 = vadd.f32 %v4002, %v4260
        %v4309 = vadd.f32 %v4003, %v4263
        %v4310 = vadd.f32 %v4004, %v4268
        %v4311 = vadd.f32 %v4005, %v4271
        %v4312 = vadd.f32 %v4006, %v4276
        %v4313 = vadd.f32 %v4007, %v4279
        %v4314 = vld [vmem:[%s3122 + $0x1] sm:$0xff]
        %v4315 = vld [vmem:[%s3122 + $0x9] sm:$0xff]
        %v4316 = vld [vmem:[%s3122 + $0x19] sm:$0xff]
        %v4317 = vld [vmem:[%s3122 + $0x21] sm:$0xff]
        %v4318 = vld [vmem:[%s3122 + $0x31] sm:$0xff]
        %v4319 = vld [vmem:[%s3122 + $0x39] sm:$0xff]
        %v4320 = vld [vmem:[%s3122 + $0x49] sm:$0xff]
        %v4321 = vld [vmem:[%s3122 + $0x51] sm:$0xff]
        %v4322 = vld [vmem:[%s3122 + $0x61] sm:$0xff]
        %v4323 = vld [vmem:[%s3122 + $0x69] sm:$0xff]
        %v4324 = vld [vmem:[%s3122 + $0x79] sm:$0xff]
        %v4325 = vld [vmem:[%s3122 + $0x81] sm:$0xff]
        %v4326 = vld [vmem:[%s3122 + $0x91] sm:$0xff]
        %v4327 = vld [vmem:[%s3122 + $0x99] sm:$0xff]
        %v4328 = vld [vmem:[%s3122 + $0xa9] sm:$0xff]
        %v4329 = vld [vmem:[%s3122 + $0xb1] sm:$0xff]
        %v4330 = vld [vmem:[%s3122 + $0xc1] sm:$0xff]
        %v4331 = vld [vmem:[%s3122 + $0xc9] sm:$0xff]
        %v4332 = vld [vmem:[%s3122 + $0xd9] sm:$0xff]
        %v4333 = vld [vmem:[%s3122 + $0xe1] sm:$0xff]
        %v4334 = vld [vmem:[%s3122 + $0xf1] sm:$0xff]
        %v4335 = vld [vmem:[%s3122 + $0xf9] sm:$0xff]
        %v4336 = vld [vmem:[%s3122 + $0x109] sm:$0xff]
        %v4337 = vld [vmem:[%s3122 + $0x111] sm:$0xff]
        %v4338 = vld [vmem:[%s3122 + $0x121] sm:$0xff]
        %v4339 = vld [vmem:[%s3122 + $0x129] sm:$0xff]
        %v4340 = vld [vmem:[%s3122 + $0x139] sm:$0xff]
        %v4341 = vld [vmem:[%s3122 + $0x141] sm:$0xff]
        %v4342 = vld [vmem:[%s3122 + $0x151] sm:$0xff]
        %v4343 = vld [vmem:[%s3122 + $0x159] sm:$0xff]
        %v4344 = vld [vmem:[%s3122 + $0x169] sm:$0xff]
        %v4345 = vld [vmem:[%s3122 + $0x171] sm:$0xff]
        %v4346 = vpack.c.bf16 %v4315, %v4314
        %v4347 = vpack.c.bf16 %v4317, %v4316
        %v4348 = vpack.c.bf16 %v4319, %v4318
        %v4349 = vpack.c.bf16 %v4321, %v4320
        %v4350 = vpack.c.bf16 %v4323, %v4322
        %v4351 = vpack.c.bf16 %v4325, %v4324
        %v4352 = vpack.c.bf16 %v4327, %v4326
        %v4353 = vpack.c.bf16 %v4329, %v4328
        %v4354 = vpack.c.bf16 %v4331, %v4330
        %v4355 = vpack.c.bf16 %v4333, %v4332
        %v4356 = vpack.c.bf16 %v4335, %v4334
        %v4357 = vpack.c.bf16 %v4337, %v4336
        %v4358 = vpack.c.bf16 %v4339, %v4338
        %v4359 = vpack.c.bf16 %v4341, %v4340
        %v4360 = vpack.c.bf16 %v4343, %v4342
        %v4361 = vpack.c.bf16 %v4345, %v4344
        %s4362 = scalar_lea.vmem %s3, 64
        %v4363 = vld [vmem:[%s4362] sm:$0xf]
        %v4364 = vld [vmem:[%s4362 + $0x4] sm:$0xf]
        %v4365 = vld [vmem:[%s4362 + $0x8] sm:$0xf]
        %v4366 = vld [vmem:[%s4362 + $0xc] sm:$0xf]
        %v4371 = vunpack.c.l.b16 %v4363
        %v4372 = vunpack.c.l.b16 %v4364
        %v4373 = vunpack.c.l.b16 %v4365
        %v4374 = vunpack.c.l.b16 %v4366
        %v4375 = vpack.c.b16 %v4372, %v4371
        %v4376 = vpack.c.b16 %v4374, %v4373
        %v4380 = vsel %vm3066, %v4346, 0
        %v4383 = vsel %vm3066, %v4347, 0
        %v4386 = vsel %vm3066, %v4348, 0
        %v4389 = vsel %vm3066, %v4349, 0
        %v4392 = vsel %vm3066, %v4350, 0
        %v4395 = vsel %vm3066, %v4351, 0
        %v4398 = vsel %vm3066, %v4352, 0
        %v4401 = vsel %vm3066, %v4353, 0
        %v4404 = vsel %vm3066, %v4354, 0
        %v4407 = vsel %vm3066, %v4355, 0
        %v4410 = vsel %vm3066, %v4356, 0
        %v4413 = vsel %vm3066, %v4357, 0
        %v4416 = vsel %vm3066, %v4358, 0
        %v4419 = vsel %vm3066, %v4359, 0
        %v4422 = vsel %vm3066, %v4360, 0
        %v4425 = vsel %vm3066, %v4361, 0
        %4427 = vmatprep.subr.bf16.mxu0 0
        %4428 = vmatpush1.bf16.msra.mxu0 0
        %4429 = vmatprep.subr.bf16.mxu0 0
        %4430 = vmatpush1.bf16.msra.mxu0 0
        %4431 = vmatprep.subr.bf16.mxu0 0
        %4432 = vmatpush1.bf16.msra.mxu0 0
        %4433 = vmatprep.subr.bf16.mxu0 0
        %4434 = vmatpush1.bf16.msra.mxu0 0
        %4435 = vmatprep.subr.bf16.mxu0 0
        %4436 = vmatpush1.bf16.msra.mxu0 0
        %4437 = vmatprep.subr.bf16.mxu0 0
        %4438 = vmatpush1.bf16.msra.mxu0 0
        %4439 = vmatprep.subr.bf16.mxu0 0
        %4440 = vmatpush1.bf16.msra.mxu0 %v4376
        %4441 = vmatprep.subr.bf16.mxu0 0
        %4442 = vmatpush1.bf16.msra.mxu0 %v4375
        %4443 = vmatprep.subr.bf16.mxu0 0
        %4444 = vmatpush2.bf16.msra.mxu0 0
        %4445 = vmatprep.subr.bf16.mxu0 0
        %4446 = vmatpush2.bf16.msra.mxu0 0
        %4447 = vmatprep.subr.bf16.mxu0 0
        %4448 = vmatpush2.bf16.msra.mxu0 0
        %4449 = vmatprep.subr.bf16.mxu0 0
        %4450 = vmatpush2.bf16.msra.mxu0 0
        %4451 = vmatprep.subr.bf16.mxu0 0
        %4452 = vmatpush2.bf16.msra.mxu0 0
        %4453 = vmatprep.subr.bf16.mxu0 0
        %4454 = vmatpush2.bf16.msra.mxu0 0
        %4455 = vmatprep.subr.bf16.mxu0 0
        %4456 = vmatpush2.bf16.msra.mxu0 0
        %4457 = vmatprep.subr.bf16.mxu0 0
        %4458 = vmatpush2.bf16.msra.mxu0 0
        %4459 = vmatprep.mubr.bf16.mxu0 0
        %4460 = vmatmul.mubr.bf16.gmra.mxu0 %v4380
        %v4461 = vpop.f32.mrf.mxu0
        %v4462 = vadd.f32 0.0, %v4461
        %v4463 = vpop.f32.mrf.mxu0
        %v4464 = vpop.f32.mrf.mxu0
        %v4465 = vadd.f32 0.0, %v4464
        %v4466 = vpop.f32.mrf.mxu0
        %4467 = vmatprep.mubr.bf16.mxu0 0
        %4468 = vmatmul.mubr.bf16.gmra.mxu0 %v4383
        %v4469 = vpop.f32.mrf.mxu0
        %v4470 = vadd.f32 0.0, %v4469
        %v4471 = vpop.f32.mrf.mxu0
        %v4472 = vpop.f32.mrf.mxu0
        %v4473 = vadd.f32 0.0, %v4472
        %v4474 = vpop.f32.mrf.mxu0
        %4475 = vmatprep.mubr.bf16.mxu0 0
        %4476 = vmatmul.mubr.bf16.gmra.mxu0 %v4386
        %v4477 = vpop.f32.mrf.mxu0
        %v4478 = vadd.f32 0.0, %v4477
        %v4479 = vpop.f32.mrf.mxu0
        %v4480 = vpop.f32.mrf.mxu0
        %v4481 = vadd.f32 0.0, %v4480
        %v4482 = vpop.f32.mrf.mxu0
        %4483 = vmatprep.mubr.bf16.mxu0 0
        %4484 = vmatmul.mubr.bf16.gmra.mxu0 %v4389
        %v4485 = vpop.f32.mrf.mxu0
        %v4486 = vadd.f32 0.0, %v4485
        %v4487 = vpop.f32.mrf.mxu0
        %v4488 = vpop.f32.mrf.mxu0
        %v4489 = vadd.f32 0.0, %v4488
        %v4490 = vpop.f32.mrf.mxu0
        %4491 = vmatprep.mubr.bf16.mxu0 0
        %4492 = vmatmul.mubr.bf16.gmra.mxu0 %v4392
        %v4493 = vpop.f32.mrf.mxu0
        %v4494 = vadd.f32 0.0, %v4493
        %v4495 = vpop.f32.mrf.mxu0
        %v4496 = vpop.f32.mrf.mxu0
        %v4497 = vadd.f32 0.0, %v4496
        %v4498 = vpop.f32.mrf.mxu0
        %4499 = vmatprep.mubr.bf16.mxu0 0
        %4500 = vmatmul.mubr.bf16.gmra.mxu0 %v4395
        %v4501 = vpop.f32.mrf.mxu0
        %v4502 = vadd.f32 0.0, %v4501
        %v4503 = vpop.f32.mrf.mxu0
        %v4504 = vpop.f32.mrf.mxu0
        %v4505 = vadd.f32 0.0, %v4504
        %v4506 = vpop.f32.mrf.mxu0
        %4507 = vmatprep.mubr.bf16.mxu0 0
        %4508 = vmatmul.mubr.bf16.gmra.mxu0 %v4398
        %v4509 = vpop.f32.mrf.mxu0
        %v4510 = vadd.f32 0.0, %v4509
        %v4511 = vpop.f32.mrf.mxu0
        %v4512 = vpop.f32.mrf.mxu0
        %v4513 = vadd.f32 0.0, %v4512
        %v4514 = vpop.f32.mrf.mxu0
        %4515 = vmatprep.mubr.bf16.mxu0 0
        %4516 = vmatmul.mubr.bf16.gmra.mxu0 %v4401
        %v4517 = vpop.f32.mrf.mxu0
        %v4518 = vadd.f32 0.0, %v4517
        %v4519 = vpop.f32.mrf.mxu0
        %v4520 = vpop.f32.mrf.mxu0
        %v4521 = vadd.f32 0.0, %v4520
        %v4522 = vpop.f32.mrf.mxu0
        %4523 = vmatprep.mubr.bf16.mxu0 0
        %4524 = vmatmul.mubr.bf16.gmra.mxu0 %v4404
        %v4525 = vpop.f32.mrf.mxu0
        %v4526 = vadd.f32 0.0, %v4525
        %v4527 = vpop.f32.mrf.mxu0
        %v4528 = vpop.f32.mrf.mxu0
        %v4529 = vadd.f32 0.0, %v4528
        %v4530 = vpop.f32.mrf.mxu0
        %4531 = vmatprep.mubr.bf16.mxu0 0
        %4532 = vmatmul.mubr.bf16.gmra.mxu0 %v4407
        %v4533 = vpop.f32.mrf.mxu0
        %v4534 = vadd.f32 0.0, %v4533
        %v4535 = vpop.f32.mrf.mxu0
        %v4536 = vpop.f32.mrf.mxu0
        %v4537 = vadd.f32 0.0, %v4536
        %v4538 = vpop.f32.mrf.mxu0
        %4539 = vmatprep.mubr.bf16.mxu0 0
        %4540 = vmatmul.mubr.bf16.gmra.mxu0 %v4410
        %v4541 = vpop.f32.mrf.mxu0
        %v4542 = vadd.f32 0.0, %v4541
        %v4543 = vpop.f32.mrf.mxu0
        %v4544 = vpop.f32.mrf.mxu0
        %v4545 = vadd.f32 0.0, %v4544
        %v4546 = vpop.f32.mrf.mxu0
        %4547 = vmatprep.mubr.bf16.mxu0 0
        %4548 = vmatmul.mubr.bf16.gmra.mxu0 %v4413
        %v4549 = vpop.f32.mrf.mxu0
        %v4550 = vadd.f32 0.0, %v4549
        %v4551 = vpop.f32.mrf.mxu0
        %v4552 = vpop.f32.mrf.mxu0
        %v4553 = vadd.f32 0.0, %v4552
        %v4554 = vpop.f32.mrf.mxu0
        %4555 = vmatprep.mubr.bf16.mxu0 0
        %4556 = vmatmul.mubr.bf16.gmra.mxu0 %v4416
        %v4557 = vpop.f32.mrf.mxu0
        %v4558 = vadd.f32 0.0, %v4557
        %v4559 = vpop.f32.mrf.mxu0
        %v4560 = vpop.f32.mrf.mxu0
        %v4561 = vadd.f32 0.0, %v4560
        %v4562 = vpop.f32.mrf.mxu0
        %4563 = vmatprep.mubr.bf16.mxu0 0
        %4564 = vmatmul.mubr.bf16.gmra.mxu0 %v4419
        %v4565 = vpop.f32.mrf.mxu0
        %v4566 = vadd.f32 0.0, %v4565
        %v4567 = vpop.f32.mrf.mxu0
        %v4568 = vpop.f32.mrf.mxu0
        %v4569 = vadd.f32 0.0, %v4568
        %v4570 = vpop.f32.mrf.mxu0
        %4571 = vmatprep.mubr.bf16.mxu0 0
        %4572 = vmatmul.mubr.bf16.gmra.mxu0 %v4422
        %v4573 = vpop.f32.mrf.mxu0
        %v4574 = vadd.f32 0.0, %v4573
        %v4575 = vpop.f32.mrf.mxu0
        %v4576 = vpop.f32.mrf.mxu0
        %v4577 = vadd.f32 0.0, %v4576
        %v4578 = vpop.f32.mrf.mxu0
        %4579 = vmatprep.mubr.bf16.mxu0 0
        %4580 = vmatmul.mubr.bf16.gmra.mxu0 %v4425
        %v4581 = vpop.f32.mrf.mxu0
        %v4582 = vadd.f32 0.0, %v4581
        %v4583 = vpop.f32.mrf.mxu0
        %v4584 = vpop.f32.mrf.mxu0
        %v4585 = vadd.f32 0.0, %v4584
        %v4586 = vpop.f32.mrf.mxu0
        %4587 = vdwg.mxu0
        %v4588 = vadd.f32 %v4282, %v4462
        %v4589 = vadd.f32 %v4283, %v4465
        %v4590 = vadd.f32 %v4284, %v4470
        %v4591 = vadd.f32 %v4285, %v4473
        %v4592 = vadd.f32 %v4286, %v4478
        %v4593 = vadd.f32 %v4287, %v4481
        %v4594 = vadd.f32 %v4288, %v4486
        %v4595 = vadd.f32 %v4289, %v4489
        %v4596 = vadd.f32 %v4290, %v4494
        %v4597 = vadd.f32 %v4291, %v4497
        %v4598 = vadd.f32 %v4292, %v4502
        %v4599 = vadd.f32 %v4293, %v4505
        %v4600 = vadd.f32 %v4294, %v4510
        %v4601 = vadd.f32 %v4295, %v4513
        %v4602 = vadd.f32 %v4296, %v4518
        %v4603 = vadd.f32 %v4297, %v4521
        %v4604 = vadd.f32 %v4298, %v4526
        %v4605 = vadd.f32 %v4299, %v4529
        %v4606 = vadd.f32 %v4300, %v4534
        %v4607 = vadd.f32 %v4301, %v4537
        %v4608 = vadd.f32 %v4302, %v4542
        %v4609 = vadd.f32 %v4303, %v4545
        %v4610 = vadd.f32 %v4304, %v4550
        %v4611 = vadd.f32 %v4305, %v4553
        %v4612 = vadd.f32 %v4306, %v4558
        %v4613 = vadd.f32 %v4307, %v4561
        %v4614 = vadd.f32 %v4308, %v4566
        %v4615 = vadd.f32 %v4309, %v4569
        %v4616 = vadd.f32 %v4310, %v4574
        %v4617 = vadd.f32 %v4311, %v4577
        %v4618 = vadd.f32 %v4312, %v4582
        %v4619 = vadd.f32 %v4313, %v4585
        %v4620 = vld [vmem:[%s3122 + $0x2] sm:$0xff]
        %v4621 = vld [vmem:[%s3122 + $0xa] sm:$0xff]
        %v4622 = vld [vmem:[%s3122 + $0x1a] sm:$0xff]
        %v4623 = vld [vmem:[%s3122 + $0x22] sm:$0xff]
        %v4624 = vld [vmem:[%s3122 + $0x32] sm:$0xff]
        %v4625 = vld [vmem:[%s3122 + $0x3a] sm:$0xff]
        %v4626 = vld [vmem:[%s3122 + $0x4a] sm:$0xff]
        %v4627 = vld [vmem:[%s3122 + $0x52] sm:$0xff]
        %v4628 = vld [vmem:[%s3122 + $0x62] sm:$0xff]
        %v4629 = vld [vmem:[%s3122 + $0x6a] sm:$0xff]
        %v4630 = vld [vmem:[%s3122 + $0x7a] sm:$0xff]
        %v4631 = vld [vmem:[%s3122 + $0x82] sm:$0xff]
        %v4632 = vld [vmem:[%s3122 + $0x92] sm:$0xff]
        %v4633 = vld [vmem:[%s3122 + $0x9a] sm:$0xff]
        %v4634 = vld [vmem:[%s3122 + $0xaa] sm:$0xff]
        %v4635 = vld [vmem:[%s3122 + $0xb2] sm:$0xff]
        %v4636 = vld [vmem:[%s3122 + $0xc2] sm:$0xff]
        %v4637 = vld [vmem:[%s3122 + $0xca] sm:$0xff]
        %v4638 = vld [vmem:[%s3122 + $0xda] sm:$0xff]
        %v4639 = vld [vmem:[%s3122 + $0xe2] sm:$0xff]
        %v4640 = vld [vmem:[%s3122 + $0xf2] sm:$0xff]
        %v4641 = vld [vmem:[%s3122 + $0xfa] sm:$0xff]
        %v4642 = vld [vmem:[%s3122 + $0x10a] sm:$0xff]
        %v4643 = vld [vmem:[%s3122 + $0x112] sm:$0xff]
        %v4644 = vld [vmem:[%s3122 + $0x122] sm:$0xff]
        %v4645 = vld [vmem:[%s3122 + $0x12a] sm:$0xff]
        %v4646 = vld [vmem:[%s3122 + $0x13a] sm:$0xff]
        %v4647 = vld [vmem:[%s3122 + $0x142] sm:$0xff]
        %v4648 = vld [vmem:[%s3122 + $0x152] sm:$0xff]
        %v4649 = vld [vmem:[%s3122 + $0x15a] sm:$0xff]
        %v4650 = vld [vmem:[%s3122 + $0x16a] sm:$0xff]
        %v4651 = vld [vmem:[%s3122 + $0x172] sm:$0xff]
        %v4652 = vpack.c.bf16 %v4621, %v4620
        %v4653 = vpack.c.bf16 %v4623, %v4622
        %v4654 = vpack.c.bf16 %v4625, %v4624
        %v4655 = vpack.c.bf16 %v4627, %v4626
        %v4656 = vpack.c.bf16 %v4629, %v4628
        %v4657 = vpack.c.bf16 %v4631, %v4630
        %v4658 = vpack.c.bf16 %v4633, %v4632
        %v4659 = vpack.c.bf16 %v4635, %v4634
        %v4660 = vpack.c.bf16 %v4637, %v4636
        %v4661 = vpack.c.bf16 %v4639, %v4638
        %v4662 = vpack.c.bf16 %v4641, %v4640
        %v4663 = vpack.c.bf16 %v4643, %v4642
        %v4664 = vpack.c.bf16 %v4645, %v4644
        %v4665 = vpack.c.bf16 %v4647, %v4646
        %v4666 = vpack.c.bf16 %v4649, %v4648
        %v4667 = vpack.c.bf16 %v4651, %v4650
        %s4668 = scalar_lea.vmem %s3, 80
        %v4669 = vld [vmem:[%s4668] sm:$0xf]
        %v4670 = vld [vmem:[%s4668 + $0x4] sm:$0xf]
        %v4671 = vld [vmem:[%s4668 + $0x8] sm:$0xf]
        %v4672 = vld [vmem:[%s4668 + $0xc] sm:$0xf]
        %v4677 = vunpack.c.l.b16 %v4669
        %v4678 = vunpack.c.l.b16 %v4670
        %v4679 = vunpack.c.l.b16 %v4671
        %v4680 = vunpack.c.l.b16 %v4672
        %v4681 = vpack.c.b16 %v4678, %v4677
        %v4682 = vpack.c.b16 %v4680, %v4679
        %v4686 = vsel %vm3066, %v4652, 0
        %v4689 = vsel %vm3066, %v4653, 0
        %v4692 = vsel %vm3066, %v4654, 0
        %v4695 = vsel %vm3066, %v4655, 0
        %v4698 = vsel %vm3066, %v4656, 0
        %v4701 = vsel %vm3066, %v4657, 0
        %v4704 = vsel %vm3066, %v4658, 0
        %v4707 = vsel %vm3066, %v4659, 0
        %v4710 = vsel %vm3066, %v4660, 0
        %v4713 = vsel %vm3066, %v4661, 0
        %v4716 = vsel %vm3066, %v4662, 0
        %v4719 = vsel %vm3066, %v4663, 0
        %v4722 = vsel %vm3066, %v4664, 0
        %v4725 = vsel %vm3066, %v4665, 0
        %v4728 = vsel %vm3066, %v4666, 0
        %v4731 = vsel %vm3066, %v4667, 0
        %4733 = vmatprep.subr.bf16.mxu0 0
        %4734 = vmatpush1.bf16.msra.mxu0 0
        %4735 = vmatprep.subr.bf16.mxu0 0
        %4736 = vmatpush1.bf16.msra.mxu0 0
        %4737 = vmatprep.subr.bf16.mxu0 0
        %4738 = vmatpush1.bf16.msra.mxu0 0
        %4739 = vmatprep.subr.bf16.mxu0 0
        %4740 = vmatpush1.bf16.msra.mxu0 0
        %4741 = vmatprep.subr.bf16.mxu0 0
        %4742 = vmatpush1.bf16.msra.mxu0 0
        %4743 = vmatprep.subr.bf16.mxu0 0
        %4744 = vmatpush1.bf16.msra.mxu0 0
        %4745 = vmatprep.subr.bf16.mxu0 0
        %4746 = vmatpush1.bf16.msra.mxu0 %v4682
        %4747 = vmatprep.subr.bf16.mxu0 0
        %4748 = vmatpush1.bf16.msra.mxu0 %v4681
        %4749 = vmatprep.subr.bf16.mxu0 0
        %4750 = vmatpush2.bf16.msra.mxu0 0
        %4751 = vmatprep.subr.bf16.mxu0 0
        %4752 = vmatpush2.bf16.msra.mxu0 0
        %4753 = vmatprep.subr.bf16.mxu0 0
        %4754 = vmatpush2.bf16.msra.mxu0 0
        %4755 = vmatprep.subr.bf16.mxu0 0
        %4756 = vmatpush2.bf16.msra.mxu0 0
        %4757 = vmatprep.subr.bf16.mxu0 0
        %4758 = vmatpush2.bf16.msra.mxu0 0
        %4759 = vmatprep.subr.bf16.mxu0 0
        %4760 = vmatpush2.bf16.msra.mxu0 0
        %4761 = vmatprep.subr.bf16.mxu0 0
        %4762 = vmatpush2.bf16.msra.mxu0 0
        %4763 = vmatprep.subr.bf16.mxu0 0
        %4764 = vmatpush2.bf16.msra.mxu0 0
        %4765 = vmatprep.mubr.bf16.mxu0 0
        %4766 = vmatmul.mubr.bf16.gmra.mxu0 %v4686
        %v4767 = vpop.f32.mrf.mxu0
        %v4768 = vadd.f32 0.0, %v4767
        %v4769 = vpop.f32.mrf.mxu0
        %v4770 = vpop.f32.mrf.mxu0
        %v4771 = vadd.f32 0.0, %v4770
        %v4772 = vpop.f32.mrf.mxu0
        %4773 = vmatprep.mubr.bf16.mxu0 0
        %4774 = vmatmul.mubr.bf16.gmra.mxu0 %v4689
        %v4775 = vpop.f32.mrf.mxu0
        %v4776 = vadd.f32 0.0, %v4775
        %v4777 = vpop.f32.mrf.mxu0
        %v4778 = vpop.f32.mrf.mxu0
        %v4779 = vadd.f32 0.0, %v4778
        %v4780 = vpop.f32.mrf.mxu0
        %4781 = vmatprep.mubr.bf16.mxu0 0
        %4782 = vmatmul.mubr.bf16.gmra.mxu0 %v4692
        %v4783 = vpop.f32.mrf.mxu0
        %v4784 = vadd.f32 0.0, %v4783
        %v4785 = vpop.f32.mrf.mxu0
        %v4786 = vpop.f32.mrf.mxu0
        %v4787 = vadd.f32 0.0, %v4786
        %v4788 = vpop.f32.mrf.mxu0
        %4789 = vmatprep.mubr.bf16.mxu0 0
        %4790 = vmatmul.mubr.bf16.gmra.mxu0 %v4695
        %v4791 = vpop.f32.mrf.mxu0
        %v4792 = vadd.f32 0.0, %v4791
        %v4793 = vpop.f32.mrf.mxu0
        %v4794 = vpop.f32.mrf.mxu0
        %v4795 = vadd.f32 0.0, %v4794
        %v4796 = vpop.f32.mrf.mxu0
        %4797 = vmatprep.mubr.bf16.mxu0 0
        %4798 = vmatmul.mubr.bf16.gmra.mxu0 %v4698
        %v4799 = vpop.f32.mrf.mxu0
        %v4800 = vadd.f32 0.0, %v4799
        %v4801 = vpop.f32.mrf.mxu0
        %v4802 = vpop.f32.mrf.mxu0
        %v4803 = vadd.f32 0.0, %v4802
        %v4804 = vpop.f32.mrf.mxu0
        %4805 = vmatprep.mubr.bf16.mxu0 0
        %4806 = vmatmul.mubr.bf16.gmra.mxu0 %v4701
        %v4807 = vpop.f32.mrf.mxu0
        %v4808 = vadd.f32 0.0, %v4807
        %v4809 = vpop.f32.mrf.mxu0
        %v4810 = vpop.f32.mrf.mxu0
        %v4811 = vadd.f32 0.0, %v4810
        %v4812 = vpop.f32.mrf.mxu0
        %4813 = vmatprep.mubr.bf16.mxu0 0
        %4814 = vmatmul.mubr.bf16.gmra.mxu0 %v4704
        %v4815 = vpop.f32.mrf.mxu0
        %v4816 = vadd.f32 0.0, %v4815
        %v4817 = vpop.f32.mrf.mxu0
        %v4818 = vpop.f32.mrf.mxu0
        %v4819 = vadd.f32 0.0, %v4818
        %v4820 = vpop.f32.mrf.mxu0
        %4821 = vmatprep.mubr.bf16.mxu0 0
        %4822 = vmatmul.mubr.bf16.gmra.mxu0 %v4707
        %v4823 = vpop.f32.mrf.mxu0
        %v4824 = vadd.f32 0.0, %v4823
        %v4825 = vpop.f32.mrf.mxu0
        %v4826 = vpop.f32.mrf.mxu0
        %v4827 = vadd.f32 0.0, %v4826
        %v4828 = vpop.f32.mrf.mxu0
        %4829 = vmatprep.mubr.bf16.mxu0 0
        %4830 = vmatmul.mubr.bf16.gmra.mxu0 %v4710
        %v4831 = vpop.f32.mrf.mxu0
        %v4832 = vadd.f32 0.0, %v4831
        %v4833 = vpop.f32.mrf.mxu0
        %v4834 = vpop.f32.mrf.mxu0
        %v4835 = vadd.f32 0.0, %v4834
        %v4836 = vpop.f32.mrf.mxu0
        %4837 = vmatprep.mubr.bf16.mxu0 0
        %4838 = vmatmul.mubr.bf16.gmra.mxu0 %v4713
        %v4839 = vpop.f32.mrf.mxu0
        %v4840 = vadd.f32 0.0, %v4839
        %v4841 = vpop.f32.mrf.mxu0
        %v4842 = vpop.f32.mrf.mxu0
        %v4843 = vadd.f32 0.0, %v4842
        %v4844 = vpop.f32.mrf.mxu0
        %4845 = vmatprep.mubr.bf16.mxu0 0
        %4846 = vmatmul.mubr.bf16.gmra.mxu0 %v4716
        %v4847 = vpop.f32.mrf.mxu0
        %v4848 = vadd.f32 0.0, %v4847
        %v4849 = vpop.f32.mrf.mxu0
        %v4850 = vpop.f32.mrf.mxu0
        %v4851 = vadd.f32 0.0, %v4850
        %v4852 = vpop.f32.mrf.mxu0
        %4853 = vmatprep.mubr.bf16.mxu0 0
        %4854 = vmatmul.mubr.bf16.gmra.mxu0 %v4719
        %v4855 = vpop.f32.mrf.mxu0
        %v4856 = vadd.f32 0.0, %v4855
        %v4857 = vpop.f32.mrf.mxu0
        %v4858 = vpop.f32.mrf.mxu0
        %v4859 = vadd.f32 0.0, %v4858
        %v4860 = vpop.f32.mrf.mxu0
        %4861 = vmatprep.mubr.bf16.mxu0 0
        %4862 = vmatmul.mubr.bf16.gmra.mxu0 %v4722
        %v4863 = vpop.f32.mrf.mxu0
        %v4864 = vadd.f32 0.0, %v4863
        %v4865 = vpop.f32.mrf.mxu0
        %v4866 = vpop.f32.mrf.mxu0
        %v4867 = vadd.f32 0.0, %v4866
        %v4868 = vpop.f32.mrf.mxu0
        %4869 = vmatprep.mubr.bf16.mxu0 0
        %4870 = vmatmul.mubr.bf16.gmra.mxu0 %v4725
        %v4871 = vpop.f32.mrf.mxu0
        %v4872 = vadd.f32 0.0, %v4871
        %v4873 = vpop.f32.mrf.mxu0
        %v4874 = vpop.f32.mrf.mxu0
        %v4875 = vadd.f32 0.0, %v4874
        %v4876 = vpop.f32.mrf.mxu0
        %4877 = vmatprep.mubr.bf16.mxu0 0
        %4878 = vmatmul.mubr.bf16.gmra.mxu0 %v4728
        %v4879 = vpop.f32.mrf.mxu0
        %v4880 = vadd.f32 0.0, %v4879
        %v4881 = vpop.f32.mrf.mxu0
        %v4882 = vpop.f32.mrf.mxu0
        %v4883 = vadd.f32 0.0, %v4882
        %v4884 = vpop.f32.mrf.mxu0
        %4885 = vmatprep.mubr.bf16.mxu0 0
        %4886 = vmatmul.mubr.bf16.gmra.mxu0 %v4731
        %v4887 = vpop.f32.mrf.mxu0
        %v4888 = vadd.f32 0.0, %v4887
        %v4889 = vpop.f32.mrf.mxu0
        %v4890 = vpop.f32.mrf.mxu0
        %v4891 = vadd.f32 0.0, %v4890
        %v4892 = vpop.f32.mrf.mxu0
        %4893 = vdwg.mxu0
        %v4894 = vadd.f32 %v4588, %v4768
        %v4895 = vadd.f32 %v4589, %v4771
        %v4896 = vadd.f32 %v4590, %v4776
        %v4897 = vadd.f32 %v4591, %v4779
        %v4898 = vadd.f32 %v4592, %v4784
        %v4899 = vadd.f32 %v4593, %v4787
        %v4900 = vadd.f32 %v4594, %v4792
        %v4901 = vadd.f32 %v4595, %v4795
        %v4902 = vadd.f32 %v4596, %v4800
        %v4903 = vadd.f32 %v4597, %v4803
        %v4904 = vadd.f32 %v4598, %v4808
        %v4905 = vadd.f32 %v4599, %v4811
        %v4906 = vadd.f32 %v4600, %v4816
        %v4907 = vadd.f32 %v4601, %v4819
        %v4908 = vadd.f32 %v4602, %v4824
        %v4909 = vadd.f32 %v4603, %v4827
        %v4910 = vadd.f32 %v4604, %v4832
        %v4911 = vadd.f32 %v4605, %v4835
        %v4912 = vadd.f32 %v4606, %v4840
        %v4913 = vadd.f32 %v4607, %v4843
        %v4914 = vadd.f32 %v4608, %v4848
        %v4915 = vadd.f32 %v4609, %v4851
        %v4916 = vadd.f32 %v4610, %v4856
        %v4917 = vadd.f32 %v4611, %v4859
        %v4918 = vadd.f32 %v4612, %v4864
        %v4919 = vadd.f32 %v4613, %v4867
        %v4920 = vadd.f32 %v4614, %v4872
        %v4921 = vadd.f32 %v4615, %v4875
        %v4922 = vadd.f32 %v4616, %v4880
        %v4923 = vadd.f32 %v4617, %v4883
        %v4924 = vadd.f32 %v4618, %v4888
        %v4925 = vadd.f32 %v4619, %v4891
        %s4926 = scalar_lea.vmem [#allocation3], 48
        %v4927 = vld [vmem:[%s4926] sm:$0xff]
        %v4928 = vld [vmem:[%s4926 + $0x8] sm:$0xff]
        %v4929 = vld [vmem:[%s4926 + $0x18] sm:$0xff]
        %v4930 = vld [vmem:[%s4926 + $0x20] sm:$0xff]
        %v4931 = vld [vmem:[%s4926 + $0x30] sm:$0xff]
        %v4932 = vld [vmem:[%s4926 + $0x38] sm:$0xff]
        %v4933 = vld [vmem:[%s4926 + $0x48] sm:$0xff]
        %v4934 = vld [vmem:[%s4926 + $0x50] sm:$0xff]
        %v4935 = vld [vmem:[%s4926 + $0x60] sm:$0xff]
        %v4936 = vld [vmem:[%s4926 + $0x68] sm:$0xff]
        %v4937 = vld [vmem:[%s4926 + $0x78] sm:$0xff]
        %v4938 = vld [vmem:[%s4926 + $0x80] sm:$0xff]
        %v4939 = vld [vmem:[%s4926 + $0x90] sm:$0xff]
        %v4940 = vld [vmem:[%s4926 + $0x98] sm:$0xff]
        %v4941 = vld [vmem:[%s4926 + $0xa8] sm:$0xff]
        %v4942 = vld [vmem:[%s4926 + $0xb0] sm:$0xff]
        %v4943 = vld [vmem:[%s4926 + $0xc0] sm:$0xff]
        %v4944 = vld [vmem:[%s4926 + $0xc8] sm:$0xff]
        %v4945 = vld [vmem:[%s4926 + $0xd8] sm:$0xff]
        %v4946 = vld [vmem:[%s4926 + $0xe0] sm:$0xff]
        %v4947 = vld [vmem:[%s4926 + $0xf0] sm:$0xff]
        %v4948 = vld [vmem:[%s4926 + $0xf8] sm:$0xff]
        %v4949 = vld [vmem:[%s4926 + $0x108] sm:$0xff]
        %v4950 = vld [vmem:[%s4926 + $0x110] sm:$0xff]
        %v4951 = vld [vmem:[%s4926 + $0x120] sm:$0xff]
        %v4952 = vld [vmem:[%s4926 + $0x128] sm:$0xff]
        %v4953 = vld [vmem:[%s4926 + $0x138] sm:$0xff]
        %v4954 = vld [vmem:[%s4926 + $0x140] sm:$0xff]
        %v4955 = vld [vmem:[%s4926 + $0x150] sm:$0xff]
        %v4956 = vld [vmem:[%s4926 + $0x158] sm:$0xff]
        %v4957 = vld [vmem:[%s4926 + $0x168] sm:$0xff]
        %v4958 = vld [vmem:[%s4926 + $0x170] sm:$0xff]
        %v4959 = vpack.c.bf16 %v4928, %v4927
        %v4960 = vpack.c.bf16 %v4930, %v4929
        %v4961 = vpack.c.bf16 %v4932, %v4931
        %v4962 = vpack.c.bf16 %v4934, %v4933
        %v4963 = vpack.c.bf16 %v4936, %v4935
        %v4964 = vpack.c.bf16 %v4938, %v4937
        %v4965 = vpack.c.bf16 %v4940, %v4939
        %v4966 = vpack.c.bf16 %v4942, %v4941
        %v4967 = vpack.c.bf16 %v4944, %v4943
        %v4968 = vpack.c.bf16 %v4946, %v4945
        %v4969 = vpack.c.bf16 %v4948, %v4947
        %v4970 = vpack.c.bf16 %v4950, %v4949
        %v4971 = vpack.c.bf16 %v4952, %v4951
        %v4972 = vpack.c.bf16 %v4954, %v4953
        %v4973 = vpack.c.bf16 %v4956, %v4955
        %v4974 = vpack.c.bf16 %v4958, %v4957
        %s4975 = scalar_lea.vmem %s3, 96
        %v4976 = vld [vmem:[%s4975] sm:$0xf]
        %v4977 = vld [vmem:[%s4975 + $0x4] sm:$0xf]
        %v4978 = vld [vmem:[%s4975 + $0x8] sm:$0xf]
        %v4979 = vld [vmem:[%s4975 + $0xc] sm:$0xf]
        %v4984 = vunpack.c.l.b16 %v4976
        %v4985 = vunpack.c.l.b16 %v4977
        %v4986 = vunpack.c.l.b16 %v4978
        %v4987 = vunpack.c.l.b16 %v4979
        %v4988 = vpack.c.b16 %v4985, %v4984
        %v4989 = vpack.c.b16 %v4987, %v4986
        %v4993 = vsel %vm3066, %v4959, 0
        %v4996 = vsel %vm3066, %v4960, 0
        %v4999 = vsel %vm3066, %v4961, 0
        %v5002 = vsel %vm3066, %v4962, 0
        %v5005 = vsel %vm3066, %v4963, 0
        %v5008 = vsel %vm3066, %v4964, 0
        %v5011 = vsel %vm3066, %v4965, 0
        %v5014 = vsel %vm3066, %v4966, 0
        %v5017 = vsel %vm3066, %v4967, 0
        %v5020 = vsel %vm3066, %v4968, 0
        %v5023 = vsel %vm3066, %v4969, 0
        %v5026 = vsel %vm3066, %v4970, 0
        %v5029 = vsel %vm3066, %v4971, 0
        %v5032 = vsel %vm3066, %v4972, 0
        %v5035 = vsel %vm3066, %v4973, 0
        %v5038 = vsel %vm3066, %v4974, 0
        %5040 = vmatprep.subr.bf16.mxu0 0
        %5041 = vmatpush1.bf16.msra.mxu0 0
        %5042 = vmatprep.subr.bf16.mxu0 0
        %5043 = vmatpush1.bf16.msra.mxu0 0
        %5044 = vmatprep.subr.bf16.mxu0 0
        %5045 = vmatpush1.bf16.msra.mxu0 0
        %5046 = vmatprep.subr.bf16.mxu0 0
        %5047 = vmatpush1.bf16.msra.mxu0 0
        %5048 = vmatprep.subr.bf16.mxu0 0
        %5049 = vmatpush1.bf16.msra.mxu0 0
        %5050 = vmatprep.subr.bf16.mxu0 0
        %5051 = vmatpush1.bf16.msra.mxu0 0
        %5052 = vmatprep.subr.bf16.mxu0 0
        %5053 = vmatpush1.bf16.msra.mxu0 %v4989
        %5054 = vmatprep.subr.bf16.mxu0 0
        %5055 = vmatpush1.bf16.msra.mxu0 %v4988
        %5056 = vmatprep.subr.bf16.mxu0 0
        %5057 = vmatpush2.bf16.msra.mxu0 0
        %5058 = vmatprep.subr.bf16.mxu0 0
        %5059 = vmatpush2.bf16.msra.mxu0 0
        %5060 = vmatprep.subr.bf16.mxu0 0
        %5061 = vmatpush2.bf16.msra.mxu0 0
        %5062 = vmatprep.subr.bf16.mxu0 0
        %5063 = vmatpush2.bf16.msra.mxu0 0
        %5064 = vmatprep.subr.bf16.mxu0 0
        %5065 = vmatpush2.bf16.msra.mxu0 0
        %5066 = vmatprep.subr.bf16.mxu0 0
        %5067 = vmatpush2.bf16.msra.mxu0 0
        %5068 = vmatprep.subr.bf16.mxu0 0
        %5069 = vmatpush2.bf16.msra.mxu0 0
        %5070 = vmatprep.subr.bf16.mxu0 0
        %5071 = vmatpush2.bf16.msra.mxu0 0
        %5072 = vmatprep.mubr.bf16.mxu0 0
        %5073 = vmatmul.mubr.bf16.gmra.mxu0 %v4993
        %v5074 = vpop.f32.mrf.mxu0
        %v5075 = vadd.f32 0.0, %v5074
        %v5076 = vpop.f32.mrf.mxu0
        %v5077 = vpop.f32.mrf.mxu0
        %v5078 = vadd.f32 0.0, %v5077
        %v5079 = vpop.f32.mrf.mxu0
        %5080 = vmatprep.mubr.bf16.mxu0 0
        %5081 = vmatmul.mubr.bf16.gmra.mxu0 %v4996
        %v5082 = vpop.f32.mrf.mxu0
        %v5083 = vadd.f32 0.0, %v5082
        %v5084 = vpop.f32.mrf.mxu0
        %v5085 = vpop.f32.mrf.mxu0
        %v5086 = vadd.f32 0.0, %v5085
        %v5087 = vpop.f32.mrf.mxu0
        %5088 = vmatprep.mubr.bf16.mxu0 0
        %5089 = vmatmul.mubr.bf16.gmra.mxu0 %v4999
        %v5090 = vpop.f32.mrf.mxu0
        %v5091 = vadd.f32 0.0, %v5090
        %v5092 = vpop.f32.mrf.mxu0
        %v5093 = vpop.f32.mrf.mxu0
        %v5094 = vadd.f32 0.0, %v5093
        %v5095 = vpop.f32.mrf.mxu0
        %5096 = vmatprep.mubr.bf16.mxu0 0
        %5097 = vmatmul.mubr.bf16.gmra.mxu0 %v5002
        %v5098 = vpop.f32.mrf.mxu0
        %v5099 = vadd.f32 0.0, %v5098
        %v5100 = vpop.f32.mrf.mxu0
        %v5101 = vpop.f32.mrf.mxu0
        %v5102 = vadd.f32 0.0, %v5101
        %v5103 = vpop.f32.mrf.mxu0
        %5104 = vmatprep.mubr.bf16.mxu0 0
        %5105 = vmatmul.mubr.bf16.gmra.mxu0 %v5005
        %v5106 = vpop.f32.mrf.mxu0
        %v5107 = vadd.f32 0.0, %v5106
        %v5108 = vpop.f32.mrf.mxu0
        %v5109 = vpop.f32.mrf.mxu0
        %v5110 = vadd.f32 0.0, %v5109
        %v5111 = vpop.f32.mrf.mxu0
        %5112 = vmatprep.mubr.bf16.mxu0 0
        %5113 = vmatmul.mubr.bf16.gmra.mxu0 %v5008
        %v5114 = vpop.f32.mrf.mxu0
        %v5115 = vadd.f32 0.0, %v5114
        %v5116 = vpop.f32.mrf.mxu0
        %v5117 = vpop.f32.mrf.mxu0
        %v5118 = vadd.f32 0.0, %v5117
        %v5119 = vpop.f32.mrf.mxu0
        %5120 = vmatprep.mubr.bf16.mxu0 0
        %5121 = vmatmul.mubr.bf16.gmra.mxu0 %v5011
        %v5122 = vpop.f32.mrf.mxu0
        %v5123 = vadd.f32 0.0, %v5122
        %v5124 = vpop.f32.mrf.mxu0
        %v5125 = vpop.f32.mrf.mxu0
        %v5126 = vadd.f32 0.0, %v5125
        %v5127 = vpop.f32.mrf.mxu0
        %5128 = vmatprep.mubr.bf16.mxu0 0
        %5129 = vmatmul.mubr.bf16.gmra.mxu0 %v5014
        %v5130 = vpop.f32.mrf.mxu0
        %v5131 = vadd.f32 0.0, %v5130
        %v5132 = vpop.f32.mrf.mxu0
        %v5133 = vpop.f32.mrf.mxu0
        %v5134 = vadd.f32 0.0, %v5133
        %v5135 = vpop.f32.mrf.mxu0
        %5136 = vmatprep.mubr.bf16.mxu0 0
        %5137 = vmatmul.mubr.bf16.gmra.mxu0 %v5017
        %v5138 = vpop.f32.mrf.mxu0
        %v5139 = vadd.f32 0.0, %v5138
        %v5140 = vpop.f32.mrf.mxu0
        %v5141 = vpop.f32.mrf.mxu0
        %v5142 = vadd.f32 0.0, %v5141
        %v5143 = vpop.f32.mrf.mxu0
        %5144 = vmatprep.mubr.bf16.mxu0 0
        %5145 = vmatmul.mubr.bf16.gmra.mxu0 %v5020
        %v5146 = vpop.f32.mrf.mxu0
        %v5147 = vadd.f32 0.0, %v5146
        %v5148 = vpop.f32.mrf.mxu0
        %v5149 = vpop.f32.mrf.mxu0
        %v5150 = vadd.f32 0.0, %v5149
        %v5151 = vpop.f32.mrf.mxu0
        %5152 = vmatprep.mubr.bf16.mxu0 0
        %5153 = vmatmul.mubr.bf16.gmra.mxu0 %v5023
        %v5154 = vpop.f32.mrf.mxu0
        %v5155 = vadd.f32 0.0, %v5154
        %v5156 = vpop.f32.mrf.mxu0
        %v5157 = vpop.f32.mrf.mxu0
        %v5158 = vadd.f32 0.0, %v5157
        %v5159 = vpop.f32.mrf.mxu0
        %5160 = vmatprep.mubr.bf16.mxu0 0
        %5161 = vmatmul.mubr.bf16.gmra.mxu0 %v5026
        %v5162 = vpop.f32.mrf.mxu0
        %v5163 = vadd.f32 0.0, %v5162
        %v5164 = vpop.f32.mrf.mxu0
        %v5165 = vpop.f32.mrf.mxu0
        %v5166 = vadd.f32 0.0, %v5165
        %v5167 = vpop.f32.mrf.mxu0
        %5168 = vmatprep.mubr.bf16.mxu0 0
        %5169 = vmatmul.mubr.bf16.gmra.mxu0 %v5029
        %v5170 = vpop.f32.mrf.mxu0
        %v5171 = vadd.f32 0.0, %v5170
        %v5172 = vpop.f32.mrf.mxu0
        %v5173 = vpop.f32.mrf.mxu0
        %v5174 = vadd.f32 0.0, %v5173
        %v5175 = vpop.f32.mrf.mxu0
        %5176 = vmatprep.mubr.bf16.mxu0 0
        %5177 = vmatmul.mubr.bf16.gmra.mxu0 %v5032
        %v5178 = vpop.f32.mrf.mxu0
        %v5179 = vadd.f32 0.0, %v5178
        %v5180 = vpop.f32.mrf.mxu0
        %v5181 = vpop.f32.mrf.mxu0
        %v5182 = vadd.f32 0.0, %v5181
        %v5183 = vpop.f32.mrf.mxu0
        %5184 = vmatprep.mubr.bf16.mxu0 0
        %5185 = vmatmul.mubr.bf16.gmra.mxu0 %v5035
        %v5186 = vpop.f32.mrf.mxu0
        %v5187 = vadd.f32 0.0, %v5186
        %v5188 = vpop.f32.mrf.mxu0
        %v5189 = vpop.f32.mrf.mxu0
        %v5190 = vadd.f32 0.0, %v5189
        %v5191 = vpop.f32.mrf.mxu0
        %5192 = vmatprep.mubr.bf16.mxu0 0
        %5193 = vmatmul.mubr.bf16.gmra.mxu0 %v5038
        %v5194 = vpop.f32.mrf.mxu0
        %v5195 = vadd.f32 0.0, %v5194
        %v5196 = vpop.f32.mrf.mxu0
        %v5197 = vpop.f32.mrf.mxu0
        %v5198 = vadd.f32 0.0, %v5197
        %v5199 = vpop.f32.mrf.mxu0
        %5200 = vdwg.mxu0
        %v5201 = vadd.f32 %v4894, %v5075
        %v5202 = vadd.f32 %v4895, %v5078
        %v5203 = vadd.f32 %v4896, %v5083
        %v5204 = vadd.f32 %v4897, %v5086
        %v5205 = vadd.f32 %v4898, %v5091
        %v5206 = vadd.f32 %v4899, %v5094
        %v5207 = vadd.f32 %v4900, %v5099
        %v5208 = vadd.f32 %v4901, %v5102
        %v5209 = vadd.f32 %v4902, %v5107
        %v5210 = vadd.f32 %v4903, %v5110
        %v5211 = vadd.f32 %v4904, %v5115
        %v5212 = vadd.f32 %v4905, %v5118
        %v5213 = vadd.f32 %v4906, %v5123
        %v5214 = vadd.f32 %v4907, %v5126
        %v5215 = vadd.f32 %v4908, %v5131
        %v5216 = vadd.f32 %v4909, %v5134
        %v5217 = vadd.f32 %v4910, %v5139
        %v5218 = vadd.f32 %v4911, %v5142
        %v5219 = vadd.f32 %v4912, %v5147
        %v5220 = vadd.f32 %v4913, %v5150
        %v5221 = vadd.f32 %v4914, %v5155
        %v5222 = vadd.f32 %v4915, %v5158
        %v5223 = vadd.f32 %v4916, %v5163
        %v5224 = vadd.f32 %v4917, %v5166
        %v5225 = vadd.f32 %v4918, %v5171
        %v5226 = vadd.f32 %v4919, %v5174
        %v5227 = vadd.f32 %v4920, %v5179
        %v5228 = vadd.f32 %v4921, %v5182
        %v5229 = vadd.f32 %v4922, %v5187
        %v5230 = vadd.f32 %v4923, %v5190
        %v5231 = vadd.f32 %v4924, %v5195
        %v5232 = vadd.f32 %v4925, %v5198
        %v5233 = vld [vmem:[%s4926 + $0x1] sm:$0xff]
        %v5234 = vld [vmem:[%s4926 + $0x9] sm:$0xff]
        %v5235 = vld [vmem:[%s4926 + $0x19] sm:$0xff]
        %v5236 = vld [vmem:[%s4926 + $0x21] sm:$0xff]
        %v5237 = vld [vmem:[%s4926 + $0x31] sm:$0xff]
        %v5238 = vld [vmem:[%s4926 + $0x39] sm:$0xff]
        %v5239 = vld [vmem:[%s4926 + $0x49] sm:$0xff]
        %v5240 = vld [vmem:[%s4926 + $0x51] sm:$0xff]
        %v5241 = vld [vmem:[%s4926 + $0x61] sm:$0xff]
        %v5242 = vld [vmem:[%s4926 + $0x69] sm:$0xff]
        %v5243 = vld [vmem:[%s4926 + $0x79] sm:$0xff]
        %v5244 = vld [vmem:[%s4926 + $0x81] sm:$0xff]
        %v5245 = vld [vmem:[%s4926 + $0x91] sm:$0xff]
        %v5246 = vld [vmem:[%s4926 + $0x99] sm:$0xff]
        %v5247 = vld [vmem:[%s4926 + $0xa9] sm:$0xff]
        %v5248 = vld [vmem:[%s4926 + $0xb1] sm:$0xff]
        %v5249 = vld [vmem:[%s4926 + $0xc1] sm:$0xff]
        %v5250 = vld [vmem:[%s4926 + $0xc9] sm:$0xff]
        %v5251 = vld [vmem:[%s4926 + $0xd9] sm:$0xff]
        %v5252 = vld [vmem:[%s4926 + $0xe1] sm:$0xff]
        %v5253 = vld [vmem:[%s4926 + $0xf1] sm:$0xff]
        %v5254 = vld [vmem:[%s4926 + $0xf9] sm:$0xff]
        %v5255 = vld [vmem:[%s4926 + $0x109] sm:$0xff]
        %v5256 = vld [vmem:[%s4926 + $0x111] sm:$0xff]
        %v5257 = vld [vmem:[%s4926 + $0x121] sm:$0xff]
        %v5258 = vld [vmem:[%s4926 + $0x129] sm:$0xff]
        %v5259 = vld [vmem:[%s4926 + $0x139] sm:$0xff]
        %v5260 = vld [vmem:[%s4926 + $0x141] sm:$0xff]
        %v5261 = vld [vmem:[%s4926 + $0x151] sm:$0xff]
        %v5262 = vld [vmem:[%s4926 + $0x159] sm:$0xff]
        %v5263 = vld [vmem:[%s4926 + $0x169] sm:$0xff]
        %v5264 = vld [vmem:[%s4926 + $0x171] sm:$0xff]
        %v5265 = vpack.c.bf16 %v5234, %v5233
        %v5266 = vpack.c.bf16 %v5236, %v5235
        %v5267 = vpack.c.bf16 %v5238, %v5237
        %v5268 = vpack.c.bf16 %v5240, %v5239
        %v5269 = vpack.c.bf16 %v5242, %v5241
        %v5270 = vpack.c.bf16 %v5244, %v5243
        %v5271 = vpack.c.bf16 %v5246, %v5245
        %v5272 = vpack.c.bf16 %v5248, %v5247
        %v5273 = vpack.c.bf16 %v5250, %v5249
        %v5274 = vpack.c.bf16 %v5252, %v5251
        %v5275 = vpack.c.bf16 %v5254, %v5253
        %v5276 = vpack.c.bf16 %v5256, %v5255
        %v5277 = vpack.c.bf16 %v5258, %v5257
        %v5278 = vpack.c.bf16 %v5260, %v5259
        %v5279 = vpack.c.bf16 %v5262, %v5261
        %v5280 = vpack.c.bf16 %v5264, %v5263
        %s5281 = scalar_lea.vmem %s3, 112
        %v5282 = vld [vmem:[%s5281] sm:$0xf]
        %v5283 = vld [vmem:[%s5281 + $0x4] sm:$0xf]
        %v5284 = vld [vmem:[%s5281 + $0x8] sm:$0xf]
        %v5285 = vld [vmem:[%s5281 + $0xc] sm:$0xf]
        %v5290 = vunpack.c.l.b16 %v5282
        %v5291 = vunpack.c.l.b16 %v5283
        %v5292 = vunpack.c.l.b16 %v5284
        %v5293 = vunpack.c.l.b16 %v5285
        %v5294 = vpack.c.b16 %v5291, %v5290
        %v5295 = vpack.c.b16 %v5293, %v5292
        %v5299 = vsel %vm3066, %v5265, 0
        %v5302 = vsel %vm3066, %v5266, 0
        %v5305 = vsel %vm3066, %v5267, 0
        %v5308 = vsel %vm3066, %v5268, 0
        %v5311 = vsel %vm3066, %v5269, 0
        %v5314 = vsel %vm3066, %v5270, 0
        %v5317 = vsel %vm3066, %v5271, 0
        %v5320 = vsel %vm3066, %v5272, 0
        %v5323 = vsel %vm3066, %v5273, 0
        %v5326 = vsel %vm3066, %v5274, 0
        %v5329 = vsel %vm3066, %v5275, 0
        %v5332 = vsel %vm3066, %v5276, 0
        %v5335 = vsel %vm3066, %v5277, 0
        %v5338 = vsel %vm3066, %v5278, 0
        %v5341 = vsel %vm3066, %v5279, 0
        %v5344 = vsel %vm3066, %v5280, 0
        %5346 = vmatprep.subr.bf16.mxu0 0
        %5347 = vmatpush1.bf16.msra.mxu0 0
        %5348 = vmatprep.subr.bf16.mxu0 0
        %5349 = vmatpush1.bf16.msra.mxu0 0
        %5350 = vmatprep.subr.bf16.mxu0 0
        %5351 = vmatpush1.bf16.msra.mxu0 0
        %5352 = vmatprep.subr.bf16.mxu0 0
        %5353 = vmatpush1.bf16.msra.mxu0 0
        %5354 = vmatprep.subr.bf16.mxu0 0
        %5355 = vmatpush1.bf16.msra.mxu0 0
        %5356 = vmatprep.subr.bf16.mxu0 0
        %5357 = vmatpush1.bf16.msra.mxu0 0
        %5358 = vmatprep.subr.bf16.mxu0 0
        %5359 = vmatpush1.bf16.msra.mxu0 %v5295
        %5360 = vmatprep.subr.bf16.mxu0 0
        %5361 = vmatpush1.bf16.msra.mxu0 %v5294
        %5362 = vmatprep.subr.bf16.mxu0 0
        %5363 = vmatpush2.bf16.msra.mxu0 0
        %5364 = vmatprep.subr.bf16.mxu0 0
        %5365 = vmatpush2.bf16.msra.mxu0 0
        %5366 = vmatprep.subr.bf16.mxu0 0
        %5367 = vmatpush2.bf16.msra.mxu0 0
        %5368 = vmatprep.subr.bf16.mxu0 0
        %5369 = vmatpush2.bf16.msra.mxu0 0
        %5370 = vmatprep.subr.bf16.mxu0 0
        %5371 = vmatpush2.bf16.msra.mxu0 0
        %5372 = vmatprep.subr.bf16.mxu0 0
        %5373 = vmatpush2.bf16.msra.mxu0 0
        %5374 = vmatprep.subr.bf16.mxu0 0
        %5375 = vmatpush2.bf16.msra.mxu0 0
        %5376 = vmatprep.subr.bf16.mxu0 0
        %5377 = vmatpush2.bf16.msra.mxu0 0
        %5378 = vmatprep.mubr.bf16.mxu0 0
        %5379 = vmatmul.mubr.bf16.gmra.mxu0 %v5299
        %v5380 = vpop.f32.mrf.mxu0
        %v5381 = vadd.f32 0.0, %v5380
        %v5382 = vpop.f32.mrf.mxu0
        %v5383 = vpop.f32.mrf.mxu0
        %v5384 = vadd.f32 0.0, %v5383
        %v5385 = vpop.f32.mrf.mxu0
        %5386 = vmatprep.mubr.bf16.mxu0 0
        %5387 = vmatmul.mubr.bf16.gmra.mxu0 %v5302
        %v5388 = vpop.f32.mrf.mxu0
        %v5389 = vadd.f32 0.0, %v5388
        %v5390 = vpop.f32.mrf.mxu0
        %v5391 = vpop.f32.mrf.mxu0
        %v5392 = vadd.f32 0.0, %v5391
        %v5393 = vpop.f32.mrf.mxu0
        %5394 = vmatprep.mubr.bf16.mxu0 0
        %5395 = vmatmul.mubr.bf16.gmra.mxu0 %v5305
        %v5396 = vpop.f32.mrf.mxu0
        %v5397 = vadd.f32 0.0, %v5396
        %v5398 = vpop.f32.mrf.mxu0
        %v5399 = vpop.f32.mrf.mxu0
        %v5400 = vadd.f32 0.0, %v5399
        %v5401 = vpop.f32.mrf.mxu0
        %5402 = vmatprep.mubr.bf16.mxu0 0
        %5403 = vmatmul.mubr.bf16.gmra.mxu0 %v5308
        %v5404 = vpop.f32.mrf.mxu0
        %v5405 = vadd.f32 0.0, %v5404
        %v5406 = vpop.f32.mrf.mxu0
        %v5407 = vpop.f32.mrf.mxu0
        %v5408 = vadd.f32 0.0, %v5407
        %v5409 = vpop.f32.mrf.mxu0
        %5410 = vmatprep.mubr.bf16.mxu0 0
        %5411 = vmatmul.mubr.bf16.gmra.mxu0 %v5311
        %v5412 = vpop.f32.mrf.mxu0
        %v5413 = vadd.f32 0.0, %v5412
        %v5414 = vpop.f32.mrf.mxu0
        %v5415 = vpop.f32.mrf.mxu0
        %v5416 = vadd.f32 0.0, %v5415
        %v5417 = vpop.f32.mrf.mxu0
        %5418 = vmatprep.mubr.bf16.mxu0 0
        %5419 = vmatmul.mubr.bf16.gmra.mxu0 %v5314
        %v5420 = vpop.f32.mrf.mxu0
        %v5421 = vadd.f32 0.0, %v5420
        %v5422 = vpop.f32.mrf.mxu0
        %v5423 = vpop.f32.mrf.mxu0
        %v5424 = vadd.f32 0.0, %v5423
        %v5425 = vpop.f32.mrf.mxu0
        %5426 = vmatprep.mubr.bf16.mxu0 0
        %5427 = vmatmul.mubr.bf16.gmra.mxu0 %v5317
        %v5428 = vpop.f32.mrf.mxu0
        %v5429 = vadd.f32 0.0, %v5428
        %v5430 = vpop.f32.mrf.mxu0
        %v5431 = vpop.f32.mrf.mxu0
        %v5432 = vadd.f32 0.0, %v5431
        %v5433 = vpop.f32.mrf.mxu0
        %5434 = vmatprep.mubr.bf16.mxu0 0
        %5435 = vmatmul.mubr.bf16.gmra.mxu0 %v5320
        %v5436 = vpop.f32.mrf.mxu0
        %v5437 = vadd.f32 0.0, %v5436
        %v5438 = vpop.f32.mrf.mxu0
        %v5439 = vpop.f32.mrf.mxu0
        %v5440 = vadd.f32 0.0, %v5439
        %v5441 = vpop.f32.mrf.mxu0
        %5442 = vmatprep.mubr.bf16.mxu0 0
        %5443 = vmatmul.mubr.bf16.gmra.mxu0 %v5323
        %v5444 = vpop.f32.mrf.mxu0
        %v5445 = vadd.f32 0.0, %v5444
        %v5446 = vpop.f32.mrf.mxu0
        %v5447 = vpop.f32.mrf.mxu0
        %v5448 = vadd.f32 0.0, %v5447
        %v5449 = vpop.f32.mrf.mxu0
        %5450 = vmatprep.mubr.bf16.mxu0 0
        %5451 = vmatmul.mubr.bf16.gmra.mxu0 %v5326
        %v5452 = vpop.f32.mrf.mxu0
        %v5453 = vadd.f32 0.0, %v5452
        %v5454 = vpop.f32.mrf.mxu0
        %v5455 = vpop.f32.mrf.mxu0
        %v5456 = vadd.f32 0.0, %v5455
        %v5457 = vpop.f32.mrf.mxu0
        %5458 = vmatprep.mubr.bf16.mxu0 0
        %5459 = vmatmul.mubr.bf16.gmra.mxu0 %v5329
        %v5460 = vpop.f32.mrf.mxu0
        %v5461 = vadd.f32 0.0, %v5460
        %v5462 = vpop.f32.mrf.mxu0
        %v5463 = vpop.f32.mrf.mxu0
        %v5464 = vadd.f32 0.0, %v5463
        %v5465 = vpop.f32.mrf.mxu0
        %5466 = vmatprep.mubr.bf16.mxu0 0
        %5467 = vmatmul.mubr.bf16.gmra.mxu0 %v5332
        %v5468 = vpop.f32.mrf.mxu0
        %v5469 = vadd.f32 0.0, %v5468
        %v5470 = vpop.f32.mrf.mxu0
        %v5471 = vpop.f32.mrf.mxu0
        %v5472 = vadd.f32 0.0, %v5471
        %v5473 = vpop.f32.mrf.mxu0
        %5474 = vmatprep.mubr.bf16.mxu0 0
        %5475 = vmatmul.mubr.bf16.gmra.mxu0 %v5335
        %v5476 = vpop.f32.mrf.mxu0
        %v5477 = vadd.f32 0.0, %v5476
        %v5478 = vpop.f32.mrf.mxu0
        %v5479 = vpop.f32.mrf.mxu0
        %v5480 = vadd.f32 0.0, %v5479
        %v5481 = vpop.f32.mrf.mxu0
        %5482 = vmatprep.mubr.bf16.mxu0 0
        %5483 = vmatmul.mubr.bf16.gmra.mxu0 %v5338
        %v5484 = vpop.f32.mrf.mxu0
        %v5485 = vadd.f32 0.0, %v5484
        %v5486 = vpop.f32.mrf.mxu0
        %v5487 = vpop.f32.mrf.mxu0
        %v5488 = vadd.f32 0.0, %v5487
        %v5489 = vpop.f32.mrf.mxu0
        %5490 = vmatprep.mubr.bf16.mxu0 0
        %5491 = vmatmul.mubr.bf16.gmra.mxu0 %v5341
        %v5492 = vpop.f32.mrf.mxu0
        %v5493 = vadd.f32 0.0, %v5492
        %v5494 = vpop.f32.mrf.mxu0
        %v5495 = vpop.f32.mrf.mxu0
        %v5496 = vadd.f32 0.0, %v5495
        %v5497 = vpop.f32.mrf.mxu0
        %5498 = vmatprep.mubr.bf16.mxu0 0
        %5499 = vmatmul.mubr.bf16.gmra.mxu0 %v5344
        %v5500 = vpop.f32.mrf.mxu0
        %v5501 = vadd.f32 0.0, %v5500
        %v5502 = vpop.f32.mrf.mxu0
        %v5503 = vpop.f32.mrf.mxu0
        %v5504 = vadd.f32 0.0, %v5503
        %v5505 = vpop.f32.mrf.mxu0
        %5506 = vdwg.mxu0
        %v5507 = vadd.f32 %v5201, %v5381
        %v5508 = vadd.f32 %v5202, %v5384
        %v5509 = vadd.f32 %v5203, %v5389
        %v5510 = vadd.f32 %v5204, %v5392
        %v5511 = vadd.f32 %v5205, %v5397
        %v5512 = vadd.f32 %v5206, %v5400
        %v5513 = vadd.f32 %v5207, %v5405
        %v5514 = vadd.f32 %v5208, %v5408
        %v5515 = vadd.f32 %v5209, %v5413
        %v5516 = vadd.f32 %v5210, %v5416
        %v5517 = vadd.f32 %v5211, %v5421
        %v5518 = vadd.f32 %v5212, %v5424
        %v5519 = vadd.f32 %v5213, %v5429
        %v5520 = vadd.f32 %v5214, %v5432
        %v5521 = vadd.f32 %v5215, %v5437
        %v5522 = vadd.f32 %v5216, %v5440
        %v5523 = vadd.f32 %v5217, %v5445
        %v5524 = vadd.f32 %v5218, %v5448
        %v5525 = vadd.f32 %v5219, %v5453
        %v5526 = vadd.f32 %v5220, %v5456
        %v5527 = vadd.f32 %v5221, %v5461
        %v5528 = vadd.f32 %v5222, %v5464
        %v5529 = vadd.f32 %v5223, %v5469
        %v5530 = vadd.f32 %v5224, %v5472
        %v5531 = vadd.f32 %v5225, %v5477
        %v5532 = vadd.f32 %v5226, %v5480
        %v5533 = vadd.f32 %v5227, %v5485
        %v5534 = vadd.f32 %v5228, %v5488
        %v5535 = vadd.f32 %v5229, %v5493
        %v5536 = vadd.f32 %v5230, %v5496
        %v5537 = vadd.f32 %v5231, %v5501
        %v5538 = vadd.f32 %v5232, %v5504
        %v5539 = vld [vmem:[%s4926 + $0x2] sm:$0xff]
        %v5540 = vld [vmem:[%s4926 + $0xa] sm:$0xff]
        %v5541 = vld [vmem:[%s4926 + $0x1a] sm:$0xff]
        %v5542 = vld [vmem:[%s4926 + $0x22] sm:$0xff]
        %v5543 = vld [vmem:[%s4926 + $0x32] sm:$0xff]
        %v5544 = vld [vmem:[%s4926 + $0x3a] sm:$0xff]
        %v5545 = vld [vmem:[%s4926 + $0x4a] sm:$0xff]
        %v5546 = vld [vmem:[%s4926 + $0x52] sm:$0xff]
        %v5547 = vld [vmem:[%s4926 + $0x62] sm:$0xff]
        %v5548 = vld [vmem:[%s4926 + $0x6a] sm:$0xff]
        %v5549 = vld [vmem:[%s4926 + $0x7a] sm:$0xff]
        %v5550 = vld [vmem:[%s4926 + $0x82] sm:$0xff]
        %v5551 = vld [vmem:[%s4926 + $0x92] sm:$0xff]
        %v5552 = vld [vmem:[%s4926 + $0x9a] sm:$0xff]
        %v5553 = vld [vmem:[%s4926 + $0xaa] sm:$0xff]
        %v5554 = vld [vmem:[%s4926 + $0xb2] sm:$0xff]
        %v5555 = vld [vmem:[%s4926 + $0xc2] sm:$0xff]
        %v5556 = vld [vmem:[%s4926 + $0xca] sm:$0xff]
        %v5557 = vld [vmem:[%s4926 + $0xda] sm:$0xff]
        %v5558 = vld [vmem:[%s4926 + $0xe2] sm:$0xff]
        %v5559 = vld [vmem:[%s4926 + $0xf2] sm:$0xff]
        %v5560 = vld [vmem:[%s4926 + $0xfa] sm:$0xff]
        %v5561 = vld [vmem:[%s4926 + $0x10a] sm:$0xff]
        %v5562 = vld [vmem:[%s4926 + $0x112] sm:$0xff]
        %v5563 = vld [vmem:[%s4926 + $0x122] sm:$0xff]
        %v5564 = vld [vmem:[%s4926 + $0x12a] sm:$0xff]
        %v5565 = vld [vmem:[%s4926 + $0x13a] sm:$0xff]
        %v5566 = vld [vmem:[%s4926 + $0x142] sm:$0xff]
        %v5567 = vld [vmem:[%s4926 + $0x152] sm:$0xff]
        %v5568 = vld [vmem:[%s4926 + $0x15a] sm:$0xff]
        %v5569 = vld [vmem:[%s4926 + $0x16a] sm:$0xff]
        %v5570 = vld [vmem:[%s4926 + $0x172] sm:$0xff]
        %v5571 = vpack.c.bf16 %v5540, %v5539
        %v5572 = vpack.c.bf16 %v5542, %v5541
        %v5573 = vpack.c.bf16 %v5544, %v5543
        %v5574 = vpack.c.bf16 %v5546, %v5545
        %v5575 = vpack.c.bf16 %v5548, %v5547
        %v5576 = vpack.c.bf16 %v5550, %v5549
        %v5577 = vpack.c.bf16 %v5552, %v5551
        %v5578 = vpack.c.bf16 %v5554, %v5553
        %v5579 = vpack.c.bf16 %v5556, %v5555
        %v5580 = vpack.c.bf16 %v5558, %v5557
        %v5581 = vpack.c.bf16 %v5560, %v5559
        %v5582 = vpack.c.bf16 %v5562, %v5561
        %v5583 = vpack.c.bf16 %v5564, %v5563
        %v5584 = vpack.c.bf16 %v5566, %v5565
        %v5585 = vpack.c.bf16 %v5568, %v5567
        %v5586 = vpack.c.bf16 %v5570, %v5569
        %s5587 = scalar_lea.vmem %s3, 128
        %v5588 = vld [vmem:[%s5587] sm:$0xf]
        %v5589 = vld [vmem:[%s5587 + $0x4] sm:$0xf]
        %v5590 = vld [vmem:[%s5587 + $0x8] sm:$0xf]
        %v5591 = vld [vmem:[%s5587 + $0xc] sm:$0xf]
        %v5596 = vunpack.c.l.b16 %v5588
        %v5597 = vunpack.c.l.b16 %v5589
        %v5598 = vunpack.c.l.b16 %v5590
        %v5599 = vunpack.c.l.b16 %v5591
        %v5600 = vpack.c.b16 %v5597, %v5596
        %v5601 = vpack.c.b16 %v5599, %v5598
        %v5605 = vsel %vm3066, %v5571, 0
        %v5608 = vsel %vm3066, %v5572, 0
        %v5611 = vsel %vm3066, %v5573, 0
        %v5614 = vsel %vm3066, %v5574, 0
        %v5617 = vsel %vm3066, %v5575, 0
        %v5620 = vsel %vm3066, %v5576, 0
        %v5623 = vsel %vm3066, %v5577, 0
        %v5626 = vsel %vm3066, %v5578, 0
        %v5629 = vsel %vm3066, %v5579, 0
        %v5632 = vsel %vm3066, %v5580, 0
        %v5635 = vsel %vm3066, %v5581, 0
        %v5638 = vsel %vm3066, %v5582, 0
        %v5641 = vsel %vm3066, %v5583, 0
        %v5644 = vsel %vm3066, %v5584, 0
        %v5647 = vsel %vm3066, %v5585, 0
        %v5650 = vsel %vm3066, %v5586, 0
        %5652 = vmatprep.subr.bf16.mxu0 0
        %5653 = vmatpush1.bf16.msra.mxu0 0
        %5654 = vmatprep.subr.bf16.mxu0 0
        %5655 = vmatpush1.bf16.msra.mxu0 0
        %5656 = vmatprep.subr.bf16.mxu0 0
        %5657 = vmatpush1.bf16.msra.mxu0 0
        %5658 = vmatprep.subr.bf16.mxu0 0
        %5659 = vmatpush1.bf16.msra.mxu0 0
        %5660 = vmatprep.subr.bf16.mxu0 0
        %5661 = vmatpush1.bf16.msra.mxu0 0
        %5662 = vmatprep.subr.bf16.mxu0 0
        %5663 = vmatpush1.bf16.msra.mxu0 0
        %5664 = vmatprep.subr.bf16.mxu0 0
        %5665 = vmatpush1.bf16.msra.mxu0 %v5601
        %5666 = vmatprep.subr.bf16.mxu0 0
        %5667 = vmatpush1.bf16.msra.mxu0 %v5600
        %5668 = vmatprep.subr.bf16.mxu0 0
        %5669 = vmatpush2.bf16.msra.mxu0 0
        %5670 = vmatprep.subr.bf16.mxu0 0
        %5671 = vmatpush2.bf16.msra.mxu0 0
        %5672 = vmatprep.subr.bf16.mxu0 0
        %5673 = vmatpush2.bf16.msra.mxu0 0
        %5674 = vmatprep.subr.bf16.mxu0 0
        %5675 = vmatpush2.bf16.msra.mxu0 0
        %5676 = vmatprep.subr.bf16.mxu0 0
        %5677 = vmatpush2.bf16.msra.mxu0 0
        %5678 = vmatprep.subr.bf16.mxu0 0
        %5679 = vmatpush2.bf16.msra.mxu0 0
        %5680 = vmatprep.subr.bf16.mxu0 0
        %5681 = vmatpush2.bf16.msra.mxu0 0
        %5682 = vmatprep.subr.bf16.mxu0 0
        %5683 = vmatpush2.bf16.msra.mxu0 0
        %5684 = vmatprep.mubr.bf16.mxu0 0
        %5685 = vmatmul.mubr.bf16.gmra.mxu0 %v5605
        %v5686 = vpop.f32.mrf.mxu0
        %v5687 = vadd.f32 0.0, %v5686
        %v5688 = vpop.f32.mrf.mxu0
        %v5689 = vpop.f32.mrf.mxu0
        %v5690 = vadd.f32 0.0, %v5689
        %v5691 = vpop.f32.mrf.mxu0
        %5692 = vmatprep.mubr.bf16.mxu0 0
        %5693 = vmatmul.mubr.bf16.gmra.mxu0 %v5608
        %v5694 = vpop.f32.mrf.mxu0
        %v5695 = vadd.f32 0.0, %v5694
        %v5696 = vpop.f32.mrf.mxu0
        %v5697 = vpop.f32.mrf.mxu0
        %v5698 = vadd.f32 0.0, %v5697
        %v5699 = vpop.f32.mrf.mxu0
        %5700 = vmatprep.mubr.bf16.mxu0 0
        %5701 = vmatmul.mubr.bf16.gmra.mxu0 %v5611
        %v5702 = vpop.f32.mrf.mxu0
        %v5703 = vadd.f32 0.0, %v5702
        %v5704 = vpop.f32.mrf.mxu0
        %v5705 = vpop.f32.mrf.mxu0
        %v5706 = vadd.f32 0.0, %v5705
        %v5707 = vpop.f32.mrf.mxu0
        %5708 = vmatprep.mubr.bf16.mxu0 0
        %5709 = vmatmul.mubr.bf16.gmra.mxu0 %v5614
        %v5710 = vpop.f32.mrf.mxu0
        %v5711 = vadd.f32 0.0, %v5710
        %v5712 = vpop.f32.mrf.mxu0
        %v5713 = vpop.f32.mrf.mxu0
        %v5714 = vadd.f32 0.0, %v5713
        %v5715 = vpop.f32.mrf.mxu0
        %5716 = vmatprep.mubr.bf16.mxu0 0
        %5717 = vmatmul.mubr.bf16.gmra.mxu0 %v5617
        %v5718 = vpop.f32.mrf.mxu0
        %v5719 = vadd.f32 0.0, %v5718
        %v5720 = vpop.f32.mrf.mxu0
        %v5721 = vpop.f32.mrf.mxu0
        %v5722 = vadd.f32 0.0, %v5721
        %v5723 = vpop.f32.mrf.mxu0
        %5724 = vmatprep.mubr.bf16.mxu0 0
        %5725 = vmatmul.mubr.bf16.gmra.mxu0 %v5620
        %v5726 = vpop.f32.mrf.mxu0
        %v5727 = vadd.f32 0.0, %v5726
        %v5728 = vpop.f32.mrf.mxu0
        %v5729 = vpop.f32.mrf.mxu0
        %v5730 = vadd.f32 0.0, %v5729
        %v5731 = vpop.f32.mrf.mxu0
        %5732 = vmatprep.mubr.bf16.mxu0 0
        %5733 = vmatmul.mubr.bf16.gmra.mxu0 %v5623
        %v5734 = vpop.f32.mrf.mxu0
        %v5735 = vadd.f32 0.0, %v5734
        %v5736 = vpop.f32.mrf.mxu0
        %v5737 = vpop.f32.mrf.mxu0
        %v5738 = vadd.f32 0.0, %v5737
        %v5739 = vpop.f32.mrf.mxu0
        %5740 = vmatprep.mubr.bf16.mxu0 0
        %5741 = vmatmul.mubr.bf16.gmra.mxu0 %v5626
        %v5742 = vpop.f32.mrf.mxu0
        %v5743 = vadd.f32 0.0, %v5742
        %v5744 = vpop.f32.mrf.mxu0
        %v5745 = vpop.f32.mrf.mxu0
        %v5746 = vadd.f32 0.0, %v5745
        %v5747 = vpop.f32.mrf.mxu0
        %5748 = vmatprep.mubr.bf16.mxu0 0
        %5749 = vmatmul.mubr.bf16.gmra.mxu0 %v5629
        %v5750 = vpop.f32.mrf.mxu0
        %v5751 = vadd.f32 0.0, %v5750
        %v5752 = vpop.f32.mrf.mxu0
        %v5753 = vpop.f32.mrf.mxu0
        %v5754 = vadd.f32 0.0, %v5753
        %v5755 = vpop.f32.mrf.mxu0
        %5756 = vmatprep.mubr.bf16.mxu0 0
        %5757 = vmatmul.mubr.bf16.gmra.mxu0 %v5632
        %v5758 = vpop.f32.mrf.mxu0
        %v5759 = vadd.f32 0.0, %v5758
        %v5760 = vpop.f32.mrf.mxu0
        %v5761 = vpop.f32.mrf.mxu0
        %v5762 = vadd.f32 0.0, %v5761
        %v5763 = vpop.f32.mrf.mxu0
        %5764 = vmatprep.mubr.bf16.mxu0 0
        %5765 = vmatmul.mubr.bf16.gmra.mxu0 %v5635
        %v5766 = vpop.f32.mrf.mxu0
        %v5767 = vadd.f32 0.0, %v5766
        %v5768 = vpop.f32.mrf.mxu0
        %v5769 = vpop.f32.mrf.mxu0
        %v5770 = vadd.f32 0.0, %v5769
        %v5771 = vpop.f32.mrf.mxu0
        %5772 = vmatprep.mubr.bf16.mxu0 0
        %5773 = vmatmul.mubr.bf16.gmra.mxu0 %v5638
        %v5774 = vpop.f32.mrf.mxu0
        %v5775 = vadd.f32 0.0, %v5774
        %v5776 = vpop.f32.mrf.mxu0
        %v5777 = vpop.f32.mrf.mxu0
        %v5778 = vadd.f32 0.0, %v5777
        %v5779 = vpop.f32.mrf.mxu0
        %5780 = vmatprep.mubr.bf16.mxu0 0
        %5781 = vmatmul.mubr.bf16.gmra.mxu0 %v5641
        %v5782 = vpop.f32.mrf.mxu0
        %v5783 = vadd.f32 0.0, %v5782
        %v5784 = vpop.f32.mrf.mxu0
        %v5785 = vpop.f32.mrf.mxu0
        %v5786 = vadd.f32 0.0, %v5785
        %v5787 = vpop.f32.mrf.mxu0
        %5788 = vmatprep.mubr.bf16.mxu0 0
        %5789 = vmatmul.mubr.bf16.gmra.mxu0 %v5644
        %v5790 = vpop.f32.mrf.mxu0
        %v5791 = vadd.f32 0.0, %v5790
        %v5792 = vpop.f32.mrf.mxu0
        %v5793 = vpop.f32.mrf.mxu0
        %v5794 = vadd.f32 0.0, %v5793
        %v5795 = vpop.f32.mrf.mxu0
        %5796 = vmatprep.mubr.bf16.mxu0 0
        %5797 = vmatmul.mubr.bf16.gmra.mxu0 %v5647
        %v5798 = vpop.f32.mrf.mxu0
        %v5799 = vadd.f32 0.0, %v5798
        %v5800 = vpop.f32.mrf.mxu0
        %v5801 = vpop.f32.mrf.mxu0
        %v5802 = vadd.f32 0.0, %v5801
        %v5803 = vpop.f32.mrf.mxu0
        %5804 = vmatprep.mubr.bf16.mxu0 0
        %5805 = vmatmul.mubr.bf16.gmra.mxu0 %v5650
        %v5806 = vpop.f32.mrf.mxu0
        %v5807 = vadd.f32 0.0, %v5806
        %v5808 = vpop.f32.mrf.mxu0
        %v5809 = vpop.f32.mrf.mxu0
        %v5810 = vadd.f32 0.0, %v5809
        %v5811 = vpop.f32.mrf.mxu0
        %5812 = vdwg.mxu0
        %v5813 = vadd.f32 %v5507, %v5687
        %v5814 = vadd.f32 %v5508, %v5690
        %v5815 = vadd.f32 %v5509, %v5695
        %v5816 = vadd.f32 %v5510, %v5698
        %v5817 = vadd.f32 %v5511, %v5703
        %v5818 = vadd.f32 %v5512, %v5706
        %v5819 = vadd.f32 %v5513, %v5711
        %v5820 = vadd.f32 %v5514, %v5714
        %v5821 = vadd.f32 %v5515, %v5719
        %v5822 = vadd.f32 %v5516, %v5722
        %v5823 = vadd.f32 %v5517, %v5727
        %v5824 = vadd.f32 %v5518, %v5730
        %v5825 = vadd.f32 %v5519, %v5735
        %v5826 = vadd.f32 %v5520, %v5738
        %v5827 = vadd.f32 %v5521, %v5743
        %v5828 = vadd.f32 %v5522, %v5746
        %v5829 = vadd.f32 %v5523, %v5751
        %v5830 = vadd.f32 %v5524, %v5754
        %v5831 = vadd.f32 %v5525, %v5759
        %v5832 = vadd.f32 %v5526, %v5762
        %v5833 = vadd.f32 %v5527, %v5767
        %v5834 = vadd.f32 %v5528, %v5770
        %v5835 = vadd.f32 %v5529, %v5775
        %v5836 = vadd.f32 %v5530, %v5778
        %v5837 = vadd.f32 %v5531, %v5783
        %v5838 = vadd.f32 %v5532, %v5786
        %v5839 = vadd.f32 %v5533, %v5791
        %v5840 = vadd.f32 %v5534, %v5794
        %v5841 = vadd.f32 %v5535, %v5799
        %v5842 = vadd.f32 %v5536, %v5802
        %v5843 = vadd.f32 %v5537, %v5807
        %v5844 = vadd.f32 %v5538, %v5810
        %v5845 = vld [vmem:[%s4] sm:$0x1]
        %v5847 = vlaneseq
        %v5848 = vshrl.u32 %v5847, 7
        %v5849 = vsub.s32 0, %v5848
        %v5850 = vrot.slane %v5845, %v5849
        %v5852 = vadd.f32 %v5813, %v5850
        %v5853 = vadd.f32 %v5814, %v5850
        %v5854 = vadd.f32 %v5815, %v5850
        %v5855 = vadd.f32 %v5816, %v5850
        %v5856 = vadd.f32 %v5817, %v5850
        %v5857 = vadd.f32 %v5818, %v5850
        %v5858 = vadd.f32 %v5819, %v5850
        %v5859 = vadd.f32 %v5820, %v5850
        %v5860 = vadd.f32 %v5821, %v5850
        %v5861 = vadd.f32 %v5822, %v5850
        %v5862 = vadd.f32 %v5823, %v5850
        %v5863 = vadd.f32 %v5824, %v5850
        %v5864 = vadd.f32 %v5825, %v5850
        %v5865 = vadd.f32 %v5826, %v5850
        %v5866 = vadd.f32 %v5827, %v5850
        %v5867 = vadd.f32 %v5828, %v5850
        %v5868 = vadd.f32 %v5829, %v5850
        %v5869 = vadd.f32 %v5830, %v5850
        %v5870 = vadd.f32 %v5831, %v5850
        %v5871 = vadd.f32 %v5832, %v5850
        %v5872 = vadd.f32 %v5833, %v5850
        %v5873 = vadd.f32 %v5834, %v5850
        %v5874 = vadd.f32 %v5835, %v5850
        %v5875 = vadd.f32 %v5836, %v5850
        %v5876 = vadd.f32 %v5837, %v5850
        %v5877 = vadd.f32 %v5838, %v5850
        %v5878 = vadd.f32 %v5839, %v5850
        %v5879 = vadd.f32 %v5840, %v5850
        %v5880 = vadd.f32 %v5841, %v5850
        %v5881 = vadd.f32 %v5842, %v5850
        %v5882 = vadd.f32 %v5843, %v5850
        %v5883 = vadd.f32 %v5844, %v5850
        %v5884 = vmax.f32 %v5852, 0.0
        %v5885 = vmax.f32 %v5853, 0.0
        %v5886 = vmax.f32 %v5854, 0.0
        %v5887 = vmax.f32 %v5855, 0.0
        %v5888 = vmax.f32 %v5856, 0.0
        %v5889 = vmax.f32 %v5857, 0.0
        %v5890 = vmax.f32 %v5858, 0.0
        %v5891 = vmax.f32 %v5859, 0.0
        %v5892 = vmax.f32 %v5860, 0.0
        %v5893 = vmax.f32 %v5861, 0.0
        %v5894 = vmax.f32 %v5862, 0.0
        %v5895 = vmax.f32 %v5863, 0.0
        %v5896 = vmax.f32 %v5864, 0.0
        %v5897 = vmax.f32 %v5865, 0.0
        %v5898 = vmax.f32 %v5866, 0.0
        %v5899 = vmax.f32 %v5867, 0.0
        %v5900 = vmax.f32 %v5868, 0.0
        %v5901 = vmax.f32 %v5869, 0.0
        %v5902 = vmax.f32 %v5870, 0.0
        %v5903 = vmax.f32 %v5871, 0.0
        %v5904 = vmax.f32 %v5872, 0.0
        %v5905 = vmax.f32 %v5873, 0.0
        %v5906 = vmax.f32 %v5874, 0.0
        %v5907 = vmax.f32 %v5875, 0.0
        %v5908 = vmax.f32 %v5876, 0.0
        %v5909 = vmax.f32 %v5877, 0.0
        %v5910 = vmax.f32 %v5878, 0.0
        %v5911 = vmax.f32 %v5879, 0.0
        %v5912 = vmax.f32 %v5880, 0.0
        %v5913 = vmax.f32 %v5881, 0.0
        %v5914 = vmax.f32 %v5882, 0.0
        %v5915 = vmax.f32 %v5883, 0.0
        %5916 = vst.msk [vmem:[%s217] sm:$0xff] %vm3066, %v5884
        %5917 = vst.msk [vmem:[%s217 + $0x8] sm:$0xff] %vm3066, %v5885
        %5918 = vst.msk [vmem:[%s217 + $0x10] sm:$0xff] %vm3066, %v5886
        %5919 = vst.msk [vmem:[%s217 + $0x18] sm:$0xff] %vm3066, %v5887
        %5920 = vst.msk [vmem:[%s217 + $0x20] sm:$0xff] %vm3066, %v5888
        %5921 = vst.msk [vmem:[%s217 + $0x28] sm:$0xff] %vm3066, %v5889
        %5922 = vst.msk [vmem:[%s217 + $0x30] sm:$0xff] %vm3066, %v5890
        %5923 = vst.msk [vmem:[%s217 + $0x38] sm:$0xff] %vm3066, %v5891
        %5924 = vst.msk [vmem:[%s217 + $0x40] sm:$0xff] %vm3066, %v5892
        %5925 = vst.msk [vmem:[%s217 + $0x48] sm:$0xff] %vm3066, %v5893
        %5926 = vst.msk [vmem:[%s217 + $0x50] sm:$0xff] %vm3066, %v5894
        %5927 = vst.msk [vmem:[%s217 + $0x58] sm:$0xff] %vm3066, %v5895
        %5928 = vst.msk [vmem:[%s217 + $0x60] sm:$0xff] %vm3066, %v5896
        %5929 = vst.msk [vmem:[%s217 + $0x68] sm:$0xff] %vm3066, %v5897
        %5930 = vst.msk [vmem:[%s217 + $0x70] sm:$0xff] %vm3066, %v5898
        %5931 = vst.msk [vmem:[%s217 + $0x78] sm:$0xff] %vm3066, %v5899
        %5932 = vst.msk [vmem:[%s217 + $0x80] sm:$0xff] %vm3066, %v5900
        %5933 = vst.msk [vmem:[%s217 + $0x88] sm:$0xff] %vm3066, %v5901
        %5934 = vst.msk [vmem:[%s217 + $0x90] sm:$0xff] %vm3066, %v5902
        %5935 = vst.msk [vmem:[%s217 + $0x98] sm:$0xff] %vm3066, %v5903
        %5936 = vst.msk [vmem:[%s217 + $0xa0] sm:$0xff] %vm3066, %v5904
        %5937 = vst.msk [vmem:[%s217 + $0xa8] sm:$0xff] %vm3066, %v5905
        %5938 = vst.msk [vmem:[%s217 + $0xb0] sm:$0xff] %vm3066, %v5906
        %5939 = vst.msk [vmem:[%s217 + $0xb8] sm:$0xff] %vm3066, %v5907
        %5940 = vst.msk [vmem:[%s217 + $0xc0] sm:$0xff] %vm3066, %v5908
        %5941 = vst.msk [vmem:[%s217 + $0xc8] sm:$0xff] %vm3066, %v5909
        %5942 = vst.msk [vmem:[%s217 + $0xd0] sm:$0xff] %vm3066, %v5910
        %5943 = vst.msk [vmem:[%s217 + $0xd8] sm:$0xff] %vm3066, %v5911
        %5944 = vst.msk [vmem:[%s217 + $0xe0] sm:$0xff] %vm3066, %v5912
        %5945 = vst.msk [vmem:[%s217 + $0xe8] sm:$0xff] %vm3066, %v5913
        %5946 = vst.msk [vmem:[%s217 + $0xf0] sm:$0xff] %vm3066, %v5914
        %5947 = vst.msk [vmem:[%s217 + $0xf8] sm:$0xff] %vm3066, %v5915
        %s5948 = sand.u32 %s137, 1
        %s5949 = scalar_lea.sflag [#allocation5], %s5948
        %s5950 = sand.u32 %s137, 1
        %s5951 = smul.addr %s5950, 256
        %s5952 = scalar_lea.vmem [#allocation4], %s5951
        // Predicated region
        $region41: #{block_forward.1} parent=39 // pred_check
          %p5953 = pneg %p147
        $region42: #{block_forward.1} parent=39 // pred_check_branch
          %5955 = sbr.rel (%p5953) target = $region44
        $region43: #{block_forward.1} parent=39 // pred_region
          %s5957 = ssub.s32 4096, 4096
          %5958 = vsyncadd %s5949, %s5957
          %s5959 = smul.addr %s19, 32
          %s5960 = smul.addr %s5959, 128
          %s5961 = scalar_lea.hbm %s5, %s5960
          %s5962 = sshll.u32 %s5952, 4
          %s5963 = int_to_ptr.vmem [resolvable:$true] %s5962
          %5968 = dma.vmem_to_hbm [thread:$0]  %s5963, 4096, %s5961, %s5949, 128, 128, 8
        $region44: #{block_forward.1} parent=39 // pred_fallthru
          _
      $region40: #{block_forward.1} parent=5 // pred_fallthru
        _
      %p5969 = scmp.le.s32.totalorder 2, %s14
      // Predicated region
      $region45: #{block_forward.1} parent=5 // pred_check
        %p5970 = pneg %p5969
      $region46: #{block_forward.1} parent=5 // pred_check_branch
        %5972 = sbr.rel (%p5970) target = $region48
      $region47: #{block_forward.1} parent=5 // pred_region
        %s5973 = ssub.s32 %s14, 2
        // Predicated region
        $region49: #{block_forward.1} parent=47 // pred_check
          %p5974 = pneg %p153
        $region50: #{block_forward.1} parent=47 // pred_check_branch
          %5976 = sbr.rel (%p5974) target = $region52
        $region51: #{block_forward.1} parent=47 // pred_region
          %s5977 = sand.u32 %s138, 1
          %s5978 = scalar_lea.sflag [#allocation5], %s5977
          %s5979 = sand.u32 %s138, 1
          %s5980 = smul.addr %s5979, 256
          %s5981 = scalar_lea.vmem [#allocation4], %s5980
          %5982 = dma.done %s5978, 4096
        $region52: #{block_forward.1} parent=47 // pred_fallthru
          _
      $region48: #{block_forward.1} parent=5 // pred_fallthru
        _
    $region6: #{block_forward.1} parent=1 // loop_footer
      %s18 = sadd.s32 1, %s14
    $region7: #{block_forward.1} parent=1 // loop_footer_branch
      %13 = sbr.rel target = $region3
    $region8: #{block_forward.1} parent=1 // loop_exit
      _
    %5983 = vsyncpa [#allocation5], 1
    %s5984 = scalar_lea.sflag [#allocation5], 1
    %5985 = vsyncpa %s5984, 1

</llo_original>
